<compile_context>
chip_gen: v6e
topology: v6e:2x2x1
jax: 0.10.0
libtpu: 0.0.40
codegen_flags: <defaults>
</compile_context>

<pallas_src>
import functools

import jax
import jax.numpy as jnp
from jax import lax
from jax.experimental import pallas as pl
from jax.experimental.pallas import tpu as pltpu


# -----------------------------------------------------------------------------
# Fused kernel: 2-layer LSTM over time + FC + sigmoid, single invocation.
#   x_ref   : (T, B, E)   time-major embedded input
#   h0_ref  : (2, B, H)   initial hidden states (layer 0, layer 1)
#   c0_ref  : (2, B, H)   initial cell states
#   w0_ref  : (E+H, 4H)   layer-0 stacked [W_ih.T ; W_hh.T], gate order i,f,g,o
#   b0_ref  : (1, 4H)     layer-0 bias (b_ih + b_hh)
#   w1_ref  : (2H, 4H)    layer-1 stacked weights
#   b1_ref  : (1, 4H)     layer-1 bias
#   wfc_ref : (1, H)      fc weight (row vector, used as a VPU reduction)
#   bfc_ref : (1, 1)      fc bias
# Outputs:
#   sig_ref : (B, 1)      sigmoid(fc(h_T of top layer))
#   hn_ref  : (2, B, H)   final hidden states
#   cn_ref  : (2, B, H)   final cell states
# -----------------------------------------------------------------------------
def fused_sentiment_lstm_kernel(x_ref, h0_ref, c0_ref,
                                w0_ref, b0_ref, w1_ref, b1_ref,
                                wfc_ref, bfc_ref,
                                sig_ref, hn_ref, cn_ref):
    T = x_ref.shape[0]
    H = h0_ref.shape[-1]

    b0 = b0_ref[...]          # (1, 4H)
    b1 = b1_ref[...]          # (1, 4H)

    def lstm_cell(xh_cat, c, w_ref, b):
        # Single fused matmul: (B, in+H) @ (in+H, 4H) -> (B, 4H)
        gates = jnp.dot(xh_cat, w_ref[...],
                        preferred_element_type=jnp.float32) + b
        # H is a multiple of 128 -> each gate slice is a free, lane-aligned view.
        i_g = jax.nn.sigmoid(gates[:, 0 * H:1 * H])
        f_g = jax.nn.sigmoid(gates[:, 1 * H:2 * H])
        g_g = jnp.tanh(gates[:, 2 * H:3 * H])
        o_g = jax.nn.sigmoid(gates[:, 3 * H:4 * H])
        c_new = f_g * c + i_g * g_g
        h_new = o_g * jnp.tanh(c_new)
        return h_new, c_new

    def step(t, carry):
        h_l0, c_l0, h_l1, c_l1 = carry
        x_t = x_ref[t]                                                # (B, E)
        h_l0, c_l0 = lstm_cell(jnp.concatenate([x_t, h_l0], axis=-1),
                               c_l0, w0_ref, b0)
        h_l1, c_l1 = lstm_cell(jnp.concatenate([h_l0, h_l1], axis=-1),
                               c_l1, w1_ref, b1)
        return (h_l0, c_l0, h_l1, c_l1)

    carry0 = (h0_ref[0], c0_ref[0], h0_ref[1], c0_ref[1])
    h0_f, c0_f, h1_f, c1_f = lax.fori_loop(0, T, step, carry0, unroll=True)

    hn_ref[0] = h0_f
    hn_ref[1] = h1_f
    cn_ref[0] = c0_f
    cn_ref[1] = c1_f

    # FC(H -> 1) + sigmoid on the top layer's final hidden state (VPU reduction,
    # not an N=1 MXU matmul).
    logits = jnp.sum(h1_f * wfc_ref[...], axis=-1, keepdims=True) + bfc_ref[...]
    sig_ref[...] = jax.nn.sigmoid(logits)


# -----------------------------------------------------------------------------
# Full forward pass: mirrors SentimentLSTM.forward(x, hidden).
# -----------------------------------------------------------------------------
def sentiment_lstm_forward(params, x_tokens, h0, c0):
    # x_tokens: (B, T) int32 ; h0, c0: (2, B, H)
    B, _ = x_tokens.shape
    H = h0.shape[-1]

    # Embedding lookup (plain-JAX glue: data-dependent gather).
    embeds = jnp.take(params["embedding"], x_tokens, axis=0)   # (B, T, E)
    x_tbe = jnp.transpose(embeds, (1, 0, 2))                   # (T, B, E) time-major

    vmem = functools.partial(pl.BlockSpec, memory_space=pltpu.MemorySpace.VMEM)

    sig, h_n, c_n = pl.pallas_call(
        fused_sentiment_lstm_kernel,
        out_shape=(
            jax.ShapeDtypeStruct((B, 1), jnp.float32),
            jax.ShapeDtypeStruct((2, B, H), jnp.float32),
            jax.ShapeDtypeStruct((2, B, H), jnp.float32),
        ),
        in_specs=[vmem()] * 9,
        out_specs=(vmem(), vmem(), vmem()),
        compiler_params=pltpu.CompilerParams(
            vmem_limit_bytes=32 * 1024 * 1024),
    )(x_tbe, h0, c0,
      params["w0"], params["b0"], params["w1"], params["b1"],
      params["fc_w"], params["fc_b"])

    sig_out = sig[:, 0]                                        # (B,)
    return sig_out, (h_n, c_n)


# -----------------------------------------------------------------------------
# Parameter init (deterministic, PyTorch-like uniform(-1/sqrt(H), 1/sqrt(H))),
# with LSTM weights pre-stacked as (in_dim + H, 4H) and biases pre-summed.
# -----------------------------------------------------------------------------
def init_params(key, vocab_size, embedding_dim, hidden_dim):
    ks = jax.random.split(key, 11)
    bound = hidden_dim ** -0.5

    def u(k, shape):
        return jax.random.uniform(k, shape, jnp.float32, -bound, bound)

    E, H = embedding_dim, hidden_dim
    params = {
        "embedding": jax.random.normal(ks[0], (vocab_size, E), jnp.float32),
        # layer 0: stacked [W_ih.T ; W_hh.T]
        "w0": jnp.concatenate([u(ks[1], (E, 4 * H)), u(ks[2], (H, 4 * H))], axis=0),
        "b0": (u(ks[3], (4 * H,)) + u(ks[4], (4 * H,))).reshape(1, 4 * H),
        # layer 1
        "w1": jnp.concatenate([u(ks[5], (H, 4 * H)), u(ks[6], (H, 4 * H))], axis=0),
        "b1": (u(ks[7], (4 * H,)) + u(ks[8], (4 * H,))).reshape(1, 4 * H),
        # fc
        "fc_w": u(ks[9], (1, H)),
        "fc_b": u(ks[10], (1, 1)),
    }
    return params


if __name__ == "__main__":
    # Small but lane/sublane-aligned configuration (module uses E=H=256, B=64).
    vocab_size = 50
    embedding_dim = 128
    hidden_dim = 128
    no_layers = 2
    batch = 8
    seq_len = 8

    key = jax.random.PRNGKey(0)
    k_params, k_tokens = jax.random.split(key)

    params = init_params(k_params, vocab_size, embedding_dim, hidden_dim)
    x_tokens = jax.random.randint(
        k_tokens, (batch, seq_len), 0, vocab_size, dtype=jnp.int32)

    # init_hidden(batch_size)
    h0 = jnp.zeros((no_layers, batch, hidden_dim), jnp.float32)
    c0 = jnp.zeros((no_layers, batch, hidden_dim), jnp.float32)

    fwd = jax.jit(sentiment_lstm_forward)
    sig_out, (h_n, c_n) = fwd(params, x_tokens, h0, c0)
    jax.block_until_ready((sig_out, h_n, c_n))

    assert sig_out.shape == (batch,)
    assert h_n.shape == (no_layers, batch, hidden_dim)
    assert c_n.shape == (no_layers, batch, hidden_dim)
    assert bool(jnp.all((sig_out >= 0.0) & (sig_out <= 1.0)))
    assert bool(jnp.all(jnp.isfinite(h_n))) and bool(jnp.all(jnp.isfinite(c_n)))

    print("KERNEL_OK")
</pallas_src>

<mosaic_0001>
module attributes {stable_mosaic.version = 11 : i64} {
  func.func @fused_sentiment_lstm_kernel(%arg0: memref<8x8x128xf32, #tpu.memory_space<vmem>>, %arg1: memref<2x8x128xf32, #tpu.memory_space<vmem>>, %arg2: memref<2x8x128xf32, #tpu.memory_space<vmem>>, %arg3: memref<256x512xf32, #tpu.memory_space<vmem>>, %arg4: memref<1x512xf32, #tpu.memory_space<vmem>>, %arg5: memref<256x512xf32, #tpu.memory_space<vmem>>, %arg6: memref<1x512xf32, #tpu.memory_space<vmem>>, %arg7: memref<1x128xf32, #tpu.memory_space<vmem>>, %arg8: memref<1x1xf32, #tpu.memory_space<vmem>>, %arg9: memref<8x1xf32, #tpu.memory_space<vmem>>, %arg10: memref<2x8x128xf32, #tpu.memory_space<vmem>>, %arg11: memref<2x8x128xf32, #tpu.memory_space<vmem>>) attributes {dimension_semantics = [], scalar_prefetch = 0 : i64, scratch_operands = 0 : i64, tpu.core_type = #tpu.core_type<tc>} {
    %c0 = arith.constant 0 : index
    %c0_0 = arith.constant 0 : index
    %0 = vector.load %arg4[%c0, %c0_0] : memref<1x512xf32, #tpu.memory_space<vmem>>, vector<1x512xf32>
    %c0_1 = arith.constant 0 : index
    %c0_2 = arith.constant 0 : index
    %1 = vector.load %arg6[%c0_1, %c0_2] : memref<1x512xf32, #tpu.memory_space<vmem>>, vector<1x512xf32>
    %c0_3 = arith.constant 0 : index
    %c0_4 = arith.constant 0 : index
    %c0_5 = arith.constant 0 : index
    %2 = vector.load %arg1[%c0_3, %c0_4, %c0_5] : memref<2x8x128xf32, #tpu.memory_space<vmem>>, vector<1x8x128xf32>
    %3 = vector.shape_cast %2 : vector<1x8x128xf32> to vector<8x128xf32>
    %c0_6 = arith.constant 0 : index
    %c0_7 = arith.constant 0 : index
    %c0_8 = arith.constant 0 : index
    %4 = vector.load %arg2[%c0_6, %c0_7, %c0_8] : memref<2x8x128xf32, #tpu.memory_space<vmem>>, vector<1x8x128xf32>
    %5 = vector.shape_cast %4 : vector<1x8x128xf32> to vector<8x128xf32>
    %c1 = arith.constant 1 : index
    %c0_9 = arith.constant 0 : index
    %c0_10 = arith.constant 0 : index
    %6 = vector.load %arg1[%c1, %c0_9, %c0_10] : memref<2x8x128xf32, #tpu.memory_space<vmem>>, vector<1x8x128xf32>
    %7 = vector.shape_cast %6 : vector<1x8x128xf32> to vector<8x128xf32>
    %c1_11 = arith.constant 1 : index
    %c0_12 = arith.constant 0 : index
    %c0_13 = arith.constant 0 : index
    %8 = vector.load %arg2[%c1_11, %c0_12, %c0_13] : memref<2x8x128xf32, #tpu.memory_space<vmem>>, vector<1x8x128xf32>
    %9 = vector.shape_cast %8 : vector<1x8x128xf32> to vector<8x128xf32>
    %c0_i32 = arith.constant 0 : i32
    %10 = arith.index_cast %c0_i32 : i32 to index
    %c0_14 = arith.constant 0 : index
    %c0_15 = arith.constant 0 : index
    %11 = vector.load %arg0[%10, %c0_14, %c0_15] : memref<8x8x128xf32, #tpu.memory_space<vmem>>, vector<1x8x128xf32>
    %12 = vector.shape_cast %11 : vector<1x8x128xf32> to vector<8x128xf32>
    %13 = tpu.concatenate %12, %3 in 1 : vector<8x128xf32>, vector<8x128xf32> -> vector<8x256xf32>
    %c0_16 = arith.constant 0 : index
    %c0_17 = arith.constant 0 : index
    %14 = vector.load %arg3[%c0_16, %c0_17] : memref<256x512xf32, #tpu.memory_space<vmem>>, vector<256x512xf32>
    %cst = arith.constant dense<0.000000e+00> : vector<8x512xf32>
    %15 = tpu.matmul %13, %14, %cst {dimension_numbers = #tpu.dot_dimension_numbers<[1], [0], [0], [1], [0, 0, 1, 1], [], []>} : vector<8x256xf32>, vector<256x512xf32>, vector<8x512xf32> -> vector<8x512xf32>
    %16 = vector.broadcast %0 : vector<1x512xf32> to vector<8x512xf32>
    %17 = arith.addf %15, %16 : vector<8x512xf32>
    %18 = vector.extract_strided_slice %17 {offsets = [0, 0], sizes = [8, 128], strides = [1, 1]} : vector<8x512xf32> to vector<8x128xf32>
    %19 = arith.negf %18 : vector<8x128xf32>
    %20 = math.exp %19 : vector<8x128xf32>
    %cst_18 = arith.constant 1.000000e+00 : f32
    %21 = vector.broadcast %cst_18 : f32 to vector<8x128xf32>
    %22 = arith.addf %21, %20 : vector<8x128xf32>
    %23 = arith.divf %21, %22 : vector<8x128xf32>
    %24 = vector.extract_strided_slice %17 {offsets = [0, 128], sizes = [8, 128], strides = [1, 1]} : vector<8x512xf32> to vector<8x128xf32>
    %25 = arith.negf %24 : vector<8x128xf32>
    %26 = math.exp %25 : vector<8x128xf32>
    %cst_19 = arith.constant 1.000000e+00 : f32
    %27 = vector.broadcast %cst_19 : f32 to vector<8x128xf32>
    %28 = arith.addf %27, %26 : vector<8x128xf32>
    %29 = arith.divf %27, %28 : vector<8x128xf32>
    %30 = vector.extract_strided_slice %17 {offsets = [0, 256], sizes = [8, 128], strides = [1, 1]} : vector<8x512xf32> to vector<8x128xf32>
    %31 = math.tanh %30 : vector<8x128xf32>
    %32 = vector.extract_strided_slice %17 {offsets = [0, 384], sizes = [8, 128], strides = [1, 1]} : vector<8x512xf32> to vector<8x128xf32>
    %33 = arith.negf %32 : vector<8x128xf32>
    %34 = math.exp %33 : vector<8x128xf32>
    %cst_20 = arith.constant 1.000000e+00 : f32
    %35 = vector.broadcast %cst_20 : f32 to vector<8x128xf32>
    %36 = arith.addf %35, %34 : vector<8x128xf32>
    %37 = arith.divf %35, %36 : vector<8x128xf32>
    %38 = arith.mulf %29, %5 : vector<8x128xf32>
    %39 = arith.mulf %23, %31 : vector<8x128xf32>
    %40 = arith.addf %38, %39 : vector<8x128xf32>
    %41 = math.tanh %40 : vector<8x128xf32>
    %42 = arith.mulf %37, %41 : vector<8x128xf32>
    %43 = tpu.concatenate %42, %7 in 1 : vector<8x128xf32>, vector<8x128xf32> -> vector<8x256xf32>
    %c0_21 = arith.constant 0 : index
    %c0_22 = arith.constant 0 : index
    %44 = vector.load %arg5[%c0_21, %c0_22] : memref<256x512xf32, #tpu.memory_space<vmem>>, vector<256x512xf32>
    %cst_23 = arith.constant dense<0.000000e+00> : vector<8x512xf32>
    %45 = tpu.matmul %43, %44, %cst_23 {dimension_numbers = #tpu.dot_dimension_numbers<[1], [0], [0], [1], [0, 0, 1, 1], [], []>} : vector<8x256xf32>, vector<256x512xf32>, vector<8x512xf32> -> vector<8x512xf32>
    %46 = vector.broadcast %1 : vector<1x512xf32> to vector<8x512xf32>
    %47 = arith.addf %45, %46 : vector<8x512xf32>
    %48 = vector.extract_strided_slice %47 {offsets = [0, 0], sizes = [8, 128], strides = [1, 1]} : vector<8x512xf32> to vector<8x128xf32>
    %49 = arith.negf %48 : vector<8x128xf32>
    %50 = math.exp %49 : vector<8x128xf32>
    %cst_24 = arith.constant 1.000000e+00 : f32
    %51 = vector.broadcast %cst_24 : f32 to vector<8x128xf32>
    %52 = arith.addf %51, %50 : vector<8x128xf32>
    %53 = arith.divf %51, %52 : vector<8x128xf32>
    %54 = vector.extract_strided_slice %47 {offsets = [0, 128], sizes = [8, 128], strides = [1, 1]} : vector<8x512xf32> to vector<8x128xf32>
    %55 = arith.negf %54 : vector<8x128xf32>
    %56 = math.exp %55 : vector<8x128xf32>
    %cst_25 = arith.constant 1.000000e+00 : f32
    %57 = vector.broadcast %cst_25 : f32 to vector<8x128xf32>
    %58 = arith.addf %57, %56 : vector<8x128xf32>
    %59 = arith.divf %57, %58 : vector<8x128xf32>
    %60 = vector.extract_strided_slice %47 {offsets = [0, 256], sizes = [8, 128], strides = [1, 1]} : vector<8x512xf32> to vector<8x128xf32>
    %61 = math.tanh %60 : vector<8x128xf32>
    %62 = vector.extract_strided_slice %47 {offsets = [0, 384], sizes = [8, 128], strides = [1, 1]} : vector<8x512xf32> to vector<8x128xf32>
    %63 = arith.negf %62 : vector<8x128xf32>
    %64 = math.exp %63 : vector<8x128xf32>
    %cst_26 = arith.constant 1.000000e+00 : f32
    %65 = vector.broadcast %cst_26 : f32 to vector<8x128xf32>
    %66 = arith.addf %65, %64 : vector<8x128xf32>
    %67 = arith.divf %65, %66 : vector<8x128xf32>
    %68 = arith.mulf %59, %9 : vector<8x128xf32>
    %69 = arith.mulf %53, %61 : vector<8x128xf32>
    %70 = arith.addf %68, %69 : vector<8x128xf32>
    %71 = math.tanh %70 : vector<8x128xf32>
    %72 = arith.mulf %67, %71 : vector<8x128xf32>
    %c1_i32 = arith.constant 1 : i32
    %73 = arith.index_cast %c1_i32 : i32 to index
    %c0_27 = arith.constant 0 : index
    %c0_28 = arith.constant 0 : index
    %74 = vector.load %arg0[%73, %c0_27, %c0_28] : memref<8x8x128xf32, #tpu.memory_space<vmem>>, vector<1x8x128xf32>
    %75 = vector.shape_cast %74 : vector<1x8x128xf32> to vector<8x128xf32>
    %76 = tpu.concatenate %75, %42 in 1 : vector<8x128xf32>, vector<8x128xf32> -> vector<8x256xf32>
    %c0_29 = arith.constant 0 : index
    %c0_30 = arith.constant 0 : index
    %77 = vector.load %arg3[%c0_29, %c0_30] : memref<256x512xf32, #tpu.memory_space<vmem>>, vector<256x512xf32>
    %cst_31 = arith.constant dense<0.000000e+00> : vector<8x512xf32>
    %78 = tpu.matmul %76, %77, %cst_31 {dimension_numbers = #tpu.dot_dimension_numbers<[1], [0], [0], [1], [0, 0, 1, 1], [], []>} : vector<8x256xf32>, vector<256x512xf32>, vector<8x512xf32> -> vector<8x512xf32>
    %79 = vector.broadcast %0 : vector<1x512xf32> to vector<8x512xf32>
    %80 = arith.addf %78, %79 : vector<8x512xf32>
    %81 = vector.extract_strided_slice %80 {offsets = [0, 0], sizes = [8, 128], strides = [1, 1]} : vector<8x512xf32> to vector<8x128xf32>
    %82 = arith.negf %81 : vector<8x128xf32>
    %83 = math.exp %82 : vector<8x128xf32>
    %cst_32 = arith.constant 1.000000e+00 : f32
    %84 = vector.broadcast %cst_32 : f32 to vector<8x128xf32>
    %85 = arith.addf %84, %83 : vector<8x128xf32>
    %86 = arith.divf %84, %85 : vector<8x128xf32>
    %87 = vector.extract_strided_slice %80 {offsets = [0, 128], sizes = [8, 128], strides = [1, 1]} : vector<8x512xf32> to vector<8x128xf32>
    %88 = arith.negf %87 : vector<8x128xf32>
    %89 = math.exp %88 : vector<8x128xf32>
    %cst_33 = arith.constant 1.000000e+00 : f32
    %90 = vector.broadcast %cst_33 : f32 to vector<8x128xf32>
    %91 = arith.addf %90, %89 : vector<8x128xf32>
    %92 = arith.divf %90, %91 : vector<8x128xf32>
    %93 = vector.extract_strided_slice %80 {offsets = [0, 256], sizes = [8, 128], strides = [1, 1]} : vector<8x512xf32> to vector<8x128xf32>
    %94 = math.tanh %93 : vector<8x128xf32>
    %95 = vector.extract_strided_slice %80 {offsets = [0, 384], sizes = [8, 128], strides = [1, 1]} : vector<8x512xf32> to vector<8x128xf32>
    %96 = arith.negf %95 : vector<8x128xf32>
    %97 = math.exp %96 : vector<8x128xf32>
    %cst_34 = arith.constant 1.000000e+00 : f32
    %98 = vector.broadcast %cst_34 : f32 to vector<8x128xf32>
    %99 = arith.addf %98, %97 : vector<8x128xf32>
    %100 = arith.divf %98, %99 : vector<8x128xf32>
    %101 = arith.mulf %92, %40 : vector<8x128xf32>
    %102 = arith.mulf %86, %94 : vector<8x128xf32>
    %103 = arith.addf %101, %102 : vector<8x128xf32>
    %104 = math.tanh %103 : vector<8x128xf32>
    %105 = arith.mulf %100, %104 : vector<8x128xf32>
    %106 = tpu.concatenate %105, %72 in 1 : vector<8x128xf32>, vector<8x128xf32> -> vector<8x256xf32>
    %c0_35 = arith.constant 0 : index
    %c0_36 = arith.constant 0 : index
    %107 = vector.load %arg5[%c0_35, %c0_36] : memref<256x512xf32, #tpu.memory_space<vmem>>, vector<256x512xf32>
    %cst_37 = arith.constant dense<0.000000e+00> : vector<8x512xf32>
    %108 = tpu.matmul %106, %107, %cst_37 {dimension_numbers = #tpu.dot_dimension_numbers<[1], [0], [0], [1], [0, 0, 1, 1], [], []>} : vector<8x256xf32>, vector<256x512xf32>, vector<8x512xf32> -> vector<8x512xf32>
    %109 = vector.broadcast %1 : vector<1x512xf32> to vector<8x512xf32>
    %110 = arith.addf %108, %109 : vector<8x512xf32>
    %111 = vector.extract_strided_slice %110 {offsets = [0, 0], sizes = [8, 128], strides = [1, 1]} : vector<8x512xf32> to vector<8x128xf32>
    %112 = arith.negf %111 : vector<8x128xf32>
    %113 = math.exp %112 : vector<8x128xf32>
    %cst_38 = arith.constant 1.000000e+00 : f32
    %114 = vector.broadcast %cst_38 : f32 to vector<8x128xf32>
    %115 = arith.addf %114, %113 : vector<8x128xf32>
    %116 = arith.divf %114, %115 : vector<8x128xf32>
    %117 = vector.extract_strided_slice %110 {offsets = [0, 128], sizes = [8, 128], strides = [1, 1]} : vector<8x512xf32> to vector<8x128xf32>
    %118 = arith.negf %117 : vector<8x128xf32>
    %119 = math.exp %118 : vector<8x128xf32>
    %cst_39 = arith.constant 1.000000e+00 : f32
    %120 = vector.broadcast %cst_39 : f32 to vector<8x128xf32>
    %121 = arith.addf %120, %119 : vector<8x128xf32>
    %122 = arith.divf %120, %121 : vector<8x128xf32>
    %123 = vector.extract_strided_slice %110 {offsets = [0, 256], sizes = [8, 128], strides = [1, 1]} : vector<8x512xf32> to vector<8x128xf32>
    %124 = math.tanh %123 : vector<8x128xf32>
    %125 = vector.extract_strided_slice %110 {offsets = [0, 384], sizes = [8, 128], strides = [1, 1]} : vector<8x512xf32> to vector<8x128xf32>
    %126 = arith.negf %125 : vector<8x128xf32>
    %127 = math.exp %126 : vector<8x128xf32>
    %cst_40 = arith.constant 1.000000e+00 : f32
    %128 = vector.broadcast %cst_40 : f32 to vector<8x128xf32>
    %129 = arith.addf %128, %127 : vector<8x128xf32>
    %130 = arith.divf %128, %129 : vector<8x128xf32>
    %131 = arith.mulf %122, %70 : vector<8x128xf32>
    %132 = arith.mulf %116, %124 : vector<8x128xf32>
    %133 = arith.addf %131, %132 : vector<8x128xf32>
    %134 = math.tanh %133 : vector<8x128xf32>
    %135 = arith.mulf %130, %134 : vector<8x128xf32>
    %c2_i32 = arith.constant 2 : i32
    %136 = arith.index_cast %c2_i32 : i32 to index
    %c0_41 = arith.constant 0 : index
    %c0_42 = arith.constant 0 : index
    %137 = vector.load %arg0[%136, %c0_41, %c0_42] : memref<8x8x128xf32, #tpu.memory_space<vmem>>, vector<1x8x128xf32>
    %138 = vector.shape_cast %137 : vector<1x8x128xf32> to vector<8x128xf32>
    %139 = tpu.concatenate %138, %105 in 1 : vector<8x128xf32>, vector<8x128xf32> -> vector<8x256xf32>
    %c0_43 = arith.constant 0 : index
    %c0_44 = arith.constant 0 : index
    %140 = vector.load %arg3[%c0_43, %c0_44] : memref<256x512xf32, #tpu.memory_space<vmem>>, vector<256x512xf32>
    %cst_45 = arith.constant dense<0.000000e+00> : vector<8x512xf32>
    %141 = tpu.matmul %139, %140, %cst_45 {dimension_numbers = #tpu.dot_dimension_numbers<[1], [0], [0], [1], [0, 0, 1, 1], [], []>} : vector<8x256xf32>, vector<256x512xf32>, vector<8x512xf32> -> vector<8x512xf32>
    %142 = vector.broadcast %0 : vector<1x512xf32> to vector<8x512xf32>
    %143 = arith.addf %141, %142 : vector<8x512xf32>
    %144 = vector.extract_strided_slice %143 {offsets = [0, 0], sizes = [8, 128], strides = [1, 1]} : vector<8x512xf32> to vector<8x128xf32>
    %145 = arith.negf %144 : vector<8x128xf32>
    %146 = math.exp %145 : vector<8x128xf32>
    %cst_46 = arith.constant 1.000000e+00 : f32
    %147 = vector.broadcast %cst_46 : f32 to vector<8x128xf32>
    %148 = arith.addf %147, %146 : vector<8x128xf32>
    %149 = arith.divf %147, %148 : vector<8x128xf32>
    %150 = vector.extract_strided_slice %143 {offsets = [0, 128], sizes = [8, 128], strides = [1, 1]} : vector<8x512xf32> to vector<8x128xf32>
    %151 = arith.negf %150 : vector<8x128xf32>
    %152 = math.exp %151 : vector<8x128xf32>
    %cst_47 = arith.constant 1.000000e+00 : f32
    %153 = vector.broadcast %cst_47 : f32 to vector<8x128xf32>
    %154 = arith.addf %153, %152 : vector<8x128xf32>
    %155 = arith.divf %153, %154 : vector<8x128xf32>
    %156 = vector.extract_strided_slice %143 {offsets = [0, 256], sizes = [8, 128], strides = [1, 1]} : vector<8x512xf32> to vector<8x128xf32>
    %157 = math.tanh %156 : vector<8x128xf32>
    %158 = vector.extract_strided_slice %143 {offsets = [0, 384], sizes = [8, 128], strides = [1, 1]} : vector<8x512xf32> to vector<8x128xf32>
    %159 = arith.negf %158 : vector<8x128xf32>
    %160 = math.exp %159 : vector<8x128xf32>
    %cst_48 = arith.constant 1.000000e+00 : f32
    %161 = vector.broadcast %cst_48 : f32 to vector<8x128xf32>
    %162 = arith.addf %161, %160 : vector<8x128xf32>
    %163 = arith.divf %161, %162 : vector<8x128xf32>
    %164 = arith.mulf %155, %103 : vector<8x128xf32>
    %165 = arith.mulf %149, %157 : vector<8x128xf32>
    %166 = arith.addf %164, %165 : vector<8x128xf32>
    %167 = math.tanh %166 : vector<8x128xf32>
    %168 = arith.mulf %163, %167 : vector<8x128xf32>
    %169 = tpu.concatenate %168, %135 in 1 : vector<8x128xf32>, vector<8x128xf32> -> vector<8x256xf32>
    %c0_49 = arith.constant 0 : index
    %c0_50 = arith.constant 0 : index
    %170 = vector.load %arg5[%c0_49, %c0_50] : memref<256x512xf32, #tpu.memory_space<vmem>>, vector<256x512xf32>
    %cst_51 = arith.constant dense<0.000000e+00> : vector<8x512xf32>
    %171 = tpu.matmul %169, %170, %cst_51 {dimension_numbers = #tpu.dot_dimension_numbers<[1], [0], [0], [1], [0, 0, 1, 1], [], []>} : vector<8x256xf32>, vector<256x512xf32>, vector<8x512xf32> -> vector<8x512xf32>
    %172 = vector.broadcast %1 : vector<1x512xf32> to vector<8x512xf32>
    %173 = arith.addf %171, %172 : vector<8x512xf32>
    %174 = vector.extract_strided_slice %173 {offsets = [0, 0], sizes = [8, 128], strides = [1, 1]} : vector<8x512xf32> to vector<8x128xf32>
    %175 = arith.negf %174 : vector<8x128xf32>
    %176 = math.exp %175 : vector<8x128xf32>
    %cst_52 = arith.constant 1.000000e+00 : f32
    %177 = vector.broadcast %cst_52 : f32 to vector<8x128xf32>
    %178 = arith.addf %177, %176 : vector<8x128xf32>
    %179 = arith.divf %177, %178 : vector<8x128xf32>
    %180 = vector.extract_strided_slice %173 {offsets = [0, 128], sizes = [8, 128], strides = [1, 1]} : vector<8x512xf32> to vector<8x128xf32>
    %181 = arith.negf %180 : vector<8x128xf32>
    %182 = math.exp %181 : vector<8x128xf32>
    %cst_53 = arith.constant 1.000000e+00 : f32
    %183 = vector.broadcast %cst_53 : f32 to vector<8x128xf32>
    %184 = arith.addf %183, %182 : vector<8x128xf32>
    %185 = arith.divf %183, %184 : vector<8x128xf32>
    %186 = vector.extract_strided_slice %173 {offsets = [0, 256], sizes = [8, 128], strides = [1, 1]} : vector<8x512xf32> to vector<8x128xf32>
    %187 = math.tanh %186 : vector<8x128xf32>
    %188 = vector.extract_strided_slice %173 {offsets = [0, 384], sizes = [8, 128], strides = [1, 1]} : vector<8x512xf32> to vector<8x128xf32>
    %189 = arith.negf %188 : vector<8x128xf32>
    %190 = math.exp %189 : vector<8x128xf32>
    %cst_54 = arith.constant 1.000000e+00 : f32
    %191 = vector.broadcast %cst_54 : f32 to vector<8x128xf32>
    %192 = arith.addf %191, %190 : vector<8x128xf32>
    %193 = arith.divf %191, %192 : vector<8x128xf32>
    %194 = arith.mulf %185, %133 : vector<8x128xf32>
    %195 = arith.mulf %179, %187 : vector<8x128xf32>
    %196 = arith.addf %194, %195 : vector<8x128xf32>
    %197 = math.tanh %196 : vector<8x128xf32>
    %198 = arith.mulf %193, %197 : vector<8x128xf32>
    %c3_i32 = arith.constant 3 : i32
    %199 = arith.index_cast %c3_i32 : i32 to index
    %c0_55 = arith.constant 0 : index
    %c0_56 = arith.constant 0 : index
    %200 = vector.load %arg0[%199, %c0_55, %c0_56] : memref<8x8x128xf32, #tpu.memory_space<vmem>>, vector<1x8x128xf32>
    %201 = vector.shape_cast %200 : vector<1x8x128xf32> to vector<8x128xf32>
    %202 = tpu.concatenate %201, %168 in 1 : vector<8x128xf32>, vector<8x128xf32> -> vector<8x256xf32>
    %c0_57 = arith.constant 0 : index
    %c0_58 = arith.constant 0 : index
    %203 = vector.load %arg3[%c0_57, %c0_58] : memref<256x512xf32, #tpu.memory_space<vmem>>, vector<256x512xf32>
    %cst_59 = arith.constant dense<0.000000e+00> : vector<8x512xf32>
    %204 = tpu.matmul %202, %203, %cst_59 {dimension_numbers = #tpu.dot_dimension_numbers<[1], [0], [0], [1], [0, 0, 1, 1], [], []>} : vector<8x256xf32>, vector<256x512xf32>, vector<8x512xf32> -> vector<8x512xf32>
    %205 = vector.broadcast %0 : vector<1x512xf32> to vector<8x512xf32>
    %206 = arith.addf %204, %205 : vector<8x512xf32>
    %207 = vector.extract_strided_slice %206 {offsets = [0, 0], sizes = [8, 128], strides = [1, 1]} : vector<8x512xf32> to vector<8x128xf32>
    %208 = arith.negf %207 : vector<8x128xf32>
    %209 = math.exp %208 : vector<8x128xf32>
    %cst_60 = arith.constant 1.000000e+00 : f32
    %210 = vector.broadcast %cst_60 : f32 to vector<8x128xf32>
    %211 = arith.addf %210, %209 : vector<8x128xf32>
    %212 = arith.divf %210, %211 : vector<8x128xf32>
    %213 = vector.extract_strided_slice %206 {offsets = [0, 128], sizes = [8, 128], strides = [1, 1]} : vector<8x512xf32> to vector<8x128xf32>
    %214 = arith.negf %213 : vector<8x128xf32>
    %215 = math.exp %214 : vector<8x128xf32>
    %cst_61 = arith.constant 1.000000e+00 : f32
    %216 = vector.broadcast %cst_61 : f32 to vector<8x128xf32>
    %217 = arith.addf %216, %215 : vector<8x128xf32>
    %218 = arith.divf %216, %217 : vector<8x128xf32>
    %219 = vector.extract_strided_slice %206 {offsets = [0, 256], sizes = [8, 128], strides = [1, 1]} : vector<8x512xf32> to vector<8x128xf32>
    %220 = math.tanh %219 : vector<8x128xf32>
    %221 = vector.extract_strided_slice %206 {offsets = [0, 384], sizes = [8, 128], strides = [1, 1]} : vector<8x512xf32> to vector<8x128xf32>
    %222 = arith.negf %221 : vector<8x128xf32>
    %223 = math.exp %222 : vector<8x128xf32>
    %cst_62 = arith.constant 1.000000e+00 : f32
    %224 = vector.broadcast %cst_62 : f32 to vector<8x128xf32>
    %225 = arith.addf %224, %223 : vector<8x128xf32>
    %226 = arith.divf %224, %225 : vector<8x128xf32>
    %227 = arith.mulf %218, %166 : vector<8x128xf32>
    %228 = arith.mulf %212, %220 : vector<8x128xf32>
    %229 = arith.addf %227, %228 : vector<8x128xf32>
    %230 = math.tanh %229 : vector<8x128xf32>
    %231 = arith.mulf %226, %230 : vector<8x128xf32>
    %232 = tpu.concatenate %231, %198 in 1 : vector<8x128xf32>, vector<8x128xf32> -> vector<8x256xf32>
    %c0_63 = arith.constant 0 : index
    %c0_64 = arith.constant 0 : index
    %233 = vector.load %arg5[%c0_63, %c0_64] : memref<256x512xf32, #tpu.memory_space<vmem>>, vector<256x512xf32>
    %cst_65 = arith.constant dense<0.000000e+00> : vector<8x512xf32>
    %234 = tpu.matmul %232, %233, %cst_65 {dimension_numbers = #tpu.dot_dimension_numbers<[1], [0], [0], [1], [0, 0, 1, 1], [], []>} : vector<8x256xf32>, vector<256x512xf32>, vector<8x512xf32> -> vector<8x512xf32>
    %235 = vector.broadcast %1 : vector<1x512xf32> to vector<8x512xf32>
    %236 = arith.addf %234, %235 : vector<8x512xf32>
    %237 = vector.extract_strided_slice %236 {offsets = [0, 0], sizes = [8, 128], strides = [1, 1]} : vector<8x512xf32> to vector<8x128xf32>
    %238 = arith.negf %237 : vector<8x128xf32>
    %239 = math.exp %238 : vector<8x128xf32>
    %cst_66 = arith.constant 1.000000e+00 : f32
    %240 = vector.broadcast %cst_66 : f32 to vector<8x128xf32>
    %241 = arith.addf %240, %239 : vector<8x128xf32>
    %242 = arith.divf %240, %241 : vector<8x128xf32>
    %243 = vector.extract_strided_slice %236 {offsets = [0, 128], sizes = [8, 128], strides = [1, 1]} : vector<8x512xf32> to vector<8x128xf32>
    %244 = arith.negf %243 : vector<8x128xf32>
    %245 = math.exp %244 : vector<8x128xf32>
    %cst_67 = arith.constant 1.000000e+00 : f32
    %246 = vector.broadcast %cst_67 : f32 to vector<8x128xf32>
    %247 = arith.addf %246, %245 : vector<8x128xf32>
    %248 = arith.divf %246, %247 : vector<8x128xf32>
    %249 = vector.extract_strided_slice %236 {offsets = [0, 256], sizes = [8, 128], strides = [1, 1]} : vector<8x512xf32> to vector<8x128xf32>
    %250 = math.tanh %249 : vector<8x128xf32>
    %251 = vector.extract_strided_slice %236 {offsets = [0, 384], sizes = [8, 128], strides = [1, 1]} : vector<8x512xf32> to vector<8x128xf32>
    %252 = arith.negf %251 : vector<8x128xf32>
    %253 = math.exp %252 : vector<8x128xf32>
    %cst_68 = arith.constant 1.000000e+00 : f32
    %254 = vector.broadcast %cst_68 : f32 to vector<8x128xf32>
    %255 = arith.addf %254, %253 : vector<8x128xf32>
    %256 = arith.divf %254, %255 : vector<8x128xf32>
    %257 = arith.mulf %248, %196 : vector<8x128xf32>
    %258 = arith.mulf %242, %250 : vector<8x128xf32>
    %259 = arith.addf %257, %258 : vector<8x128xf32>
    %260 = math.tanh %259 : vector<8x128xf32>
    %261 = arith.mulf %256, %260 : vector<8x128xf32>
    %c4_i32 = arith.constant 4 : i32
    %262 = arith.index_cast %c4_i32 : i32 to index
    %c0_69 = arith.constant 0 : index
    %c0_70 = arith.constant 0 : index
    %263 = vector.load %arg0[%262, %c0_69, %c0_70] : memref<8x8x128xf32, #tpu.memory_space<vmem>>, vector<1x8x128xf32>
    %264 = vector.shape_cast %263 : vector<1x8x128xf32> to vector<8x128xf32>
    %265 = tpu.concatenate %264, %231 in 1 : vector<8x128xf32>, vector<8x128xf32> -> vector<8x256xf32>
    %c0_71 = arith.constant 0 : index
    %c0_72 = arith.constant 0 : index
    %266 = vector.load %arg3[%c0_71, %c0_72] : memref<256x512xf32, #tpu.memory_space<vmem>>, vector<256x512xf32>
    %cst_73 = arith.constant dense<0.000000e+00> : vector<8x512xf32>
    %267 = tpu.matmul %265, %266, %cst_73 {dimension_numbers = #tpu.dot_dimension_numbers<[1], [0], [0], [1], [0, 0, 1, 1], [], []>} : vector<8x256xf32>, vector<256x512xf32>, vector<8x512xf32> -> vector<8x512xf32>
    %268 = vector.broadcast %0 : vector<1x512xf32> to vector<8x512xf32>
    %269 = arith.addf %267, %268 : vector<8x512xf32>
    %270 = vector.extract_strided_slice %269 {offsets = [0, 0], sizes = [8, 128], strides = [1, 1]} : vector<8x512xf32> to vector<8x128xf32>
    %271 = arith.negf %270 : vector<8x128xf32>
    %272 = math.exp %271 : vector<8x128xf32>
    %cst_74 = arith.constant 1.000000e+00 : f32
    %273 = vector.broadcast %cst_74 : f32 to vector<8x128xf32>
    %274 = arith.addf %273, %272 : vector<8x128xf32>
    %275 = arith.divf %273, %274 : vector<8x128xf32>
    %276 = vector.extract_strided_slice %269 {offsets = [0, 128], sizes = [8, 128], strides = [1, 1]} : vector<8x512xf32> to vector<8x128xf32>
    %277 = arith.negf %276 : vector<8x128xf32>
    %278 = math.exp %277 : vector<8x128xf32>
    %cst_75 = arith.constant 1.000000e+00 : f32
    %279 = vector.broadcast %cst_75 : f32 to vector<8x128xf32>
    %280 = arith.addf %279, %278 : vector<8x128xf32>
    %281 = arith.divf %279, %280 : vector<8x128xf32>
    %282 = vector.extract_strided_slice %269 {offsets = [0, 256], sizes = [8, 128], strides = [1, 1]} : vector<8x512xf32> to vector<8x128xf32>
    %283 = math.tanh %282 : vector<8x128xf32>
    %284 = vector.extract_strided_slice %269 {offsets = [0, 384], sizes = [8, 128], strides = [1, 1]} : vector<8x512xf32> to vector<8x128xf32>
    %285 = arith.negf %284 : vector<8x128xf32>
    %286 = math.exp %285 : vector<8x128xf32>
    %cst_76 = arith.constant 1.000000e+00 : f32
    %287 = vector.broadcast %cst_76 : f32 to vector<8x128xf32>
    %288 = arith.addf %287, %286 : vector<8x128xf32>
    %289 = arith.divf %287, %288 : vector<8x128xf32>
    %290 = arith.mulf %281, %229 : vector<8x128xf32>
    %291 = arith.mulf %275, %283 : vector<8x128xf32>
    %292 = arith.addf %290, %291 : vector<8x128xf32>
    %293 = math.tanh %292 : vector<8x128xf32>
    %294 = arith.mulf %289, %293 : vector<8x128xf32>
    %295 = tpu.concatenate %294, %261 in 1 : vector<8x128xf32>, vector<8x128xf32> -> vector<8x256xf32>
    %c0_77 = arith.constant 0 : index
    %c0_78 = arith.constant 0 : index
    %296 = vector.load %arg5[%c0_77, %c0_78] : memref<256x512xf32, #tpu.memory_space<vmem>>, vector<256x512xf32>
    %cst_79 = arith.constant dense<0.000000e+00> : vector<8x512xf32>
    %297 = tpu.matmul %295, %296, %cst_79 {dimension_numbers = #tpu.dot_dimension_numbers<[1], [0], [0], [1], [0, 0, 1, 1], [], []>} : vector<8x256xf32>, vector<256x512xf32>, vector<8x512xf32> -> vector<8x512xf32>
    %298 = vector.broadcast %1 : vector<1x512xf32> to vector<8x512xf32>
    %299 = arith.addf %297, %298 : vector<8x512xf32>
    %300 = vector.extract_strided_slice %299 {offsets = [0, 0], sizes = [8, 128], strides = [1, 1]} : vector<8x512xf32> to vector<8x128xf32>
    %301 = arith.negf %300 : vector<8x128xf32>
    %302 = math.exp %301 : vector<8x128xf32>
    %cst_80 = arith.constant 1.000000e+00 : f32
    %303 = vector.broadcast %cst_80 : f32 to vector<8x128xf32>
    %304 = arith.addf %303, %302 : vector<8x128xf32>
    %305 = arith.divf %303, %304 : vector<8x128xf32>
    %306 = vector.extract_strided_slice %299 {offsets = [0, 128], sizes = [8, 128], strides = [1, 1]} : vector<8x512xf32> to vector<8x128xf32>
    %307 = arith.negf %306 : vector<8x128xf32>
    %308 = math.exp %307 : vector<8x128xf32>
    %cst_81 = arith.constant 1.000000e+00 : f32
    %309 = vector.broadcast %cst_81 : f32 to vector<8x128xf32>
    %310 = arith.addf %309, %308 : vector<8x128xf32>
    %311 = arith.divf %309, %310 : vector<8x128xf32>
    %312 = vector.extract_strided_slice %299 {offsets = [0, 256], sizes = [8, 128], strides = [1, 1]} : vector<8x512xf32> to vector<8x128xf32>
    %313 = math.tanh %312 : vector<8x128xf32>
    %314 = vector.extract_strided_slice %299 {offsets = [0, 384], sizes = [8, 128], strides = [1, 1]} : vector<8x512xf32> to vector<8x128xf32>
    %315 = arith.negf %314 : vector<8x128xf32>
    %316 = math.exp %315 : vector<8x128xf32>
    %cst_82 = arith.constant 1.000000e+00 : f32
    %317 = vector.broadcast %cst_82 : f32 to vector<8x128xf32>
    %318 = arith.addf %317, %316 : vector<8x128xf32>
    %319 = arith.divf %317, %318 : vector<8x128xf32>
    %320 = arith.mulf %311, %259 : vector<8x128xf32>
    %321 = arith.mulf %305, %313 : vector<8x128xf32>
    %322 = arith.addf %320, %321 : vector<8x128xf32>
    %323 = math.tanh %322 : vector<8x128xf32>
    %324 = arith.mulf %319, %323 : vector<8x128xf32>
    %c5_i32 = arith.constant 5 : i32
    %325 = arith.index_cast %c5_i32 : i32 to index
    %c0_83 = arith.constant 0 : index
    %c0_84 = arith.constant 0 : index
    %326 = vector.load %arg0[%325, %c0_83, %c0_84] : memref<8x8x128xf32, #tpu.memory_space<vmem>>, vector<1x8x128xf32>
    %327 = vector.shape_cast %326 : vector<1x8x128xf32> to vector<8x128xf32>
    %328 = tpu.concatenate %327, %294 in 1 : vector<8x128xf32>, vector<8x128xf32> -> vector<8x256xf32>
    %c0_85 = arith.constant 0 : index
    %c0_86 = arith.constant 0 : index
    %329 = vector.load %arg3[%c0_85, %c0_86] : memref<256x512xf32, #tpu.memory_space<vmem>>, vector<256x512xf32>
    %cst_87 = arith.constant dense<0.000000e+00> : vector<8x512xf32>
    %330 = tpu.matmul %328, %329, %cst_87 {dimension_numbers = #tpu.dot_dimension_numbers<[1], [0], [0], [1], [0, 0, 1, 1], [], []>} : vector<8x256xf32>, vector<256x512xf32>, vector<8x512xf32> -> vector<8x512xf32>
    %331 = vector.broadcast %0 : vector<1x512xf32> to vector<8x512xf32>
    %332 = arith.addf %330, %331 : vector<8x512xf32>
    %333 = vector.extract_strided_slice %332 {offsets = [0, 0], sizes = [8, 128], strides = [1, 1]} : vector<8x512xf32> to vector<8x128xf32>
    %334 = arith.negf %333 : vector<8x128xf32>
    %335 = math.exp %334 : vector<8x128xf32>
    %cst_88 = arith.constant 1.000000e+00 : f32
    %336 = vector.broadcast %cst_88 : f32 to vector<8x128xf32>
    %337 = arith.addf %336, %335 : vector<8x128xf32>
    %338 = arith.divf %336, %337 : vector<8x128xf32>
    %339 = vector.extract_strided_slice %332 {offsets = [0, 128], sizes = [8, 128], strides = [1, 1]} : vector<8x512xf32> to vector<8x128xf32>
    %340 = arith.negf %339 : vector<8x128xf32>
    %341 = math.exp %340 : vector<8x128xf32>
    %cst_89 = arith.constant 1.000000e+00 : f32
    %342 = vector.broadcast %cst_89 : f32 to vector<8x128xf32>
    %343 = arith.addf %342, %341 : vector<8x128xf32>
    %344 = arith.divf %342, %343 : vector<8x128xf32>
    %345 = vector.extract_strided_slice %332 {offsets = [0, 256], sizes = [8, 128], strides = [1, 1]} : vector<8x512xf32> to vector<8x128xf32>
    %346 = math.tanh %345 : vector<8x128xf32>
    %347 = vector.extract_strided_slice %332 {offsets = [0, 384], sizes = [8, 128], strides = [1, 1]} : vector<8x512xf32> to vector<8x128xf32>
    %348 = arith.negf %347 : vector<8x128xf32>
    %349 = math.exp %348 : vector<8x128xf32>
    %cst_90 = arith.constant 1.000000e+00 : f32
    %350 = vector.broadcast %cst_90 : f32 to vector<8x128xf32>
    %351 = arith.addf %350, %349 : vector<8x128xf32>
    %352 = arith.divf %350, %351 : vector<8x128xf32>
    %353 = arith.mulf %344, %292 : vector<8x128xf32>
    %354 = arith.mulf %338, %346 : vector<8x128xf32>
    %355 = arith.addf %353, %354 : vector<8x128xf32>
    %356 = math.tanh %355 : vector<8x128xf32>
    %357 = arith.mulf %352, %356 : vector<8x128xf32>
    %358 = tpu.concatenate %357, %324 in 1 : vector<8x128xf32>, vector<8x128xf32> -> vector<8x256xf32>
    %c0_91 = arith.constant 0 : index
    %c0_92 = arith.constant 0 : index
    %359 = vector.load %arg5[%c0_91, %c0_92] : memref<256x512xf32, #tpu.memory_space<vmem>>, vector<256x512xf32>
    %cst_93 = arith.constant dense<0.000000e+00> : vector<8x512xf32>
    %360 = tpu.matmul %358, %359, %cst_93 {dimension_numbers = #tpu.dot_dimension_numbers<[1], [0], [0], [1], [0, 0, 1, 1], [], []>} : vector<8x256xf32>, vector<256x512xf32>, vector<8x512xf32> -> vector<8x512xf32>
    %361 = vector.broadcast %1 : vector<1x512xf32> to vector<8x512xf32>
    %362 = arith.addf %360, %361 : vector<8x512xf32>
    %363 = vector.extract_strided_slice %362 {offsets = [0, 0], sizes = [8, 128], strides = [1, 1]} : vector<8x512xf32> to vector<8x128xf32>
    %364 = arith.negf %363 : vector<8x128xf32>
    %365 = math.exp %364 : vector<8x128xf32>
    %cst_94 = arith.constant 1.000000e+00 : f32
    %366 = vector.broadcast %cst_94 : f32 to vector<8x128xf32>
    %367 = arith.addf %366, %365 : vector<8x128xf32>
    %368 = arith.divf %366, %367 : vector<8x128xf32>
    %369 = vector.extract_strided_slice %362 {offsets = [0, 128], sizes = [8, 128], strides = [1, 1]} : vector<8x512xf32> to vector<8x128xf32>
    %370 = arith.negf %369 : vector<8x128xf32>
    %371 = math.exp %370 : vector<8x128xf32>
    %cst_95 = arith.constant 1.000000e+00 : f32
    %372 = vector.broadcast %cst_95 : f32 to vector<8x128xf32>
    %373 = arith.addf %372, %371 : vector<8x128xf32>
    %374 = arith.divf %372, %373 : vector<8x128xf32>
    %375 = vector.extract_strided_slice %362 {offsets = [0, 256], sizes = [8, 128], strides = [1, 1]} : vector<8x512xf32> to vector<8x128xf32>
    %376 = math.tanh %375 : vector<8x128xf32>
    %377 = vector.extract_strided_slice %362 {offsets = [0, 384], sizes = [8, 128], strides = [1, 1]} : vector<8x512xf32> to vector<8x128xf32>
    %378 = arith.negf %377 : vector<8x128xf32>
    %379 = math.exp %378 : vector<8x128xf32>
    %cst_96 = arith.constant 1.000000e+00 : f32
    %380 = vector.broadcast %cst_96 : f32 to vector<8x128xf32>
    %381 = arith.addf %380, %379 : vector<8x128xf32>
    %382 = arith.divf %380, %381 : vector<8x128xf32>
    %383 = arith.mulf %374, %322 : vector<8x128xf32>
    %384 = arith.mulf %368, %376 : vector<8x128xf32>
    %385 = arith.addf %383, %384 : vector<8x128xf32>
    %386 = math.tanh %385 : vector<8x128xf32>
    %387 = arith.mulf %382, %386 : vector<8x128xf32>
    %c6_i32 = arith.constant 6 : i32
    %388 = arith.index_cast %c6_i32 : i32 to index
    %c0_97 = arith.constant 0 : index
    %c0_98 = arith.constant 0 : index
    %389 = vector.load %arg0[%388, %c0_97, %c0_98] : memref<8x8x128xf32, #tpu.memory_space<vmem>>, vector<1x8x128xf32>
    %390 = vector.shape_cast %389 : vector<1x8x128xf32> to vector<8x128xf32>
    %391 = tpu.concatenate %390, %357 in 1 : vector<8x128xf32>, vector<8x128xf32> -> vector<8x256xf32>
    %c0_99 = arith.constant 0 : index
    %c0_100 = arith.constant 0 : index
    %392 = vector.load %arg3[%c0_99, %c0_100] : memref<256x512xf32, #tpu.memory_space<vmem>>, vector<256x512xf32>
    %cst_101 = arith.constant dense<0.000000e+00> : vector<8x512xf32>
    %393 = tpu.matmul %391, %392, %cst_101 {dimension_numbers = #tpu.dot_dimension_numbers<[1], [0], [0], [1], [0, 0, 1, 1], [], []>} : vector<8x256xf32>, vector<256x512xf32>, vector<8x512xf32> -> vector<8x512xf32>
    %394 = vector.broadcast %0 : vector<1x512xf32> to vector<8x512xf32>
    %395 = arith.addf %393, %394 : vector<8x512xf32>
    %396 = vector.extract_strided_slice %395 {offsets = [0, 0], sizes = [8, 128], strides = [1, 1]} : vector<8x512xf32> to vector<8x128xf32>
    %397 = arith.negf %396 : vector<8x128xf32>
    %398 = math.exp %397 : vector<8x128xf32>
    %cst_102 = arith.constant 1.000000e+00 : f32
    %399 = vector.broadcast %cst_102 : f32 to vector<8x128xf32>
    %400 = arith.addf %399, %398 : vector<8x128xf32>
    %401 = arith.divf %399, %400 : vector<8x128xf32>
    %402 = vector.extract_strided_slice %395 {offsets = [0, 128], sizes = [8, 128], strides = [1, 1]} : vector<8x512xf32> to vector<8x128xf32>
    %403 = arith.negf %402 : vector<8x128xf32>
    %404 = math.exp %403 : vector<8x128xf32>
    %cst_103 = arith.constant 1.000000e+00 : f32
    %405 = vector.broadcast %cst_103 : f32 to vector<8x128xf32>
    %406 = arith.addf %405, %404 : vector<8x128xf32>
    %407 = arith.divf %405, %406 : vector<8x128xf32>
    %408 = vector.extract_strided_slice %395 {offsets = [0, 256], sizes = [8, 128], strides = [1, 1]} : vector<8x512xf32> to vector<8x128xf32>
    %409 = math.tanh %408 : vector<8x128xf32>
    %410 = vector.extract_strided_slice %395 {offsets = [0, 384], sizes = [8, 128], strides = [1, 1]} : vector<8x512xf32> to vector<8x128xf32>
    %411 = arith.negf %410 : vector<8x128xf32>
    %412 = math.exp %411 : vector<8x128xf32>
    %cst_104 = arith.constant 1.000000e+00 : f32
    %413 = vector.broadcast %cst_104 : f32 to vector<8x128xf32>
    %414 = arith.addf %413, %412 : vector<8x128xf32>
    %415 = arith.divf %413, %414 : vector<8x128xf32>
    %416 = arith.mulf %407, %355 : vector<8x128xf32>
    %417 = arith.mulf %401, %409 : vector<8x128xf32>
    %418 = arith.addf %416, %417 : vector<8x128xf32>
    %419 = math.tanh %418 : vector<8x128xf32>
    %420 = arith.mulf %415, %419 : vector<8x128xf32>
    %421 = tpu.concatenate %420, %387 in 1 : vector<8x128xf32>, vector<8x128xf32> -> vector<8x256xf32>
    %c0_105 = arith.constant 0 : index
    %c0_106 = arith.constant 0 : index
    %422 = vector.load %arg5[%c0_105, %c0_106] : memref<256x512xf32, #tpu.memory_space<vmem>>, vector<256x512xf32>
    %cst_107 = arith.constant dense<0.000000e+00> : vector<8x512xf32>
    %423 = tpu.matmul %421, %422, %cst_107 {dimension_numbers = #tpu.dot_dimension_numbers<[1], [0], [0], [1], [0, 0, 1, 1], [], []>} : vector<8x256xf32>, vector<256x512xf32>, vector<8x512xf32> -> vector<8x512xf32>
    %424 = vector.broadcast %1 : vector<1x512xf32> to vector<8x512xf32>
    %425 = arith.addf %423, %424 : vector<8x512xf32>
    %426 = vector.extract_strided_slice %425 {offsets = [0, 0], sizes = [8, 128], strides = [1, 1]} : vector<8x512xf32> to vector<8x128xf32>
    %427 = arith.negf %426 : vector<8x128xf32>
    %428 = math.exp %427 : vector<8x128xf32>
    %cst_108 = arith.constant 1.000000e+00 : f32
    %429 = vector.broadcast %cst_108 : f32 to vector<8x128xf32>
    %430 = arith.addf %429, %428 : vector<8x128xf32>
    %431 = arith.divf %429, %430 : vector<8x128xf32>
    %432 = vector.extract_strided_slice %425 {offsets = [0, 128], sizes = [8, 128], strides = [1, 1]} : vector<8x512xf32> to vector<8x128xf32>
    %433 = arith.negf %432 : vector<8x128xf32>
    %434 = math.exp %433 : vector<8x128xf32>
    %cst_109 = arith.constant 1.000000e+00 : f32
    %435 = vector.broadcast %cst_109 : f32 to vector<8x128xf32>
    %436 = arith.addf %435, %434 : vector<8x128xf32>
    %437 = arith.divf %435, %436 : vector<8x128xf32>
    %438 = vector.extract_strided_slice %425 {offsets = [0, 256], sizes = [8, 128], strides = [1, 1]} : vector<8x512xf32> to vector<8x128xf32>
    %439 = math.tanh %438 : vector<8x128xf32>
    %440 = vector.extract_strided_slice %425 {offsets = [0, 384], sizes = [8, 128], strides = [1, 1]} : vector<8x512xf32> to vector<8x128xf32>
    %441 = arith.negf %440 : vector<8x128xf32>
    %442 = math.exp %441 : vector<8x128xf32>
    %cst_110 = arith.constant 1.000000e+00 : f32
    %443 = vector.broadcast %cst_110 : f32 to vector<8x128xf32>
    %444 = arith.addf %443, %442 : vector<8x128xf32>
    %445 = arith.divf %443, %444 : vector<8x128xf32>
    %446 = arith.mulf %437, %385 : vector<8x128xf32>
    %447 = arith.mulf %431, %439 : vector<8x128xf32>
    %448 = arith.addf %446, %447 : vector<8x128xf32>
    %449 = math.tanh %448 : vector<8x128xf32>
    %450 = arith.mulf %445, %449 : vector<8x128xf32>
    %c7_i32 = arith.constant 7 : i32
    %451 = arith.index_cast %c7_i32 : i32 to index
    %c0_111 = arith.constant 0 : index
    %c0_112 = arith.constant 0 : index
    %452 = vector.load %arg0[%451, %c0_111, %c0_112] : memref<8x8x128xf32, #tpu.memory_space<vmem>>, vector<1x8x128xf32>
    %453 = vector.shape_cast %452 : vector<1x8x128xf32> to vector<8x128xf32>
    %454 = tpu.concatenate %453, %420 in 1 : vector<8x128xf32>, vector<8x128xf32> -> vector<8x256xf32>
    %c0_113 = arith.constant 0 : index
    %c0_114 = arith.constant 0 : index
    %455 = vector.load %arg3[%c0_113, %c0_114] : memref<256x512xf32, #tpu.memory_space<vmem>>, vector<256x512xf32>
    %cst_115 = arith.constant dense<0.000000e+00> : vector<8x512xf32>
    %456 = tpu.matmul %454, %455, %cst_115 {dimension_numbers = #tpu.dot_dimension_numbers<[1], [0], [0], [1], [0, 0, 1, 1], [], []>} : vector<8x256xf32>, vector<256x512xf32>, vector<8x512xf32> -> vector<8x512xf32>
    %457 = vector.broadcast %0 : vector<1x512xf32> to vector<8x512xf32>
    %458 = arith.addf %456, %457 : vector<8x512xf32>
    %459 = vector.extract_strided_slice %458 {offsets = [0, 0], sizes = [8, 128], strides = [1, 1]} : vector<8x512xf32> to vector<8x128xf32>
    %460 = arith.negf %459 : vector<8x128xf32>
    %461 = math.exp %460 : vector<8x128xf32>
    %cst_116 = arith.constant 1.000000e+00 : f32
    %462 = vector.broadcast %cst_116 : f32 to vector<8x128xf32>
    %463 = arith.addf %462, %461 : vector<8x128xf32>
    %464 = arith.divf %462, %463 : vector<8x128xf32>
    %465 = vector.extract_strided_slice %458 {offsets = [0, 128], sizes = [8, 128], strides = [1, 1]} : vector<8x512xf32> to vector<8x128xf32>
    %466 = arith.negf %465 : vector<8x128xf32>
    %467 = math.exp %466 : vector<8x128xf32>
    %cst_117 = arith.constant 1.000000e+00 : f32
    %468 = vector.broadcast %cst_117 : f32 to vector<8x128xf32>
    %469 = arith.addf %468, %467 : vector<8x128xf32>
    %470 = arith.divf %468, %469 : vector<8x128xf32>
    %471 = vector.extract_strided_slice %458 {offsets = [0, 256], sizes = [8, 128], strides = [1, 1]} : vector<8x512xf32> to vector<8x128xf32>
    %472 = math.tanh %471 : vector<8x128xf32>
    %473 = vector.extract_strided_slice %458 {offsets = [0, 384], sizes = [8, 128], strides = [1, 1]} : vector<8x512xf32> to vector<8x128xf32>
    %474 = arith.negf %473 : vector<8x128xf32>
    %475 = math.exp %474 : vector<8x128xf32>
    %cst_118 = arith.constant 1.000000e+00 : f32
    %476 = vector.broadcast %cst_118 : f32 to vector<8x128xf32>
    %477 = arith.addf %476, %475 : vector<8x128xf32>
    %478 = arith.divf %476, %477 : vector<8x128xf32>
    %479 = arith.mulf %470, %418 : vector<8x128xf32>
    %480 = arith.mulf %464, %472 : vector<8x128xf32>
    %481 = arith.addf %479, %480 : vector<8x128xf32>
    %482 = math.tanh %481 : vector<8x128xf32>
    %483 = arith.mulf %478, %482 : vector<8x128xf32>
    %484 = tpu.concatenate %483, %450 in 1 : vector<8x128xf32>, vector<8x128xf32> -> vector<8x256xf32>
    %c0_119 = arith.constant 0 : index
    %c0_120 = arith.constant 0 : index
    %485 = vector.load %arg5[%c0_119, %c0_120] : memref<256x512xf32, #tpu.memory_space<vmem>>, vector<256x512xf32>
    %cst_121 = arith.constant dense<0.000000e+00> : vector<8x512xf32>
    %486 = tpu.matmul %484, %485, %cst_121 {dimension_numbers = #tpu.dot_dimension_numbers<[1], [0], [0], [1], [0, 0, 1, 1], [], []>} : vector<8x256xf32>, vector<256x512xf32>, vector<8x512xf32> -> vector<8x512xf32>
    %487 = vector.broadcast %1 : vector<1x512xf32> to vector<8x512xf32>
    %488 = arith.addf %486, %487 : vector<8x512xf32>
    %489 = vector.extract_strided_slice %488 {offsets = [0, 0], sizes = [8, 128], strides = [1, 1]} : vector<8x512xf32> to vector<8x128xf32>
    %490 = arith.negf %489 : vector<8x128xf32>
    %491 = math.exp %490 : vector<8x128xf32>
    %cst_122 = arith.constant 1.000000e+00 : f32
    %492 = vector.broadcast %cst_122 : f32 to vector<8x128xf32>
    %493 = arith.addf %492, %491 : vector<8x128xf32>
    %494 = arith.divf %492, %493 : vector<8x128xf32>
    %495 = vector.extract_strided_slice %488 {offsets = [0, 128], sizes = [8, 128], strides = [1, 1]} : vector<8x512xf32> to vector<8x128xf32>
    %496 = arith.negf %495 : vector<8x128xf32>
    %497 = math.exp %496 : vector<8x128xf32>
    %cst_123 = arith.constant 1.000000e+00 : f32
    %498 = vector.broadcast %cst_123 : f32 to vector<8x128xf32>
    %499 = arith.addf %498, %497 : vector<8x128xf32>
    %500 = arith.divf %498, %499 : vector<8x128xf32>
    %501 = vector.extract_strided_slice %488 {offsets = [0, 256], sizes = [8, 128], strides = [1, 1]} : vector<8x512xf32> to vector<8x128xf32>
    %502 = math.tanh %501 : vector<8x128xf32>
    %503 = vector.extract_strided_slice %488 {offsets = [0, 384], sizes = [8, 128], strides = [1, 1]} : vector<8x512xf32> to vector<8x128xf32>
    %504 = arith.negf %503 : vector<8x128xf32>
    %505 = math.exp %504 : vector<8x128xf32>
    %cst_124 = arith.constant 1.000000e+00 : f32
    %506 = vector.broadcast %cst_124 : f32 to vector<8x128xf32>
    %507 = arith.addf %506, %505 : vector<8x128xf32>
    %508 = arith.divf %506, %507 : vector<8x128xf32>
    %509 = arith.mulf %500, %448 : vector<8x128xf32>
    %510 = arith.mulf %494, %502 : vector<8x128xf32>
    %511 = arith.addf %509, %510 : vector<8x128xf32>
    %512 = math.tanh %511 : vector<8x128xf32>
    %513 = arith.mulf %508, %512 : vector<8x128xf32>
    %c8_i32 = arith.constant 8 : i32
    %c0_125 = arith.constant 0 : index
    %c0_126 = arith.constant 0 : index
    %c0_127 = arith.constant 0 : index
    %514 = vector.load %arg10[%c0_125, %c0_126, %c0_127] : memref<2x8x128xf32, #tpu.memory_space<vmem>>, vector<1x8x128xf32>
    %515 = vector.shape_cast %514 : vector<1x8x128xf32> to vector<8x128xf32>
    %516 = vector.shape_cast %483 : vector<8x128xf32> to vector<1x8x128xf32>
    tpu.vector_store %arg10[%c0_125, %c0_126, %c0_127], %516 {strides = array<i32>} : memref<2x8x128xf32, #tpu.memory_space<vmem>>, vector<1x8x128xf32>,
    %c1_128 = arith.constant 1 : index
    %c0_129 = arith.constant 0 : index
    %c0_130 = arith.constant 0 : index
    %517 = vector.load %arg10[%c1_128, %c0_129, %c0_130] : memref<2x8x128xf32, #tpu.memory_space<vmem>>, vector<1x8x128xf32>
    %518 = vector.shape_cast %517 : vector<1x8x128xf32> to vector<8x128xf32>
    %519 = vector.shape_cast %513 : vector<8x128xf32> to vector<1x8x128xf32>
    tpu.vector_store %arg10[%c1_128, %c0_129, %c0_130], %519 {strides = array<i32>} : memref<2x8x128xf32, #tpu.memory_space<vmem>>, vector<1x8x128xf32>,
    %c0_131 = arith.constant 0 : index
    %c0_132 = arith.constant 0 : index
    %c0_133 = arith.constant 0 : index
    %520 = vector.load %arg11[%c0_131, %c0_132, %c0_133] : memref<2x8x128xf32, #tpu.memory_space<vmem>>, vector<1x8x128xf32>
    %521 = vector.shape_cast %520 : vector<1x8x128xf32> to vector<8x128xf32>
    %522 = vector.shape_cast %481 : vector<8x128xf32> to vector<1x8x128xf32>
    tpu.vector_store %arg11[%c0_131, %c0_132, %c0_133], %522 {strides = array<i32>} : memref<2x8x128xf32, #tpu.memory_space<vmem>>, vector<1x8x128xf32>,
    %c1_134 = arith.constant 1 : index
    %c0_135 = arith.constant 0 : index
    %c0_136 = arith.constant 0 : index
    %523 = vector.load %arg11[%c1_134, %c0_135, %c0_136] : memref<2x8x128xf32, #tpu.memory_space<vmem>>, vector<1x8x128xf32>
    %524 = vector.shape_cast %523 : vector<1x8x128xf32> to vector<8x128xf32>
    %525 = vector.shape_cast %511 : vector<8x128xf32> to vector<1x8x128xf32>
    tpu.vector_store %arg11[%c1_134, %c0_135, %c0_136], %525 {strides = array<i32>} : memref<2x8x128xf32, #tpu.memory_space<vmem>>, vector<1x8x128xf32>,
    %c0_137 = arith.constant 0 : index
    %c0_138 = arith.constant 0 : index
    %526 = vector.load %arg7[%c0_137, %c0_138] : memref<1x128xf32, #tpu.memory_space<vmem>>, vector<1x128xf32>
    %527 = vector.broadcast %526 : vector<1x128xf32> to vector<8x128xf32>
    %528 = arith.mulf %513, %527 : vector<8x128xf32>
    %cst_139 = arith.constant dense<0.000000e+00> : vector<8xf32>
    %529 = vector.multi_reduction <add>, %528, %cst_139 [1] : vector<8x128xf32> to vector<8xf32>
    %530 = vector.shape_cast %529 : vector<8xf32> to vector<8x1xf32>
    %c0_140 = arith.constant 0 : index
    %c0_141 = arith.constant 0 : index
    %531 = vector.load %arg8[%c0_140, %c0_141] : memref<1x1xf32, #tpu.memory_space<vmem>>, vector<1x1xf32>
    %532 = vector.broadcast %531 : vector<1x1xf32> to vector<8x1xf32>
    %533 = arith.addf %530, %532 : vector<8x1xf32>
    %534 = arith.negf %533 : vector<8x1xf32>
    %535 = math.exp %534 : vector<8x1xf32>
    %cst_142 = arith.constant 1.000000e+00 : f32
    %536 = vector.broadcast %cst_142 : f32 to vector<8x1xf32>
    %537 = arith.addf %536, %535 : vector<8x1xf32>
    %538 = arith.divf %536, %537 : vector<8x1xf32>
    %c0_143 = arith.constant 0 : index
    %c0_144 = arith.constant 0 : index
    %539 = vector.load %arg9[%c0_143, %c0_144] : memref<8x1xf32, #tpu.memory_space<vmem>>, vector<8x1xf32>
    tpu.vector_store %arg9[%c0_143, %c0_144], %538 {strides = array<i32>} : memref<8x1xf32, #tpu.memory_space<vmem>>, vector<8x1xf32>,
    return
  }
}

</mosaic_0001>

<llo_original>
// kernel: sentiment_lstm_forward.1
$region0: #{sentiment_lstm_forward.1}
  #allocation0 [shape = 'u32[]', space=smem, size = 0x4, offset = 0x4, fixed_abs, tag = 'smem constant byte address 0x4 - core index']
  #allocation1 [shape = 'u32[144,128]{1,0:T(1,128)}', space=vmem, size = 0x12000, scoped, tag = 'internal scratch']
  #allocation2 [shape = 'f32[1,1]{1,0:T(1,128)S(1)}', space=vmem, size = 0x200, scoped, tag = 'scoped memory for sentiment_lstm_forward.1']
  %s0 = inlined_call_operand.vmem [shape: f32[8,8,128], index: 0, kind: input, shape index: {}]
  %s1 = inlined_call_operand.vmem [shape: f32[2,8,128], index: 1, kind: input, shape index: {}]
  %s2 = inlined_call_operand.vmem [shape: f32[2,8,128], index: 2, kind: input, shape index: {}]
  %s3 = inlined_call_operand.hbm [shape: f32[256,512], index: 3, kind: input, shape index: {}]
  %s4 = inlined_call_operand.vmem [shape: f32[1,512], index: 4, kind: input, shape index: {}]
  %s5 = inlined_call_operand.hbm [shape: f32[256,512], index: 5, kind: input, shape index: {}]
  %s6 = inlined_call_operand.vmem [shape: f32[1,512], index: 6, kind: input, shape index: {}]
  %s7 = inlined_call_operand.vmem [shape: f32[1,128], index: 7, kind: input, shape index: {}]
  %s8 = inlined_call_operand.<no memory space> [shape: f32[1,1], index: 8, kind: input, shape index: {}]
  %s9 = inlined_call_operand.vmem [shape: f32[8,1], index: 9, kind: output, shape index: {0}]
  %s10 = inlined_call_operand.hbm [shape: f32[2,8,128], index: 10, kind: output, shape index: {1}]
  %s11 = inlined_call_operand.hbm [shape: f32[2,8,128], index: 11, kind: output, shape index: {2}]
  %12 = xla_tuple %s9, %s10, %s11
  %s13 = sld [smem:[#allocation0]]
  $region70: #{sentiment_lstm_forward.1} parent=0
    _
  %s15 = ssub.s32 1, %s13
  %s16 = scalar_select 0, %s15, %s13
  %v17 = vstv %s8
  %18 = vst [vmem:[#allocation2] sm:$0x1] %v17
  $region1: #{sentiment_lstm_forward.1} parent=0
    #allocation3 [shape = 'u8[524288]{0}', space=vmem, size = 0x80000, scoped, tag = 'input window, operand 3, single buffered']
    #allocation4 [shape = 's32[1]{0}', space=sflag, size = 0x4, scoped, tag = 'scoped memory for sentiment_lstm_forward.1']
    #allocation5 [shape = 's32[1]{0}', space=sflag, size = 0x4, scoped, tag = 'scoped memory for sentiment_lstm_forward.1']
    #allocation6 [shape = 'u8[524288]{0}', space=vmem, size = 0x80000, scoped, tag = 'input window, operand 5, single buffered']
    #allocation7 [shape = 's32[1]{0}', space=sflag, size = 0x4, scoped, tag = 'scoped memory for sentiment_lstm_forward.1']
    #allocation8 [shape = 'u8[8192]{0}', space=vmem, size = 0x2000, scoped, tag = 'output window, operand 1, single buffered']
    #allocation9 [shape = 'u8[8192]{0}', space=vmem, size = 0x2000, scoped, tag = 'output window, operand 2, single buffered']
    #allocation10 [shape = 's32[1]{0}', space=sflag, size = 0x4, scoped, tag = 'scoped memory for sentiment_lstm_forward.1']
    %19 = vsyncpa [#allocation4], 0
    %20 = vsyncpa [#allocation7], 0
    %21 = vsyncpa [#allocation5], 0
    %22 = vsyncpa [#allocation10], 0
    // Predicated region
    $region2: #{sentiment_lstm_forward.1} parent=1 // pred_check
      _
    $region3: #{sentiment_lstm_forward.1} parent=1 // pred_check_branch
      %24 = sbr.rel (0) target = $region5
    $region4: #{sentiment_lstm_forward.1} parent=1 // pred_region
      _
    $region5: #{sentiment_lstm_forward.1} parent=1 // pred_fallthru
      _
    // Predicated region
    $region6: #{sentiment_lstm_forward.1} parent=1 // pred_check
      _
    $region7: #{sentiment_lstm_forward.1} parent=1 // pred_check_branch
      %26 = sbr.rel (0) target = $region9
    $region8: #{sentiment_lstm_forward.1} parent=1 // pred_region
      _
    $region9: #{sentiment_lstm_forward.1} parent=1 // pred_fallthru
      _
    // Predicated region
    $region10: #{sentiment_lstm_forward.1} parent=1 // pred_check
      _
    $region11: #{sentiment_lstm_forward.1} parent=1 // pred_check_branch
      %28 = sbr.rel (0) target = $region13
    $region12: #{sentiment_lstm_forward.1} parent=1 // pred_region
      _
    $region13: #{sentiment_lstm_forward.1} parent=1 // pred_fallthru
      _
    // Predicated region
    $region14: #{sentiment_lstm_forward.1} parent=1 // pred_check
      _
    $region15: #{sentiment_lstm_forward.1} parent=1 // pred_check_branch
      %30 = sbr.rel (0) target = $region17
    $region16: #{sentiment_lstm_forward.1} parent=1 // pred_region
      %s32 = ssub.s32 16384, 16384
      %33 = vsyncadd [#allocation4], %s32
      %s34 = sshll.u32 [#allocation3], 4
      %s35 = int_to_ptr.vmem [resolvable:$true] %s34
      %40 = dma.hbm_to_vmem [thread:$0]  %s3, 16384, %s35, [#allocation4], 512, 512, 32
    $region17: #{sentiment_lstm_forward.1} parent=1 // pred_fallthru
      _
    // Predicated region
    $region18: #{sentiment_lstm_forward.1} parent=1 // pred_check
      _
    $region19: #{sentiment_lstm_forward.1} parent=1 // pred_check_branch
      %42 = sbr.rel (0) target = $region21
    $region20: #{sentiment_lstm_forward.1} parent=1 // pred_region
      _
    $region21: #{sentiment_lstm_forward.1} parent=1 // pred_fallthru
      _
    // Predicated region
    $region22: #{sentiment_lstm_forward.1} parent=1 // pred_check
      _
    $region23: #{sentiment_lstm_forward.1} parent=1 // pred_check_branch
      %44 = sbr.rel (0) target = $region25
    $region24: #{sentiment_lstm_forward.1} parent=1 // pred_region
      %s46 = ssub.s32 16384, 16384
      %47 = vsyncadd [#allocation7], %s46
      %s48 = sshll.u32 [#allocation6], 4
      %s49 = int_to_ptr.vmem [resolvable:$true] %s48
      %54 = dma.hbm_to_vmem [thread:$0]  %s5, 16384, %s49, [#allocation7], 512, 512, 32
    $region25: #{sentiment_lstm_forward.1} parent=1 // pred_fallthru
      _
    // Predicated region
    $region26: #{sentiment_lstm_forward.1} parent=1 // pred_check
      _
    $region27: #{sentiment_lstm_forward.1} parent=1 // pred_check_branch
      %56 = sbr.rel (0) target = $region29
    $region28: #{sentiment_lstm_forward.1} parent=1 // pred_region
      _
    $region29: #{sentiment_lstm_forward.1} parent=1 // pred_fallthru
      _
    // Predicated region
    $region30: #{sentiment_lstm_forward.1} parent=1 // pred_check
      _
    $region31: #{sentiment_lstm_forward.1} parent=1 // pred_check_branch
      %58 = sbr.rel (0) target = $region33
    $region32: #{sentiment_lstm_forward.1} parent=1 // pred_region
      _
    $region33: #{sentiment_lstm_forward.1} parent=1 // pred_fallthru
      _
    // Predicated region
    $region34: #{sentiment_lstm_forward.1} parent=1 // pred_check
      _
    $region35: #{sentiment_lstm_forward.1} parent=1 // pred_check_branch
      %60 = sbr.rel (0) target = $region37
    $region36: #{sentiment_lstm_forward.1} parent=1 // pred_region
      _
    $region37: #{sentiment_lstm_forward.1} parent=1 // pred_fallthru
      _
    // Predicated region
    $region38: #{sentiment_lstm_forward.1} parent=1 // pred_check
      _
    $region39: #{sentiment_lstm_forward.1} parent=1 // pred_check_branch
      %62 = sbr.rel (0) target = $region41
    $region40: #{sentiment_lstm_forward.1} parent=1 // pred_region
      %63 = dma.done [#allocation4], 16384
    $region41: #{sentiment_lstm_forward.1} parent=1 // pred_fallthru
      _
    // Predicated region
    $region42: #{sentiment_lstm_forward.1} parent=1 // pred_check
      _
    $region43: #{sentiment_lstm_forward.1} parent=1 // pred_check_branch
      %65 = sbr.rel (0) target = $region45
    $region44: #{sentiment_lstm_forward.1} parent=1 // pred_region
      %66 = dma.done [#allocation7], 16384
    $region45: #{sentiment_lstm_forward.1} parent=1 // pred_fallthru
      _
    %v67 = vld [vmem:[%s4] sm:$0xf]
    %v68 = vld [vmem:[%s6] sm:$0xf]
    %v69 = vld [vmem:[%s1] sm:$0xff]
    %v70 = vld [vmem:[%s2] sm:$0xff]
    %s71 = scalar_lea.vmem %s1, 8
    %v72 = vld [vmem:[%s71] sm:$0xff]
    %s73 = scalar_lea.vmem %s2, 8
    %v74 = vld [vmem:[%s73] sm:$0xff]
    %v75 = vld [vmem:[%s0] sm:$0xff]
    %v76 = vld [vmem:[#allocation3] sm:$0xff]
    %v77 = vld [vmem:[#allocation3 + $0x8] sm:$0xff]
    %v78 = vld [vmem:[#allocation3 + $0x10] sm:$0xff]
    %v79 = vld [vmem:[#allocation3 + $0x18] sm:$0xff]
    %v80 = vld [vmem:[#allocation3 + $0x20] sm:$0xff]
    %v81 = vld [vmem:[#allocation3 + $0x28] sm:$0xff]
    %v82 = vld [vmem:[#allocation3 + $0x30] sm:$0xff]
    %v83 = vld [vmem:[#allocation3 + $0x38] sm:$0xff]
    %v84 = vld [vmem:[#allocation3 + $0x40] sm:$0xff]
    %v85 = vld [vmem:[#allocation3 + $0x48] sm:$0xff]
    %v86 = vld [vmem:[#allocation3 + $0x50] sm:$0xff]
    %v87 = vld [vmem:[#allocation3 + $0x58] sm:$0xff]
    %v88 = vld [vmem:[#allocation3 + $0x60] sm:$0xff]
    %v89 = vld [vmem:[#allocation3 + $0x68] sm:$0xff]
    %v90 = vld [vmem:[#allocation3 + $0x70] sm:$0xff]
    %v91 = vld [vmem:[#allocation3 + $0x78] sm:$0xff]
    %v92 = vld [vmem:[#allocation3 + $0x80] sm:$0xff]
    %v93 = vld [vmem:[#allocation3 + $0x88] sm:$0xff]
    %v94 = vld [vmem:[#allocation3 + $0x90] sm:$0xff]
    %v95 = vld [vmem:[#allocation3 + $0x98] sm:$0xff]
    %v96 = vld [vmem:[#allocation3 + $0xa0] sm:$0xff]
    %v97 = vld [vmem:[#allocation3 + $0xa8] sm:$0xff]
    %v98 = vld [vmem:[#allocation3 + $0xb0] sm:$0xff]
    %v99 = vld [vmem:[#allocation3 + $0xb8] sm:$0xff]
    %v100 = vld [vmem:[#allocation3 + $0xc0] sm:$0xff]
    %v101 = vld [vmem:[#allocation3 + $0xc8] sm:$0xff]
    %v102 = vld [vmem:[#allocation3 + $0xd0] sm:$0xff]
    %v103 = vld [vmem:[#allocation3 + $0xd8] sm:$0xff]
    %v104 = vld [vmem:[#allocation3 + $0xe0] sm:$0xff]
    %v105 = vld [vmem:[#allocation3 + $0xe8] sm:$0xff]
    %v106 = vld [vmem:[#allocation3 + $0xf0] sm:$0xff]
    %v107 = vld [vmem:[#allocation3 + $0xf8] sm:$0xff]
    %v108 = vld [vmem:[#allocation3 + $0x100] sm:$0xff]
    %v109 = vld [vmem:[#allocation3 + $0x108] sm:$0xff]
    %v110 = vld [vmem:[#allocation3 + $0x110] sm:$0xff]
    %v111 = vld [vmem:[#allocation3 + $0x118] sm:$0xff]
    %v112 = vld [vmem:[#allocation3 + $0x120] sm:$0xff]
    %v113 = vld [vmem:[#allocation3 + $0x128] sm:$0xff]
    %v114 = vld [vmem:[#allocation3 + $0x130] sm:$0xff]
    %v115 = vld [vmem:[#allocation3 + $0x138] sm:$0xff]
    %v116 = vld [vmem:[#allocation3 + $0x140] sm:$0xff]
    %v117 = vld [vmem:[#allocation3 + $0x148] sm:$0xff]
    %v118 = vld [vmem:[#allocation3 + $0x150] sm:$0xff]
    %v119 = vld [vmem:[#allocation3 + $0x158] sm:$0xff]
    %v120 = vld [vmem:[#allocation3 + $0x160] sm:$0xff]
    %v121 = vld [vmem:[#allocation3 + $0x168] sm:$0xff]
    %v122 = vld [vmem:[#allocation3 + $0x170] sm:$0xff]
    %v123 = vld [vmem:[#allocation3 + $0x178] sm:$0xff]
    %v124 = vld [vmem:[#allocation3 + $0x180] sm:$0xff]
    %v125 = vld [vmem:[#allocation3 + $0x188] sm:$0xff]
    %v126 = vld [vmem:[#allocation3 + $0x190] sm:$0xff]
    %v127 = vld [vmem:[#allocation3 + $0x198] sm:$0xff]
    %v128 = vld [vmem:[#allocation3 + $0x1a0] sm:$0xff]
    %v129 = vld [vmem:[#allocation3 + $0x1a8] sm:$0xff]
    %v130 = vld [vmem:[#allocation3 + $0x1b0] sm:$0xff]
    %v131 = vld [vmem:[#allocation3 + $0x1b8] sm:$0xff]
    %v132 = vld [vmem:[#allocation3 + $0x1c0] sm:$0xff]
    %v133 = vld [vmem:[#allocation3 + $0x1c8] sm:$0xff]
    %v134 = vld [vmem:[#allocation3 + $0x1d0] sm:$0xff]
    %v135 = vld [vmem:[#allocation3 + $0x1d8] sm:$0xff]
    %v136 = vld [vmem:[#allocation3 + $0x1e0] sm:$0xff]
    %v137 = vld [vmem:[#allocation3 + $0x1e8] sm:$0xff]
    %v138 = vld [vmem:[#allocation3 + $0x1f0] sm:$0xff]
    %v139 = vld [vmem:[#allocation3 + $0x1f8] sm:$0xff]
    %v140 = vld [vmem:[#allocation3 + $0x200] sm:$0xff]
    %v141 = vld [vmem:[#allocation3 + $0x208] sm:$0xff]
    %v142 = vld [vmem:[#allocation3 + $0x210] sm:$0xff]
    %v143 = vld [vmem:[#allocation3 + $0x218] sm:$0xff]
    %v144 = vld [vmem:[#allocation3 + $0x220] sm:$0xff]
    %v145 = vld [vmem:[#allocation3 + $0x228] sm:$0xff]
    %v146 = vld [vmem:[#allocation3 + $0x230] sm:$0xff]
    %v147 = vld [vmem:[#allocation3 + $0x238] sm:$0xff]
    %v148 = vld [vmem:[#allocation3 + $0x240] sm:$0xff]
    %v149 = vld [vmem:[#allocation3 + $0x248] sm:$0xff]
    %v150 = vld [vmem:[#allocation3 + $0x250] sm:$0xff]
    %v151 = vld [vmem:[#allocation3 + $0x258] sm:$0xff]
    %v152 = vld [vmem:[#allocation3 + $0x260] sm:$0xff]
    %v153 = vld [vmem:[#allocation3 + $0x268] sm:$0xff]
    %v154 = vld [vmem:[#allocation3 + $0x270] sm:$0xff]
    %v155 = vld [vmem:[#allocation3 + $0x278] sm:$0xff]
    %v156 = vld [vmem:[#allocation3 + $0x280] sm:$0xff]
    %v157 = vld [vmem:[#allocation3 + $0x288] sm:$0xff]
    %v158 = vld [vmem:[#allocation3 + $0x290] sm:$0xff]
    %v159 = vld [vmem:[#allocation3 + $0x298] sm:$0xff]
    %v160 = vld [vmem:[#allocation3 + $0x2a0] sm:$0xff]
    %v161 = vld [vmem:[#allocation3 + $0x2a8] sm:$0xff]
    %v162 = vld [vmem:[#allocation3 + $0x2b0] sm:$0xff]
    %v163 = vld [vmem:[#allocation3 + $0x2b8] sm:$0xff]
    %v164 = vld [vmem:[#allocation3 + $0x2c0] sm:$0xff]
    %v165 = vld [vmem:[#allocation3 + $0x2c8] sm:$0xff]
    %v166 = vld [vmem:[#allocation3 + $0x2d0] sm:$0xff]
    %v167 = vld [vmem:[#allocation3 + $0x2d8] sm:$0xff]
    %v168 = vld [vmem:[#allocation3 + $0x2e0] sm:$0xff]
    %v169 = vld [vmem:[#allocation3 + $0x2e8] sm:$0xff]
    %v170 = vld [vmem:[#allocation3 + $0x2f0] sm:$0xff]
    %v171 = vld [vmem:[#allocation3 + $0x2f8] sm:$0xff]
    %v172 = vld [vmem:[#allocation3 + $0x300] sm:$0xff]
    %v173 = vld [vmem:[#allocation3 + $0x308] sm:$0xff]
    %v174 = vld [vmem:[#allocation3 + $0x310] sm:$0xff]
    %v175 = vld [vmem:[#allocation3 + $0x318] sm:$0xff]
    %v176 = vld [vmem:[#allocation3 + $0x320] sm:$0xff]
    %v177 = vld [vmem:[#allocation3 + $0x328] sm:$0xff]
    %v178 = vld [vmem:[#allocation3 + $0x330] sm:$0xff]
    %v179 = vld [vmem:[#allocation3 + $0x338] sm:$0xff]
    %v180 = vld [vmem:[#allocation3 + $0x340] sm:$0xff]
    %v181 = vld [vmem:[#allocation3 + $0x348] sm:$0xff]
    %v182 = vld [vmem:[#allocation3 + $0x350] sm:$0xff]
    %v183 = vld [vmem:[#allocation3 + $0x358] sm:$0xff]
    %v184 = vld [vmem:[#allocation3 + $0x360] sm:$0xff]
    %v185 = vld [vmem:[#allocation3 + $0x368] sm:$0xff]
    %v186 = vld [vmem:[#allocation3 + $0x370] sm:$0xff]
    %v187 = vld [vmem:[#allocation3 + $0x378] sm:$0xff]
    %v188 = vld [vmem:[#allocation3 + $0x380] sm:$0xff]
    %v189 = vld [vmem:[#allocation3 + $0x388] sm:$0xff]
    %v190 = vld [vmem:[#allocation3 + $0x390] sm:$0xff]
    %v191 = vld [vmem:[#allocation3 + $0x398] sm:$0xff]
    %v192 = vld [vmem:[#allocation3 + $0x3a0] sm:$0xff]
    %v193 = vld [vmem:[#allocation3 + $0x3a8] sm:$0xff]
    %v194 = vld [vmem:[#allocation3 + $0x3b0] sm:$0xff]
    %v195 = vld [vmem:[#allocation3 + $0x3b8] sm:$0xff]
    %v196 = vld [vmem:[#allocation3 + $0x3c0] sm:$0xff]
    %v197 = vld [vmem:[#allocation3 + $0x3c8] sm:$0xff]
    %v198 = vld [vmem:[#allocation3 + $0x3d0] sm:$0xff]
    %v199 = vld [vmem:[#allocation3 + $0x3d8] sm:$0xff]
    %v200 = vld [vmem:[#allocation3 + $0x3e0] sm:$0xff]
    %v201 = vld [vmem:[#allocation3 + $0x3e8] sm:$0xff]
    %v202 = vld [vmem:[#allocation3 + $0x3f0] sm:$0xff]
    %v203 = vld [vmem:[#allocation3 + $0x3f8] sm:$0xff]
    %v205 = vlaneseq
    %v206 = vshrl.u32 %v205, 7
    %v207 = vsub.s32 0, %v206
    %v208 = vrot.slane %v67, %v207
    %v209 = vlaneseq
    %v210 = vshrl.u32 %v209, 7
    %v211 = vsub.s32 1, %v210
    %v212 = vrot.slane %v67, %v211
    %v213 = vlaneseq
    %v214 = vshrl.u32 %v213, 7
    %v215 = vsub.s32 2, %v214
    %v216 = vrot.slane %v67, %v215
    %v217 = vlaneseq
    %v218 = vshrl.u32 %v217, 7
    %v219 = vsub.s32 3, %v218
    %v220 = vrot.slane %v67, %v219
    %225 = vmatprep.subr.mxu0 %v137
    %226 = vmatpush1.msra.mxu0 %v136
    %227 = vmatprep.subr.mxu0 %v133
    %228 = vmatpush1.msra.mxu0 %v132
    %229 = vmatprep.subr.mxu0 %v129
    %230 = vmatpush1.msra.mxu0 %v128
    %231 = vmatprep.subr.mxu0 %v125
    %232 = vmatpush1.msra.mxu0 %v124
    %233 = vmatprep.subr.mxu0 %v121
    %234 = vmatpush1.msra.mxu0 %v120
    %235 = vmatprep.subr.mxu0 %v117
    %236 = vmatpush1.msra.mxu0 %v116
    %237 = vmatprep.subr.mxu0 %v113
    %238 = vmatpush1.msra.mxu0 %v112
    %239 = vmatprep.subr.mxu0 %v109
    %240 = vmatpush1.msra.mxu0 %v108
    %241 = vmatprep.subr.mxu0 %v105
    %242 = vmatpush1.msra.mxu0 %v104
    %243 = vmatprep.subr.mxu0 %v101
    %244 = vmatpush1.msra.mxu0 %v100
    %245 = vmatprep.subr.mxu0 %v97
    %246 = vmatpush1.msra.mxu0 %v96
    %247 = vmatprep.subr.mxu0 %v93
    %248 = vmatpush1.msra.mxu0 %v92
    %249 = vmatprep.subr.mxu0 %v89
    %250 = vmatpush1.msra.mxu0 %v88
    %251 = vmatprep.subr.mxu0 %v85
    %252 = vmatpush1.msra.mxu0 %v84
    %253 = vmatprep.subr.mxu0 %v81
    %254 = vmatpush1.msra.mxu0 %v80
    %255 = vmatprep.subr.mxu0 %v77
    %256 = vmatpush1.msra.mxu0 %v76
    %257 = vmatprep.subr.mxu0 %v201
    %258 = vmatpush2.msra.mxu0 %v200
    %259 = vmatprep.subr.mxu0 %v197
    %260 = vmatpush2.msra.mxu0 %v196
    %261 = vmatprep.subr.mxu0 %v193
    %262 = vmatpush2.msra.mxu0 %v192
    %263 = vmatprep.subr.mxu0 %v189
    %264 = vmatpush2.msra.mxu0 %v188
    %265 = vmatprep.subr.mxu0 %v185
    %266 = vmatpush2.msra.mxu0 %v184
    %267 = vmatprep.subr.mxu0 %v181
    %268 = vmatpush2.msra.mxu0 %v180
    %269 = vmatprep.subr.mxu0 %v177
    %270 = vmatpush2.msra.mxu0 %v176
    %271 = vmatprep.subr.mxu0 %v173
    %272 = vmatpush2.msra.mxu0 %v172
    %273 = vmatprep.subr.mxu0 %v169
    %274 = vmatpush2.msra.mxu0 %v168
    %275 = vmatprep.subr.mxu0 %v165
    %276 = vmatpush2.msra.mxu0 %v164
    %277 = vmatprep.subr.mxu0 %v161
    %278 = vmatpush2.msra.mxu0 %v160
    %279 = vmatprep.subr.mxu0 %v157
    %280 = vmatpush2.msra.mxu0 %v156
    %281 = vmatprep.subr.mxu0 %v153
    %282 = vmatpush2.msra.mxu0 %v152
    %283 = vmatprep.subr.mxu0 %v149
    %284 = vmatpush2.msra.mxu0 %v148
    %285 = vmatprep.subr.mxu0 %v145
    %286 = vmatpush2.msra.mxu0 %v144
    %287 = vmatprep.subr.mxu0 %v141
    %288 = vmatpush2.msra.mxu0 %v140
    %289 = vmatprep.mubr.f32.mxu0 %v69
    %290 = vmatmul.mubr.f32.gmra.mxu0 %v75
    %v291 = vpop.f32.mrf.mxu0
    %v292 = vadd.f32 %v208, %v291
    %v293 = vpop.f32.mrf.mxu0
    %v294 = vadd.f32 %v212, %v293
    %295 = vdwg.mxu0
    %296 = vmatprep.subr.mxu0 %v139
    %297 = vmatpush1.msra.mxu0 %v138
    %298 = vmatprep.subr.mxu0 %v135
    %299 = vmatpush1.msra.mxu0 %v134
    %300 = vmatprep.subr.mxu0 %v131
    %301 = vmatpush1.msra.mxu0 %v130
    %302 = vmatprep.subr.mxu0 %v127
    %303 = vmatpush1.msra.mxu0 %v126
    %304 = vmatprep.subr.mxu0 %v123
    %305 = vmatpush1.msra.mxu0 %v122
    %306 = vmatprep.subr.mxu0 %v119
    %307 = vmatpush1.msra.mxu0 %v118
    %308 = vmatprep.subr.mxu0 %v115
    %309 = vmatpush1.msra.mxu0 %v114
    %310 = vmatprep.subr.mxu0 %v111
    %311 = vmatpush1.msra.mxu0 %v110
    %312 = vmatprep.subr.mxu0 %v107
    %313 = vmatpush1.msra.mxu0 %v106
    %314 = vmatprep.subr.mxu0 %v103
    %315 = vmatpush1.msra.mxu0 %v102
    %316 = vmatprep.subr.mxu0 %v99
    %317 = vmatpush1.msra.mxu0 %v98
    %318 = vmatprep.subr.mxu0 %v95
    %319 = vmatpush1.msra.mxu0 %v94
    %320 = vmatprep.subr.mxu0 %v91
    %321 = vmatpush1.msra.mxu0 %v90
    %322 = vmatprep.subr.mxu0 %v87
    %323 = vmatpush1.msra.mxu0 %v86
    %324 = vmatprep.subr.mxu0 %v83
    %325 = vmatpush1.msra.mxu0 %v82
    %326 = vmatprep.subr.mxu0 %v79
    %327 = vmatpush1.msra.mxu0 %v78
    %328 = vmatprep.subr.mxu0 %v203
    %329 = vmatpush2.msra.mxu0 %v202
    %330 = vmatprep.subr.mxu0 %v199
    %331 = vmatpush2.msra.mxu0 %v198
    %332 = vmatprep.subr.mxu0 %v195
    %333 = vmatpush2.msra.mxu0 %v194
    %334 = vmatprep.subr.mxu0 %v191
    %335 = vmatpush2.msra.mxu0 %v190
    %336 = vmatprep.subr.mxu0 %v187
    %337 = vmatpush2.msra.mxu0 %v186
    %338 = vmatprep.subr.mxu0 %v183
    %339 = vmatpush2.msra.mxu0 %v182
    %340 = vmatprep.subr.mxu0 %v179
    %341 = vmatpush2.msra.mxu0 %v178
    %342 = vmatprep.subr.mxu0 %v175
    %343 = vmatpush2.msra.mxu0 %v174
    %344 = vmatprep.subr.mxu0 %v171
    %345 = vmatpush2.msra.mxu0 %v170
    %346 = vmatprep.subr.mxu0 %v167
    %347 = vmatpush2.msra.mxu0 %v166
    %348 = vmatprep.subr.mxu0 %v163
    %349 = vmatpush2.msra.mxu0 %v162
    %350 = vmatprep.subr.mxu0 %v159
    %351 = vmatpush2.msra.mxu0 %v158
    %352 = vmatprep.subr.mxu0 %v155
    %353 = vmatpush2.msra.mxu0 %v154
    %354 = vmatprep.subr.mxu0 %v151
    %355 = vmatpush2.msra.mxu0 %v150
    %356 = vmatprep.subr.mxu0 %v147
    %357 = vmatpush2.msra.mxu0 %v146
    %358 = vmatprep.subr.mxu0 %v143
    %359 = vmatpush2.msra.mxu0 %v142
    %360 = vmatprep.mubr.f32.mxu0 %v69
    %361 = vmatmul.mubr.f32.gmra.mxu0 %v75
    %v362 = vpop.f32.mrf.mxu0
    %v363 = vadd.f32 %v216, %v362
    %v364 = vpop.f32.mrf.mxu0
    %v365 = vadd.f32 %v220, %v364
    %366 = vdwg.mxu0
    %v367 = vxor.u32 %v292, 2147483648
    %v368 = vmul.f32 %v367, 1.442695
    %v369 = vpow.pop %v368
    %v370 = vadd.f32 %v369, 1.0
    %v371 = vrcp.pop %v370
    %v372 = vmul.f32 1.0, %v371
    %v373 = vxor.u32 %v294, 2147483648
    %v374 = vmul.f32 %v373, 1.442695
    %v375 = vpow.pop %v374
    %v376 = vadd.f32 %v375, 1.0
    %v377 = vrcp.pop %v376
    %v378 = vmul.f32 1.0, %v377
    %v379 = vtanh.pop %v363
    %v380 = vxor.u32 %v365, 2147483648
    %v381 = vmul.f32 %v380, 1.442695
    %v382 = vpow.pop %v381
    %v383 = vadd.f32 %v382, 1.0
    %v384 = vrcp.pop %v383
    %v385 = vmul.f32 1.0, %v384
    %v386 = vmul.f32 %v378, %v70
    %v387 = vmul.f32 %v372, %v379
    %v388 = vadd.f32 %v386, %v387
    %v389 = vtanh.pop %v388
    %v390 = vmul.f32 %v385, %v389
    %v391 = vld [vmem:[#allocation6] sm:$0xff]
    %v392 = vld [vmem:[#allocation6 + $0x8] sm:$0xff]
    %v393 = vld [vmem:[#allocation6 + $0x10] sm:$0xff]
    %v394 = vld [vmem:[#allocation6 + $0x18] sm:$0xff]
    %v395 = vld [vmem:[#allocation6 + $0x20] sm:$0xff]
    %v396 = vld [vmem:[#allocation6 + $0x28] sm:$0xff]
    %v397 = vld [vmem:[#allocation6 + $0x30] sm:$0xff]
    %v398 = vld [vmem:[#allocation6 + $0x38] sm:$0xff]
    %v399 = vld [vmem:[#allocation6 + $0x40] sm:$0xff]
    %v400 = vld [vmem:[#allocation6 + $0x48] sm:$0xff]
    %v401 = vld [vmem:[#allocation6 + $0x50] sm:$0xff]
    %v402 = vld [vmem:[#allocation6 + $0x58] sm:$0xff]
    %v403 = vld [vmem:[#allocation6 + $0x60] sm:$0xff]
    %v404 = vld [vmem:[#allocation6 + $0x68] sm:$0xff]
    %v405 = vld [vmem:[#allocation6 + $0x70] sm:$0xff]
    %v406 = vld [vmem:[#allocation6 + $0x78] sm:$0xff]
    %v407 = vld [vmem:[#allocation6 + $0x80] sm:$0xff]
    %v408 = vld [vmem:[#allocation6 + $0x88] sm:$0xff]
    %v409 = vld [vmem:[#allocation6 + $0x90] sm:$0xff]
    %v410 = vld [vmem:[#allocation6 + $0x98] sm:$0xff]
    %v411 = vld [vmem:[#allocation6 + $0xa0] sm:$0xff]
    %v412 = vld [vmem:[#allocation6 + $0xa8] sm:$0xff]
    %v413 = vld [vmem:[#allocation6 + $0xb0] sm:$0xff]
    %v414 = vld [vmem:[#allocation6 + $0xb8] sm:$0xff]
    %v415 = vld [vmem:[#allocation6 + $0xc0] sm:$0xff]
    %v416 = vld [vmem:[#allocation6 + $0xc8] sm:$0xff]
    %v417 = vld [vmem:[#allocation6 + $0xd0] sm:$0xff]
    %v418 = vld [vmem:[#allocation6 + $0xd8] sm:$0xff]
    %v419 = vld [vmem:[#allocation6 + $0xe0] sm:$0xff]
    %v420 = vld [vmem:[#allocation6 + $0xe8] sm:$0xff]
    %v421 = vld [vmem:[#allocation6 + $0xf0] sm:$0xff]
    %v422 = vld [vmem:[#allocation6 + $0xf8] sm:$0xff]
    %v423 = vld [vmem:[#allocation6 + $0x100] sm:$0xff]
    %v424 = vld [vmem:[#allocation6 + $0x108] sm:$0xff]
    %v425 = vld [vmem:[#allocation6 + $0x110] sm:$0xff]
    %v426 = vld [vmem:[#allocation6 + $0x118] sm:$0xff]
    %v427 = vld [vmem:[#allocation6 + $0x120] sm:$0xff]
    %v428 = vld [vmem:[#allocation6 + $0x128] sm:$0xff]
    %v429 = vld [vmem:[#allocation6 + $0x130] sm:$0xff]
    %v430 = vld [vmem:[#allocation6 + $0x138] sm:$0xff]
    %v431 = vld [vmem:[#allocation6 + $0x140] sm:$0xff]
    %v432 = vld [vmem:[#allocation6 + $0x148] sm:$0xff]
    %v433 = vld [vmem:[#allocation6 + $0x150] sm:$0xff]
    %v434 = vld [vmem:[#allocation6 + $0x158] sm:$0xff]
    %v435 = vld [vmem:[#allocation6 + $0x160] sm:$0xff]
    %v436 = vld [vmem:[#allocation6 + $0x168] sm:$0xff]
    %v437 = vld [vmem:[#allocation6 + $0x170] sm:$0xff]
    %v438 = vld [vmem:[#allocation6 + $0x178] sm:$0xff]
    %v439 = vld [vmem:[#allocation6 + $0x180] sm:$0xff]
    %v440 = vld [vmem:[#allocation6 + $0x188] sm:$0xff]
    %v441 = vld [vmem:[#allocation6 + $0x190] sm:$0xff]
    %v442 = vld [vmem:[#allocation6 + $0x198] sm:$0xff]
    %v443 = vld [vmem:[#allocation6 + $0x1a0] sm:$0xff]
    %v444 = vld [vmem:[#allocation6 + $0x1a8] sm:$0xff]
    %v445 = vld [vmem:[#allocation6 + $0x1b0] sm:$0xff]
    %v446 = vld [vmem:[#allocation6 + $0x1b8] sm:$0xff]
    %v447 = vld [vmem:[#allocation6 + $0x1c0] sm:$0xff]
    %v448 = vld [vmem:[#allocation6 + $0x1c8] sm:$0xff]
    %v449 = vld [vmem:[#allocation6 + $0x1d0] sm:$0xff]
    %v450 = vld [vmem:[#allocation6 + $0x1d8] sm:$0xff]
    %v451 = vld [vmem:[#allocation6 + $0x1e0] sm:$0xff]
    %v452 = vld [vmem:[#allocation6 + $0x1e8] sm:$0xff]
    %v453 = vld [vmem:[#allocation6 + $0x1f0] sm:$0xff]
    %v454 = vld [vmem:[#allocation6 + $0x1f8] sm:$0xff]
    %v455 = vld [vmem:[#allocation6 + $0x200] sm:$0xff]
    %v456 = vld [vmem:[#allocation6 + $0x208] sm:$0xff]
    %v457 = vld [vmem:[#allocation6 + $0x210] sm:$0xff]
    %v458 = vld [vmem:[#allocation6 + $0x218] sm:$0xff]
    %v459 = vld [vmem:[#allocation6 + $0x220] sm:$0xff]
    %v460 = vld [vmem:[#allocation6 + $0x228] sm:$0xff]
    %v461 = vld [vmem:[#allocation6 + $0x230] sm:$0xff]
    %v462 = vld [vmem:[#allocation6 + $0x238] sm:$0xff]
    %v463 = vld [vmem:[#allocation6 + $0x240] sm:$0xff]
    %v464 = vld [vmem:[#allocation6 + $0x248] sm:$0xff]
    %v465 = vld [vmem:[#allocation6 + $0x250] sm:$0xff]
    %v466 = vld [vmem:[#allocation6 + $0x258] sm:$0xff]
    %v467 = vld [vmem:[#allocation6 + $0x260] sm:$0xff]
    %v468 = vld [vmem:[#allocation6 + $0x268] sm:$0xff]
    %v469 = vld [vmem:[#allocation6 + $0x270] sm:$0xff]
    %v470 = vld [vmem:[#allocation6 + $0x278] sm:$0xff]
    %v471 = vld [vmem:[#allocation6 + $0x280] sm:$0xff]
    %v472 = vld [vmem:[#allocation6 + $0x288] sm:$0xff]
    %v473 = vld [vmem:[#allocation6 + $0x290] sm:$0xff]
    %v474 = vld [vmem:[#allocation6 + $0x298] sm:$0xff]
    %v475 = vld [vmem:[#allocation6 + $0x2a0] sm:$0xff]
    %v476 = vld [vmem:[#allocation6 + $0x2a8] sm:$0xff]
    %v477 = vld [vmem:[#allocation6 + $0x2b0] sm:$0xff]
    %v478 = vld [vmem:[#allocation6 + $0x2b8] sm:$0xff]
    %v479 = vld [vmem:[#allocation6 + $0x2c0] sm:$0xff]
    %v480 = vld [vmem:[#allocation6 + $0x2c8] sm:$0xff]
    %v481 = vld [vmem:[#allocation6 + $0x2d0] sm:$0xff]
    %v482 = vld [vmem:[#allocation6 + $0x2d8] sm:$0xff]
    %v483 = vld [vmem:[#allocation6 + $0x2e0] sm:$0xff]
    %v484 = vld [vmem:[#allocation6 + $0x2e8] sm:$0xff]
    %v485 = vld [vmem:[#allocation6 + $0x2f0] sm:$0xff]
    %v486 = vld [vmem:[#allocation6 + $0x2f8] sm:$0xff]
    %v487 = vld [vmem:[#allocation6 + $0x300] sm:$0xff]
    %v488 = vld [vmem:[#allocation6 + $0x308] sm:$0xff]
    %v489 = vld [vmem:[#allocation6 + $0x310] sm:$0xff]
    %v490 = vld [vmem:[#allocation6 + $0x318] sm:$0xff]
    %v491 = vld [vmem:[#allocation6 + $0x320] sm:$0xff]
    %v492 = vld [vmem:[#allocation6 + $0x328] sm:$0xff]
    %v493 = vld [vmem:[#allocation6 + $0x330] sm:$0xff]
    %v494 = vld [vmem:[#allocation6 + $0x338] sm:$0xff]
    %v495 = vld [vmem:[#allocation6 + $0x340] sm:$0xff]
    %v496 = vld [vmem:[#allocation6 + $0x348] sm:$0xff]
    %v497 = vld [vmem:[#allocation6 + $0x350] sm:$0xff]
    %v498 = vld [vmem:[#allocation6 + $0x358] sm:$0xff]
    %v499 = vld [vmem:[#allocation6 + $0x360] sm:$0xff]
    %v500 = vld [vmem:[#allocation6 + $0x368] sm:$0xff]
    %v501 = vld [vmem:[#allocation6 + $0x370] sm:$0xff]
    %v502 = vld [vmem:[#allocation6 + $0x378] sm:$0xff]
    %v503 = vld [vmem:[#allocation6 + $0x380] sm:$0xff]
    %v504 = vld [vmem:[#allocation6 + $0x388] sm:$0xff]
    %v505 = vld [vmem:[#allocation6 + $0x390] sm:$0xff]
    %v506 = vld [vmem:[#allocation6 + $0x398] sm:$0xff]
    %v507 = vld [vmem:[#allocation6 + $0x3a0] sm:$0xff]
    %v508 = vld [vmem:[#allocation6 + $0x3a8] sm:$0xff]
    %v509 = vld [vmem:[#allocation6 + $0x3b0] sm:$0xff]
    %v510 = vld [vmem:[#allocation6 + $0x3b8] sm:$0xff]
    %v511 = vld [vmem:[#allocation6 + $0x3c0] sm:$0xff]
    %v512 = vld [vmem:[#allocation6 + $0x3c8] sm:$0xff]
    %v513 = vld [vmem:[#allocation6 + $0x3d0] sm:$0xff]
    %v514 = vld [vmem:[#allocation6 + $0x3d8] sm:$0xff]
    %v515 = vld [vmem:[#allocation6 + $0x3e0] sm:$0xff]
    %v516 = vld [vmem:[#allocation6 + $0x3e8] sm:$0xff]
    %v517 = vld [vmem:[#allocation6 + $0x3f0] sm:$0xff]
    %v518 = vld [vmem:[#allocation6 + $0x3f8] sm:$0xff]
    %v520 = vlaneseq
    %v521 = vshrl.u32 %v520, 7
    %v522 = vsub.s32 0, %v521
    %v523 = vrot.slane %v68, %v522
    %v524 = vlaneseq
    %v525 = vshrl.u32 %v524, 7
    %v526 = vsub.s32 1, %v525
    %v527 = vrot.slane %v68, %v526
    %v528 = vlaneseq
    %v529 = vshrl.u32 %v528, 7
    %v530 = vsub.s32 2, %v529
    %v531 = vrot.slane %v68, %v530
    %v532 = vlaneseq
    %v533 = vshrl.u32 %v532, 7
    %v534 = vsub.s32 3, %v533
    %v535 = vrot.slane %v68, %v534
    %540 = vmatprep.subr.mxu0 %v452
    %541 = vmatpush1.msra.mxu0 %v451
    %542 = vmatprep.subr.mxu0 %v448
    %543 = vmatpush1.msra.mxu0 %v447
    %544 = vmatprep.subr.mxu0 %v444
    %545 = vmatpush1.msra.mxu0 %v443
    %546 = vmatprep.subr.mxu0 %v440
    %547 = vmatpush1.msra.mxu0 %v439
    %548 = vmatprep.subr.mxu0 %v436
    %549 = vmatpush1.msra.mxu0 %v435
    %550 = vmatprep.subr.mxu0 %v432
    %551 = vmatpush1.msra.mxu0 %v431
    %552 = vmatprep.subr.mxu0 %v428
    %553 = vmatpush1.msra.mxu0 %v427
    %554 = vmatprep.subr.mxu0 %v424
    %555 = vmatpush1.msra.mxu0 %v423
    %556 = vmatprep.subr.mxu0 %v420
    %557 = vmatpush1.msra.mxu0 %v419
    %558 = vmatprep.subr.mxu0 %v416
    %559 = vmatpush1.msra.mxu0 %v415
    %560 = vmatprep.subr.mxu0 %v412
    %561 = vmatpush1.msra.mxu0 %v411
    %562 = vmatprep.subr.mxu0 %v408
    %563 = vmatpush1.msra.mxu0 %v407
    %564 = vmatprep.subr.mxu0 %v404
    %565 = vmatpush1.msra.mxu0 %v403
    %566 = vmatprep.subr.mxu0 %v400
    %567 = vmatpush1.msra.mxu0 %v399
    %568 = vmatprep.subr.mxu0 %v396
    %569 = vmatpush1.msra.mxu0 %v395
    %570 = vmatprep.subr.mxu0 %v392
    %571 = vmatpush1.msra.mxu0 %v391
    %572 = vmatprep.subr.mxu0 %v516
    %573 = vmatpush2.msra.mxu0 %v515
    %574 = vmatprep.subr.mxu0 %v512
    %575 = vmatpush2.msra.mxu0 %v511
    %576 = vmatprep.subr.mxu0 %v508
    %577 = vmatpush2.msra.mxu0 %v507
    %578 = vmatprep.subr.mxu0 %v504
    %579 = vmatpush2.msra.mxu0 %v503
    %580 = vmatprep.subr.mxu0 %v500
    %581 = vmatpush2.msra.mxu0 %v499
    %582 = vmatprep.subr.mxu0 %v496
    %583 = vmatpush2.msra.mxu0 %v495
    %584 = vmatprep.subr.mxu0 %v492
    %585 = vmatpush2.msra.mxu0 %v491
    %586 = vmatprep.subr.mxu0 %v488
    %587 = vmatpush2.msra.mxu0 %v487
    %588 = vmatprep.subr.mxu0 %v484
    %589 = vmatpush2.msra.mxu0 %v483
    %590 = vmatprep.subr.mxu0 %v480
    %591 = vmatpush2.msra.mxu0 %v479
    %592 = vmatprep.subr.mxu0 %v476
    %593 = vmatpush2.msra.mxu0 %v475
    %594 = vmatprep.subr.mxu0 %v472
    %595 = vmatpush2.msra.mxu0 %v471
    %596 = vmatprep.subr.mxu0 %v468
    %597 = vmatpush2.msra.mxu0 %v467
    %598 = vmatprep.subr.mxu0 %v464
    %599 = vmatpush2.msra.mxu0 %v463
    %600 = vmatprep.subr.mxu0 %v460
    %601 = vmatpush2.msra.mxu0 %v459
    %602 = vmatprep.subr.mxu0 %v456
    %603 = vmatpush2.msra.mxu0 %v455
    %604 = vmatprep.mubr.f32.mxu0 %v72
    %605 = vmatmul.mubr.f32.gmra.mxu0 %v390
    %v606 = vpop.f32.mrf.mxu0
    %v607 = vadd.f32 %v523, %v606
    %v608 = vpop.f32.mrf.mxu0
    %v609 = vadd.f32 %v527, %v608
    %610 = vdwg.mxu0
    %611 = vmatprep.subr.mxu0 %v454
    %612 = vmatpush1.msra.mxu0 %v453
    %613 = vmatprep.subr.mxu0 %v450
    %614 = vmatpush1.msra.mxu0 %v449
    %615 = vmatprep.subr.mxu0 %v446
    %616 = vmatpush1.msra.mxu0 %v445
    %617 = vmatprep.subr.mxu0 %v442
    %618 = vmatpush1.msra.mxu0 %v441
    %619 = vmatprep.subr.mxu0 %v438
    %620 = vmatpush1.msra.mxu0 %v437
    %621 = vmatprep.subr.mxu0 %v434
    %622 = vmatpush1.msra.mxu0 %v433
    %623 = vmatprep.subr.mxu0 %v430
    %624 = vmatpush1.msra.mxu0 %v429
    %625 = vmatprep.subr.mxu0 %v426
    %626 = vmatpush1.msra.mxu0 %v425
    %627 = vmatprep.subr.mxu0 %v422
    %628 = vmatpush1.msra.mxu0 %v421
    %629 = vmatprep.subr.mxu0 %v418
    %630 = vmatpush1.msra.mxu0 %v417
    %631 = vmatprep.subr.mxu0 %v414
    %632 = vmatpush1.msra.mxu0 %v413
    %633 = vmatprep.subr.mxu0 %v410
    %634 = vmatpush1.msra.mxu0 %v409
    %635 = vmatprep.subr.mxu0 %v406
    %636 = vmatpush1.msra.mxu0 %v405
    %637 = vmatprep.subr.mxu0 %v402
    %638 = vmatpush1.msra.mxu0 %v401
    %639 = vmatprep.subr.mxu0 %v398
    %640 = vmatpush1.msra.mxu0 %v397
    %641 = vmatprep.subr.mxu0 %v394
    %642 = vmatpush1.msra.mxu0 %v393
    %643 = vmatprep.subr.mxu0 %v518
    %644 = vmatpush2.msra.mxu0 %v517
    %645 = vmatprep.subr.mxu0 %v514
    %646 = vmatpush2.msra.mxu0 %v513
    %647 = vmatprep.subr.mxu0 %v510
    %648 = vmatpush2.msra.mxu0 %v509
    %649 = vmatprep.subr.mxu0 %v506
    %650 = vmatpush2.msra.mxu0 %v505
    %651 = vmatprep.subr.mxu0 %v502
    %652 = vmatpush2.msra.mxu0 %v501
    %653 = vmatprep.subr.mxu0 %v498
    %654 = vmatpush2.msra.mxu0 %v497
    %655 = vmatprep.subr.mxu0 %v494
    %656 = vmatpush2.msra.mxu0 %v493
    %657 = vmatprep.subr.mxu0 %v490
    %658 = vmatpush2.msra.mxu0 %v489
    %659 = vmatprep.subr.mxu0 %v486
    %660 = vmatpush2.msra.mxu0 %v485
    %661 = vmatprep.subr.mxu0 %v482
    %662 = vmatpush2.msra.mxu0 %v481
    %663 = vmatprep.subr.mxu0 %v478
    %664 = vmatpush2.msra.mxu0 %v477
    %665 = vmatprep.subr.mxu0 %v474
    %666 = vmatpush2.msra.mxu0 %v473
    %667 = vmatprep.subr.mxu0 %v470
    %668 = vmatpush2.msra.mxu0 %v469
    %669 = vmatprep.subr.mxu0 %v466
    %670 = vmatpush2.msra.mxu0 %v465
    %671 = vmatprep.subr.mxu0 %v462
    %672 = vmatpush2.msra.mxu0 %v461
    %673 = vmatprep.subr.mxu0 %v458
    %674 = vmatpush2.msra.mxu0 %v457
    %675 = vmatprep.mubr.f32.mxu0 %v72
    %676 = vmatmul.mubr.f32.gmra.mxu0 %v390
    %v677 = vpop.f32.mrf.mxu0
    %v678 = vadd.f32 %v531, %v677
    %v679 = vpop.f32.mrf.mxu0
    %v680 = vadd.f32 %v535, %v679
    %681 = vdwg.mxu0
    %v682 = vxor.u32 %v607, 2147483648
    %v683 = vmul.f32 %v682, 1.442695
    %v684 = vpow.pop %v683
    %v685 = vadd.f32 %v684, 1.0
    %v686 = vrcp.pop %v685
    %v687 = vmul.f32 1.0, %v686
    %v688 = vxor.u32 %v609, 2147483648
    %v689 = vmul.f32 %v688, 1.442695
    %v690 = vpow.pop %v689
    %v691 = vadd.f32 %v690, 1.0
    %v692 = vrcp.pop %v691
    %v693 = vmul.f32 1.0, %v692
    %v694 = vtanh.pop %v678
    %v695 = vxor.u32 %v680, 2147483648
    %v696 = vmul.f32 %v695, 1.442695
    %v697 = vpow.pop %v696
    %v698 = vadd.f32 %v697, 1.0
    %v699 = vrcp.pop %v698
    %v700 = vmul.f32 1.0, %v699
    %v701 = vmul.f32 %v693, %v74
    %v702 = vmul.f32 %v687, %v694
    %v703 = vadd.f32 %v701, %v702
    %v704 = vtanh.pop %v703
    %v705 = vmul.f32 %v700, %v704
    %s706 = scalar_lea.vmem %s0, 8
    %v707 = vld [vmem:[%s706] sm:$0xff]
    %708 = vmatprep.subr.mxu0 %v137
    %709 = vmatpush1.msra.mxu0 %v136
    %710 = vmatprep.subr.mxu0 %v133
    %711 = vmatpush1.msra.mxu0 %v132
    %712 = vmatprep.subr.mxu0 %v129
    %713 = vmatpush1.msra.mxu0 %v128
    %714 = vmatprep.subr.mxu0 %v125
    %715 = vmatpush1.msra.mxu0 %v124
    %716 = vmatprep.subr.mxu0 %v121
    %717 = vmatpush1.msra.mxu0 %v120
    %718 = vmatprep.subr.mxu0 %v117
    %719 = vmatpush1.msra.mxu0 %v116
    %720 = vmatprep.subr.mxu0 %v113
    %721 = vmatpush1.msra.mxu0 %v112
    %722 = vmatprep.subr.mxu0 %v109
    %723 = vmatpush1.msra.mxu0 %v108
    %724 = vmatprep.subr.mxu0 %v105
    %725 = vmatpush1.msra.mxu0 %v104
    %726 = vmatprep.subr.mxu0 %v101
    %727 = vmatpush1.msra.mxu0 %v100
    %728 = vmatprep.subr.mxu0 %v97
    %729 = vmatpush1.msra.mxu0 %v96
    %730 = vmatprep.subr.mxu0 %v93
    %731 = vmatpush1.msra.mxu0 %v92
    %732 = vmatprep.subr.mxu0 %v89
    %733 = vmatpush1.msra.mxu0 %v88
    %734 = vmatprep.subr.mxu0 %v85
    %735 = vmatpush1.msra.mxu0 %v84
    %736 = vmatprep.subr.mxu0 %v81
    %737 = vmatpush1.msra.mxu0 %v80
    %738 = vmatprep.subr.mxu0 %v77
    %739 = vmatpush1.msra.mxu0 %v76
    %740 = vmatprep.subr.mxu0 %v201
    %741 = vmatpush2.msra.mxu0 %v200
    %742 = vmatprep.subr.mxu0 %v197
    %743 = vmatpush2.msra.mxu0 %v196
    %744 = vmatprep.subr.mxu0 %v193
    %745 = vmatpush2.msra.mxu0 %v192
    %746 = vmatprep.subr.mxu0 %v189
    %747 = vmatpush2.msra.mxu0 %v188
    %748 = vmatprep.subr.mxu0 %v185
    %749 = vmatpush2.msra.mxu0 %v184
    %750 = vmatprep.subr.mxu0 %v181
    %751 = vmatpush2.msra.mxu0 %v180
    %752 = vmatprep.subr.mxu0 %v177
    %753 = vmatpush2.msra.mxu0 %v176
    %754 = vmatprep.subr.mxu0 %v173
    %755 = vmatpush2.msra.mxu0 %v172
    %756 = vmatprep.subr.mxu0 %v169
    %757 = vmatpush2.msra.mxu0 %v168
    %758 = vmatprep.subr.mxu0 %v165
    %759 = vmatpush2.msra.mxu0 %v164
    %760 = vmatprep.subr.mxu0 %v161
    %761 = vmatpush2.msra.mxu0 %v160
    %762 = vmatprep.subr.mxu0 %v157
    %763 = vmatpush2.msra.mxu0 %v156
    %764 = vmatprep.subr.mxu0 %v153
    %765 = vmatpush2.msra.mxu0 %v152
    %766 = vmatprep.subr.mxu0 %v149
    %767 = vmatpush2.msra.mxu0 %v148
    %768 = vmatprep.subr.mxu0 %v145
    %769 = vmatpush2.msra.mxu0 %v144
    %770 = vmatprep.subr.mxu0 %v141
    %771 = vmatpush2.msra.mxu0 %v140
    %772 = vmatprep.mubr.f32.mxu0 %v390
    %773 = vmatmul.mubr.f32.gmra.mxu0 %v707
    %v774 = vpop.f32.mrf.mxu0
    %v775 = vadd.f32 %v208, %v774
    %v776 = vpop.f32.mrf.mxu0
    %v777 = vadd.f32 %v212, %v776
    %778 = vdwg.mxu0
    %779 = vmatprep.subr.mxu0 %v139
    %780 = vmatpush1.msra.mxu0 %v138
    %781 = vmatprep.subr.mxu0 %v135
    %782 = vmatpush1.msra.mxu0 %v134
    %783 = vmatprep.subr.mxu0 %v131
    %784 = vmatpush1.msra.mxu0 %v130
    %785 = vmatprep.subr.mxu0 %v127
    %786 = vmatpush1.msra.mxu0 %v126
    %787 = vmatprep.subr.mxu0 %v123
    %788 = vmatpush1.msra.mxu0 %v122
    %789 = vmatprep.subr.mxu0 %v119
    %790 = vmatpush1.msra.mxu0 %v118
    %791 = vmatprep.subr.mxu0 %v115
    %792 = vmatpush1.msra.mxu0 %v114
    %793 = vmatprep.subr.mxu0 %v111
    %794 = vmatpush1.msra.mxu0 %v110
    %795 = vmatprep.subr.mxu0 %v107
    %796 = vmatpush1.msra.mxu0 %v106
    %797 = vmatprep.subr.mxu0 %v103
    %798 = vmatpush1.msra.mxu0 %v102
    %799 = vmatprep.subr.mxu0 %v99
    %800 = vmatpush1.msra.mxu0 %v98
    %801 = vmatprep.subr.mxu0 %v95
    %802 = vmatpush1.msra.mxu0 %v94
    %803 = vmatprep.subr.mxu0 %v91
    %804 = vmatpush1.msra.mxu0 %v90
    %805 = vmatprep.subr.mxu0 %v87
    %806 = vmatpush1.msra.mxu0 %v86
    %807 = vmatprep.subr.mxu0 %v83
    %808 = vmatpush1.msra.mxu0 %v82
    %809 = vmatprep.subr.mxu0 %v79
    %810 = vmatpush1.msra.mxu0 %v78
    %811 = vmatprep.subr.mxu0 %v203
    %812 = vmatpush2.msra.mxu0 %v202
    %813 = vmatprep.subr.mxu0 %v199
    %814 = vmatpush2.msra.mxu0 %v198
    %815 = vmatprep.subr.mxu0 %v195
    %816 = vmatpush2.msra.mxu0 %v194
    %817 = vmatprep.subr.mxu0 %v191
    %818 = vmatpush2.msra.mxu0 %v190
    %819 = vmatprep.subr.mxu0 %v187
    %820 = vmatpush2.msra.mxu0 %v186
    %821 = vmatprep.subr.mxu0 %v183
    %822 = vmatpush2.msra.mxu0 %v182
    %823 = vmatprep.subr.mxu0 %v179
    %824 = vmatpush2.msra.mxu0 %v178
    %825 = vmatprep.subr.mxu0 %v175
    %826 = vmatpush2.msra.mxu0 %v174
    %827 = vmatprep.subr.mxu0 %v171
    %828 = vmatpush2.msra.mxu0 %v170
    %829 = vmatprep.subr.mxu0 %v167
    %830 = vmatpush2.msra.mxu0 %v166
    %831 = vmatprep.subr.mxu0 %v163
    %832 = vmatpush2.msra.mxu0 %v162
    %833 = vmatprep.subr.mxu0 %v159
    %834 = vmatpush2.msra.mxu0 %v158
    %835 = vmatprep.subr.mxu0 %v155
    %836 = vmatpush2.msra.mxu0 %v154
    %837 = vmatprep.subr.mxu0 %v151
    %838 = vmatpush2.msra.mxu0 %v150
    %839 = vmatprep.subr.mxu0 %v147
    %840 = vmatpush2.msra.mxu0 %v146
    %841 = vmatprep.subr.mxu0 %v143
    %842 = vmatpush2.msra.mxu0 %v142
    %843 = vmatprep.mubr.f32.mxu0 %v390
    %844 = vmatmul.mubr.f32.gmra.mxu0 %v707
    %v845 = vpop.f32.mrf.mxu0
    %v846 = vadd.f32 %v216, %v845
    %v847 = vpop.f32.mrf.mxu0
    %v848 = vadd.f32 %v220, %v847
    %849 = vdwg.mxu0
    %v850 = vxor.u32 %v775, 2147483648
    %v851 = vmul.f32 %v850, 1.442695
    %v852 = vpow.pop %v851
    %v853 = vadd.f32 %v852, 1.0
    %v854 = vrcp.pop %v853
    %v855 = vmul.f32 1.0, %v854
    %v856 = vxor.u32 %v777, 2147483648
    %v857 = vmul.f32 %v856, 1.442695
    %v858 = vpow.pop %v857
    %v859 = vadd.f32 %v858, 1.0
    %v860 = vrcp.pop %v859
    %v861 = vmul.f32 1.0, %v860
    %v862 = vtanh.pop %v846
    %v863 = vxor.u32 %v848, 2147483648
    %v864 = vmul.f32 %v863, 1.442695
    %v865 = vpow.pop %v864
    %v866 = vadd.f32 %v865, 1.0
    %v867 = vrcp.pop %v866
    %v868 = vmul.f32 1.0, %v867
    %v869 = vmul.f32 %v861, %v388
    %v870 = vmul.f32 %v855, %v862
    %v871 = vadd.f32 %v869, %v870
    %v872 = vtanh.pop %v871
    %v873 = vmul.f32 %v868, %v872
    %874 = vmatprep.subr.mxu0 %v452
    %875 = vmatpush1.msra.mxu0 %v451
    %876 = vmatprep.subr.mxu0 %v448
    %877 = vmatpush1.msra.mxu0 %v447
    %878 = vmatprep.subr.mxu0 %v444
    %879 = vmatpush1.msra.mxu0 %v443
    %880 = vmatprep.subr.mxu0 %v440
    %881 = vmatpush1.msra.mxu0 %v439
    %882 = vmatprep.subr.mxu0 %v436
    %883 = vmatpush1.msra.mxu0 %v435
    %884 = vmatprep.subr.mxu0 %v432
    %885 = vmatpush1.msra.mxu0 %v431
    %886 = vmatprep.subr.mxu0 %v428
    %887 = vmatpush1.msra.mxu0 %v427
    %888 = vmatprep.subr.mxu0 %v424
    %889 = vmatpush1.msra.mxu0 %v423
    %890 = vmatprep.subr.mxu0 %v420
    %891 = vmatpush1.msra.mxu0 %v419
    %892 = vmatprep.subr.mxu0 %v416
    %893 = vmatpush1.msra.mxu0 %v415
    %894 = vmatprep.subr.mxu0 %v412
    %895 = vmatpush1.msra.mxu0 %v411
    %896 = vmatprep.subr.mxu0 %v408
    %897 = vmatpush1.msra.mxu0 %v407
    %898 = vmatprep.subr.mxu0 %v404
    %899 = vmatpush1.msra.mxu0 %v403
    %900 = vmatprep.subr.mxu0 %v400
    %901 = vmatpush1.msra.mxu0 %v399
    %902 = vmatprep.subr.mxu0 %v396
    %903 = vmatpush1.msra.mxu0 %v395
    %904 = vmatprep.subr.mxu0 %v392
    %905 = vmatpush1.msra.mxu0 %v391
    %906 = vmatprep.subr.mxu0 %v516
    %907 = vmatpush2.msra.mxu0 %v515
    %908 = vmatprep.subr.mxu0 %v512
    %909 = vmatpush2.msra.mxu0 %v511
    %910 = vmatprep.subr.mxu0 %v508
    %911 = vmatpush2.msra.mxu0 %v507
    %912 = vmatprep.subr.mxu0 %v504
    %913 = vmatpush2.msra.mxu0 %v503
    %914 = vmatprep.subr.mxu0 %v500
    %915 = vmatpush2.msra.mxu0 %v499
    %916 = vmatprep.subr.mxu0 %v496
    %917 = vmatpush2.msra.mxu0 %v495
    %918 = vmatprep.subr.mxu0 %v492
    %919 = vmatpush2.msra.mxu0 %v491
    %920 = vmatprep.subr.mxu0 %v488
    %921 = vmatpush2.msra.mxu0 %v487
    %922 = vmatprep.subr.mxu0 %v484
    %923 = vmatpush2.msra.mxu0 %v483
    %924 = vmatprep.subr.mxu0 %v480
    %925 = vmatpush2.msra.mxu0 %v479
    %926 = vmatprep.subr.mxu0 %v476
    %927 = vmatpush2.msra.mxu0 %v475
    %928 = vmatprep.subr.mxu0 %v472
    %929 = vmatpush2.msra.mxu0 %v471
    %930 = vmatprep.subr.mxu0 %v468
    %931 = vmatpush2.msra.mxu0 %v467
    %932 = vmatprep.subr.mxu0 %v464
    %933 = vmatpush2.msra.mxu0 %v463
    %934 = vmatprep.subr.mxu0 %v460
    %935 = vmatpush2.msra.mxu0 %v459
    %936 = vmatprep.subr.mxu0 %v456
    %937 = vmatpush2.msra.mxu0 %v455
    %938 = vmatprep.mubr.f32.mxu0 %v705
    %939 = vmatmul.mubr.f32.gmra.mxu0 %v873
    %v940 = vpop.f32.mrf.mxu0
    %v941 = vadd.f32 %v523, %v940
    %v942 = vpop.f32.mrf.mxu0
    %v943 = vadd.f32 %v527, %v942
    %944 = vdwg.mxu0
    %945 = vmatprep.subr.mxu0 %v454
    %946 = vmatpush1.msra.mxu0 %v453
    %947 = vmatprep.subr.mxu0 %v450
    %948 = vmatpush1.msra.mxu0 %v449
    %949 = vmatprep.subr.mxu0 %v446
    %950 = vmatpush1.msra.mxu0 %v445
    %951 = vmatprep.subr.mxu0 %v442
    %952 = vmatpush1.msra.mxu0 %v441
    %953 = vmatprep.subr.mxu0 %v438
    %954 = vmatpush1.msra.mxu0 %v437
    %955 = vmatprep.subr.mxu0 %v434
    %956 = vmatpush1.msra.mxu0 %v433
    %957 = vmatprep.subr.mxu0 %v430
    %958 = vmatpush1.msra.mxu0 %v429
    %959 = vmatprep.subr.mxu0 %v426
    %960 = vmatpush1.msra.mxu0 %v425
    %961 = vmatprep.subr.mxu0 %v422
    %962 = vmatpush1.msra.mxu0 %v421
    %963 = vmatprep.subr.mxu0 %v418
    %964 = vmatpush1.msra.mxu0 %v417
    %965 = vmatprep.subr.mxu0 %v414
    %966 = vmatpush1.msra.mxu0 %v413
    %967 = vmatprep.subr.mxu0 %v410
    %968 = vmatpush1.msra.mxu0 %v409
    %969 = vmatprep.subr.mxu0 %v406
    %970 = vmatpush1.msra.mxu0 %v405
    %971 = vmatprep.subr.mxu0 %v402
    %972 = vmatpush1.msra.mxu0 %v401
    %973 = vmatprep.subr.mxu0 %v398
    %974 = vmatpush1.msra.mxu0 %v397
    %975 = vmatprep.subr.mxu0 %v394
    %976 = vmatpush1.msra.mxu0 %v393
    %977 = vmatprep.subr.mxu0 %v518
    %978 = vmatpush2.msra.mxu0 %v517
    %979 = vmatprep.subr.mxu0 %v514
    %980 = vmatpush2.msra.mxu0 %v513
    %981 = vmatprep.subr.mxu0 %v510
    %982 = vmatpush2.msra.mxu0 %v509
    %983 = vmatprep.subr.mxu0 %v506
    %984 = vmatpush2.msra.mxu0 %v505
    %985 = vmatprep.subr.mxu0 %v502
    %986 = vmatpush2.msra.mxu0 %v501
    %987 = vmatprep.subr.mxu0 %v498
    %988 = vmatpush2.msra.mxu0 %v497
    %989 = vmatprep.subr.mxu0 %v494
    %990 = vmatpush2.msra.mxu0 %v493
    %991 = vmatprep.subr.mxu0 %v490
    %992 = vmatpush2.msra.mxu0 %v489
    %993 = vmatprep.subr.mxu0 %v486
    %994 = vmatpush2.msra.mxu0 %v485
    %995 = vmatprep.subr.mxu0 %v482
    %996 = vmatpush2.msra.mxu0 %v481
    %997 = vmatprep.subr.mxu0 %v478
    %998 = vmatpush2.msra.mxu0 %v477
    %999 = vmatprep.subr.mxu0 %v474
    %1000 = vmatpush2.msra.mxu0 %v473
    %1001 = vmatprep.subr.mxu0 %v470
    %1002 = vmatpush2.msra.mxu0 %v469
    %1003 = vmatprep.subr.mxu0 %v466
    %1004 = vmatpush2.msra.mxu0 %v465
    %1005 = vmatprep.subr.mxu0 %v462
    %1006 = vmatpush2.msra.mxu0 %v461
    %1007 = vmatprep.subr.mxu0 %v458
    %1008 = vmatpush2.msra.mxu0 %v457
    %1009 = vmatprep.mubr.f32.mxu0 %v705
    %1010 = vmatmul.mubr.f32.gmra.mxu0 %v873
    %v1011 = vpop.f32.mrf.mxu0
    %v1012 = vadd.f32 %v531, %v1011
    %v1013 = vpop.f32.mrf.mxu0
    %v1014 = vadd.f32 %v535, %v1013
    %1015 = vdwg.mxu0
    %v1016 = vxor.u32 %v941, 2147483648
    %v1017 = vmul.f32 %v1016, 1.442695
    %v1018 = vpow.pop %v1017
    %v1019 = vadd.f32 %v1018, 1.0
    %v1020 = vrcp.pop %v1019
    %v1021 = vmul.f32 1.0, %v1020
    %v1022 = vxor.u32 %v943, 2147483648
    %v1023 = vmul.f32 %v1022, 1.442695
    %v1024 = vpow.pop %v1023
    %v1025 = vadd.f32 %v1024, 1.0
    %v1026 = vrcp.pop %v1025
    %v1027 = vmul.f32 1.0, %v1026
    %v1028 = vtanh.pop %v1012
    %v1029 = vxor.u32 %v1014, 2147483648
    %v1030 = vmul.f32 %v1029, 1.442695
    %v1031 = vpow.pop %v1030
    %v1032 = vadd.f32 %v1031, 1.0
    %v1033 = vrcp.pop %v1032
    %v1034 = vmul.f32 1.0, %v1033
    %v1035 = vmul.f32 %v1027, %v703
    %v1036 = vmul.f32 %v1021, %v1028
    %v1037 = vadd.f32 %v1035, %v1036
    %v1038 = vtanh.pop %v1037
    %v1039 = vmul.f32 %v1034, %v1038
    %s1040 = scalar_lea.vmem %s0, 16
    %v1041 = vld [vmem:[%s1040] sm:$0xff]
    %1042 = vmatprep.subr.mxu0 %v137
    %1043 = vmatpush1.msra.mxu0 %v136
    %1044 = vmatprep.subr.mxu0 %v133
    %1045 = vmatpush1.msra.mxu0 %v132
    %1046 = vmatprep.subr.mxu0 %v129
    %1047 = vmatpush1.msra.mxu0 %v128
    %1048 = vmatprep.subr.mxu0 %v125
    %1049 = vmatpush1.msra.mxu0 %v124
    %1050 = vmatprep.subr.mxu0 %v121
    %1051 = vmatpush1.msra.mxu0 %v120
    %1052 = vmatprep.subr.mxu0 %v117
    %1053 = vmatpush1.msra.mxu0 %v116
    %1054 = vmatprep.subr.mxu0 %v113
    %1055 = vmatpush1.msra.mxu0 %v112
    %1056 = vmatprep.subr.mxu0 %v109
    %1057 = vmatpush1.msra.mxu0 %v108
    %1058 = vmatprep.subr.mxu0 %v105
    %1059 = vmatpush1.msra.mxu0 %v104
    %1060 = vmatprep.subr.mxu0 %v101
    %1061 = vmatpush1.msra.mxu0 %v100
    %1062 = vmatprep.subr.mxu0 %v97
    %1063 = vmatpush1.msra.mxu0 %v96
    %1064 = vmatprep.subr.mxu0 %v93
    %1065 = vmatpush1.msra.mxu0 %v92
    %1066 = vmatprep.subr.mxu0 %v89
    %1067 = vmatpush1.msra.mxu0 %v88
    %1068 = vmatprep.subr.mxu0 %v85
    %1069 = vmatpush1.msra.mxu0 %v84
    %1070 = vmatprep.subr.mxu0 %v81
    %1071 = vmatpush1.msra.mxu0 %v80
    %1072 = vmatprep.subr.mxu0 %v77
    %1073 = vmatpush1.msra.mxu0 %v76
    %1074 = vmatprep.subr.mxu0 %v201
    %1075 = vmatpush2.msra.mxu0 %v200
    %1076 = vmatprep.subr.mxu0 %v197
    %1077 = vmatpush2.msra.mxu0 %v196
    %1078 = vmatprep.subr.mxu0 %v193
    %1079 = vmatpush2.msra.mxu0 %v192
    %1080 = vmatprep.subr.mxu0 %v189
    %1081 = vmatpush2.msra.mxu0 %v188
    %1082 = vmatprep.subr.mxu0 %v185
    %1083 = vmatpush2.msra.mxu0 %v184
    %1084 = vmatprep.subr.mxu0 %v181
    %1085 = vmatpush2.msra.mxu0 %v180
    %1086 = vmatprep.subr.mxu0 %v177
    %1087 = vmatpush2.msra.mxu0 %v176
    %1088 = vmatprep.subr.mxu0 %v173
    %1089 = vmatpush2.msra.mxu0 %v172
    %1090 = vmatprep.subr.mxu0 %v169
    %1091 = vmatpush2.msra.mxu0 %v168
    %1092 = vmatprep.subr.mxu0 %v165
    %1093 = vmatpush2.msra.mxu0 %v164
    %1094 = vmatprep.subr.mxu0 %v161
    %1095 = vmatpush2.msra.mxu0 %v160
    %1096 = vmatprep.subr.mxu0 %v157
    %1097 = vmatpush2.msra.mxu0 %v156
    %1098 = vmatprep.subr.mxu0 %v153
    %1099 = vmatpush2.msra.mxu0 %v152
    %1100 = vmatprep.subr.mxu0 %v149
    %1101 = vmatpush2.msra.mxu0 %v148
    %1102 = vmatprep.subr.mxu0 %v145
    %1103 = vmatpush2.msra.mxu0 %v144
    %1104 = vmatprep.subr.mxu0 %v141
    %1105 = vmatpush2.msra.mxu0 %v140
    %1106 = vmatprep.mubr.f32.mxu0 %v873
    %1107 = vmatmul.mubr.f32.gmra.mxu0 %v1041
    %v1108 = vpop.f32.mrf.mxu0
    %v1109 = vadd.f32 %v208, %v1108
    %v1110 = vpop.f32.mrf.mxu0
    %v1111 = vadd.f32 %v212, %v1110
    %1112 = vdwg.mxu0
    %1113 = vmatprep.subr.mxu0 %v139
    %1114 = vmatpush1.msra.mxu0 %v138
    %1115 = vmatprep.subr.mxu0 %v135
    %1116 = vmatpush1.msra.mxu0 %v134
    %1117 = vmatprep.subr.mxu0 %v131
    %1118 = vmatpush1.msra.mxu0 %v130
    %1119 = vmatprep.subr.mxu0 %v127
    %1120 = vmatpush1.msra.mxu0 %v126
    %1121 = vmatprep.subr.mxu0 %v123
    %1122 = vmatpush1.msra.mxu0 %v122
    %1123 = vmatprep.subr.mxu0 %v119
    %1124 = vmatpush1.msra.mxu0 %v118
    %1125 = vmatprep.subr.mxu0 %v115
    %1126 = vmatpush1.msra.mxu0 %v114
    %1127 = vmatprep.subr.mxu0 %v111
    %1128 = vmatpush1.msra.mxu0 %v110
    %1129 = vmatprep.subr.mxu0 %v107
    %1130 = vmatpush1.msra.mxu0 %v106
    %1131 = vmatprep.subr.mxu0 %v103
    %1132 = vmatpush1.msra.mxu0 %v102
    %1133 = vmatprep.subr.mxu0 %v99
    %1134 = vmatpush1.msra.mxu0 %v98
    %1135 = vmatprep.subr.mxu0 %v95
    %1136 = vmatpush1.msra.mxu0 %v94
    %1137 = vmatprep.subr.mxu0 %v91
    %1138 = vmatpush1.msra.mxu0 %v90
    %1139 = vmatprep.subr.mxu0 %v87
    %1140 = vmatpush1.msra.mxu0 %v86
    %1141 = vmatprep.subr.mxu0 %v83
    %1142 = vmatpush1.msra.mxu0 %v82
    %1143 = vmatprep.subr.mxu0 %v79
    %1144 = vmatpush1.msra.mxu0 %v78
    %1145 = vmatprep.subr.mxu0 %v203
    %1146 = vmatpush2.msra.mxu0 %v202
    %1147 = vmatprep.subr.mxu0 %v199
    %1148 = vmatpush2.msra.mxu0 %v198
    %1149 = vmatprep.subr.mxu0 %v195
    %1150 = vmatpush2.msra.mxu0 %v194
    %1151 = vmatprep.subr.mxu0 %v191
    %1152 = vmatpush2.msra.mxu0 %v190
    %1153 = vmatprep.subr.mxu0 %v187
    %1154 = vmatpush2.msra.mxu0 %v186
    %1155 = vmatprep.subr.mxu0 %v183
    %1156 = vmatpush2.msra.mxu0 %v182
    %1157 = vmatprep.subr.mxu0 %v179
    %1158 = vmatpush2.msra.mxu0 %v178
    %1159 = vmatprep.subr.mxu0 %v175
    %1160 = vmatpush2.msra.mxu0 %v174
    %1161 = vmatprep.subr.mxu0 %v171
    %1162 = vmatpush2.msra.mxu0 %v170
    %1163 = vmatprep.subr.mxu0 %v167
    %1164 = vmatpush2.msra.mxu0 %v166
    %1165 = vmatprep.subr.mxu0 %v163
    %1166 = vmatpush2.msra.mxu0 %v162
    %1167 = vmatprep.subr.mxu0 %v159
    %1168 = vmatpush2.msra.mxu0 %v158
    %1169 = vmatprep.subr.mxu0 %v155
    %1170 = vmatpush2.msra.mxu0 %v154
    %1171 = vmatprep.subr.mxu0 %v151
    %1172 = vmatpush2.msra.mxu0 %v150
    %1173 = vmatprep.subr.mxu0 %v147
    %1174 = vmatpush2.msra.mxu0 %v146
    %1175 = vmatprep.subr.mxu0 %v143
    %1176 = vmatpush2.msra.mxu0 %v142
    %1177 = vmatprep.mubr.f32.mxu0 %v873
    %1178 = vmatmul.mubr.f32.gmra.mxu0 %v1041
    %v1179 = vpop.f32.mrf.mxu0
    %v1180 = vadd.f32 %v216, %v1179
    %v1181 = vpop.f32.mrf.mxu0
    %v1182 = vadd.f32 %v220, %v1181
    %1183 = vdwg.mxu0
    %v1184 = vxor.u32 %v1109, 2147483648
    %v1185 = vmul.f32 %v1184, 1.442695
    %v1186 = vpow.pop %v1185
    %v1187 = vadd.f32 %v1186, 1.0
    %v1188 = vrcp.pop %v1187
    %v1189 = vmul.f32 1.0, %v1188
    %v1190 = vxor.u32 %v1111, 2147483648
    %v1191 = vmul.f32 %v1190, 1.442695
    %v1192 = vpow.pop %v1191
    %v1193 = vadd.f32 %v1192, 1.0
    %v1194 = vrcp.pop %v1193
    %v1195 = vmul.f32 1.0, %v1194
    %v1196 = vtanh.pop %v1180
    %v1197 = vxor.u32 %v1182, 2147483648
    %v1198 = vmul.f32 %v1197, 1.442695
    %v1199 = vpow.pop %v1198
    %v1200 = vadd.f32 %v1199, 1.0
    %v1201 = vrcp.pop %v1200
    %v1202 = vmul.f32 1.0, %v1201
    %v1203 = vmul.f32 %v1195, %v871
    %v1204 = vmul.f32 %v1189, %v1196
    %v1205 = vadd.f32 %v1203, %v1204
    %v1206 = vtanh.pop %v1205
    %v1207 = vmul.f32 %v1202, %v1206
    %1208 = vmatprep.subr.mxu0 %v452
    %1209 = vmatpush1.msra.mxu0 %v451
    %1210 = vmatprep.subr.mxu0 %v448
    %1211 = vmatpush1.msra.mxu0 %v447
    %1212 = vmatprep.subr.mxu0 %v444
    %1213 = vmatpush1.msra.mxu0 %v443
    %1214 = vmatprep.subr.mxu0 %v440
    %1215 = vmatpush1.msra.mxu0 %v439
    %1216 = vmatprep.subr.mxu0 %v436
    %1217 = vmatpush1.msra.mxu0 %v435
    %1218 = vmatprep.subr.mxu0 %v432
    %1219 = vmatpush1.msra.mxu0 %v431
    %1220 = vmatprep.subr.mxu0 %v428
    %1221 = vmatpush1.msra.mxu0 %v427
    %1222 = vmatprep.subr.mxu0 %v424
    %1223 = vmatpush1.msra.mxu0 %v423
    %1224 = vmatprep.subr.mxu0 %v420
    %1225 = vmatpush1.msra.mxu0 %v419
    %1226 = vmatprep.subr.mxu0 %v416
    %1227 = vmatpush1.msra.mxu0 %v415
    %1228 = vmatprep.subr.mxu0 %v412
    %1229 = vmatpush1.msra.mxu0 %v411
    %1230 = vmatprep.subr.mxu0 %v408
    %1231 = vmatpush1.msra.mxu0 %v407
    %1232 = vmatprep.subr.mxu0 %v404
    %1233 = vmatpush1.msra.mxu0 %v403
    %1234 = vmatprep.subr.mxu0 %v400
    %1235 = vmatpush1.msra.mxu0 %v399
    %1236 = vmatprep.subr.mxu0 %v396
    %1237 = vmatpush1.msra.mxu0 %v395
    %1238 = vmatprep.subr.mxu0 %v392
    %1239 = vmatpush1.msra.mxu0 %v391
    %1240 = vmatprep.subr.mxu0 %v516
    %1241 = vmatpush2.msra.mxu0 %v515
    %1242 = vmatprep.subr.mxu0 %v512
    %1243 = vmatpush2.msra.mxu0 %v511
    %1244 = vmatprep.subr.mxu0 %v508
    %1245 = vmatpush2.msra.mxu0 %v507
    %1246 = vmatprep.subr.mxu0 %v504
    %1247 = vmatpush2.msra.mxu0 %v503
    %1248 = vmatprep.subr.mxu0 %v500
    %1249 = vmatpush2.msra.mxu0 %v499
    %1250 = vmatprep.subr.mxu0 %v496
    %1251 = vmatpush2.msra.mxu0 %v495
    %1252 = vmatprep.subr.mxu0 %v492
    %1253 = vmatpush2.msra.mxu0 %v491
    %1254 = vmatprep.subr.mxu0 %v488
    %1255 = vmatpush2.msra.mxu0 %v487
    %1256 = vmatprep.subr.mxu0 %v484
    %1257 = vmatpush2.msra.mxu0 %v483
    %1258 = vmatprep.subr.mxu0 %v480
    %1259 = vmatpush2.msra.mxu0 %v479
    %1260 = vmatprep.subr.mxu0 %v476
    %1261 = vmatpush2.msra.mxu0 %v475
    %1262 = vmatprep.subr.mxu0 %v472
    %1263 = vmatpush2.msra.mxu0 %v471
    %1264 = vmatprep.subr.mxu0 %v468
    %1265 = vmatpush2.msra.mxu0 %v467
    %1266 = vmatprep.subr.mxu0 %v464
    %1267 = vmatpush2.msra.mxu0 %v463
    %1268 = vmatprep.subr.mxu0 %v460
    %1269 = vmatpush2.msra.mxu0 %v459
    %1270 = vmatprep.subr.mxu0 %v456
    %1271 = vmatpush2.msra.mxu0 %v455
    %1272 = vmatprep.mubr.f32.mxu0 %v1039
    %1273 = vmatmul.mubr.f32.gmra.mxu0 %v1207
    %v1274 = vpop.f32.mrf.mxu0
    %v1275 = vadd.f32 %v523, %v1274
    %v1276 = vpop.f32.mrf.mxu0
    %v1277 = vadd.f32 %v527, %v1276
    %1278 = vdwg.mxu0
    %1279 = vmatprep.subr.mxu0 %v454
    %1280 = vmatpush1.msra.mxu0 %v453
    %1281 = vmatprep.subr.mxu0 %v450
    %1282 = vmatpush1.msra.mxu0 %v449
    %1283 = vmatprep.subr.mxu0 %v446
    %1284 = vmatpush1.msra.mxu0 %v445
    %1285 = vmatprep.subr.mxu0 %v442
    %1286 = vmatpush1.msra.mxu0 %v441
    %1287 = vmatprep.subr.mxu0 %v438
    %1288 = vmatpush1.msra.mxu0 %v437
    %1289 = vmatprep.subr.mxu0 %v434
    %1290 = vmatpush1.msra.mxu0 %v433
    %1291 = vmatprep.subr.mxu0 %v430
    %1292 = vmatpush1.msra.mxu0 %v429
    %1293 = vmatprep.subr.mxu0 %v426
    %1294 = vmatpush1.msra.mxu0 %v425
    %1295 = vmatprep.subr.mxu0 %v422
    %1296 = vmatpush1.msra.mxu0 %v421
    %1297 = vmatprep.subr.mxu0 %v418
    %1298 = vmatpush1.msra.mxu0 %v417
    %1299 = vmatprep.subr.mxu0 %v414
    %1300 = vmatpush1.msra.mxu0 %v413
    %1301 = vmatprep.subr.mxu0 %v410
    %1302 = vmatpush1.msra.mxu0 %v409
    %1303 = vmatprep.subr.mxu0 %v406
    %1304 = vmatpush1.msra.mxu0 %v405
    %1305 = vmatprep.subr.mxu0 %v402
    %1306 = vmatpush1.msra.mxu0 %v401
    %1307 = vmatprep.subr.mxu0 %v398
    %1308 = vmatpush1.msra.mxu0 %v397
    %1309 = vmatprep.subr.mxu0 %v394
    %1310 = vmatpush1.msra.mxu0 %v393
    %1311 = vmatprep.subr.mxu0 %v518
    %1312 = vmatpush2.msra.mxu0 %v517
    %1313 = vmatprep.subr.mxu0 %v514
    %1314 = vmatpush2.msra.mxu0 %v513
    %1315 = vmatprep.subr.mxu0 %v510
    %1316 = vmatpush2.msra.mxu0 %v509
    %1317 = vmatprep.subr.mxu0 %v506
    %1318 = vmatpush2.msra.mxu0 %v505
    %1319 = vmatprep.subr.mxu0 %v502
    %1320 = vmatpush2.msra.mxu0 %v501
    %1321 = vmatprep.subr.mxu0 %v498
    %1322 = vmatpush2.msra.mxu0 %v497
    %1323 = vmatprep.subr.mxu0 %v494
    %1324 = vmatpush2.msra.mxu0 %v493
    %1325 = vmatprep.subr.mxu0 %v490
    %1326 = vmatpush2.msra.mxu0 %v489
    %1327 = vmatprep.subr.mxu0 %v486
    %1328 = vmatpush2.msra.mxu0 %v485
    %1329 = vmatprep.subr.mxu0 %v482
    %1330 = vmatpush2.msra.mxu0 %v481
    %1331 = vmatprep.subr.mxu0 %v478
    %1332 = vmatpush2.msra.mxu0 %v477
    %1333 = vmatprep.subr.mxu0 %v474
    %1334 = vmatpush2.msra.mxu0 %v473
    %1335 = vmatprep.subr.mxu0 %v470
    %1336 = vmatpush2.msra.mxu0 %v469
    %1337 = vmatprep.subr.mxu0 %v466
    %1338 = vmatpush2.msra.mxu0 %v465
    %1339 = vmatprep.subr.mxu0 %v462
    %1340 = vmatpush2.msra.mxu0 %v461
    %1341 = vmatprep.subr.mxu0 %v458
    %1342 = vmatpush2.msra.mxu0 %v457
    %1343 = vmatprep.mubr.f32.mxu0 %v1039
    %1344 = vmatmul.mubr.f32.gmra.mxu0 %v1207
    %v1345 = vpop.f32.mrf.mxu0
    %v1346 = vadd.f32 %v531, %v1345
    %v1347 = vpop.f32.mrf.mxu0
    %v1348 = vadd.f32 %v535, %v1347
    %1349 = vdwg.mxu0
    %v1350 = vxor.u32 %v1275, 2147483648
    %v1351 = vmul.f32 %v1350, 1.442695
    %v1352 = vpow.pop %v1351
    %v1353 = vadd.f32 %v1352, 1.0
    %v1354 = vrcp.pop %v1353
    %v1355 = vmul.f32 1.0, %v1354
    %v1356 = vxor.u32 %v1277, 2147483648
    %v1357 = vmul.f32 %v1356, 1.442695
    %v1358 = vpow.pop %v1357
    %v1359 = vadd.f32 %v1358, 1.0
    %v1360 = vrcp.pop %v1359
    %v1361 = vmul.f32 1.0, %v1360
    %v1362 = vtanh.pop %v1346
    %v1363 = vxor.u32 %v1348, 2147483648
    %v1364 = vmul.f32 %v1363, 1.442695
    %v1365 = vpow.pop %v1364
    %v1366 = vadd.f32 %v1365, 1.0
    %v1367 = vrcp.pop %v1366
    %v1368 = vmul.f32 1.0, %v1367
    %v1369 = vmul.f32 %v1361, %v1037
    %v1370 = vmul.f32 %v1355, %v1362
    %v1371 = vadd.f32 %v1369, %v1370
    %v1372 = vtanh.pop %v1371
    %v1373 = vmul.f32 %v1368, %v1372
    %s1374 = scalar_lea.vmem %s0, 24
    %v1375 = vld [vmem:[%s1374] sm:$0xff]
    %1376 = vmatprep.subr.mxu0 %v137
    %1377 = vmatpush1.msra.mxu0 %v136
    %1378 = vmatprep.subr.mxu0 %v133
    %1379 = vmatpush1.msra.mxu0 %v132
    %1380 = vmatprep.subr.mxu0 %v129
    %1381 = vmatpush1.msra.mxu0 %v128
    %1382 = vmatprep.subr.mxu0 %v125
    %1383 = vmatpush1.msra.mxu0 %v124
    %1384 = vmatprep.subr.mxu0 %v121
    %1385 = vmatpush1.msra.mxu0 %v120
    %1386 = vmatprep.subr.mxu0 %v117
    %1387 = vmatpush1.msra.mxu0 %v116
    %1388 = vmatprep.subr.mxu0 %v113
    %1389 = vmatpush1.msra.mxu0 %v112
    %1390 = vmatprep.subr.mxu0 %v109
    %1391 = vmatpush1.msra.mxu0 %v108
    %1392 = vmatprep.subr.mxu0 %v105
    %1393 = vmatpush1.msra.mxu0 %v104
    %1394 = vmatprep.subr.mxu0 %v101
    %1395 = vmatpush1.msra.mxu0 %v100
    %1396 = vmatprep.subr.mxu0 %v97
    %1397 = vmatpush1.msra.mxu0 %v96
    %1398 = vmatprep.subr.mxu0 %v93
    %1399 = vmatpush1.msra.mxu0 %v92
    %1400 = vmatprep.subr.mxu0 %v89
    %1401 = vmatpush1.msra.mxu0 %v88
    %1402 = vmatprep.subr.mxu0 %v85
    %1403 = vmatpush1.msra.mxu0 %v84
    %1404 = vmatprep.subr.mxu0 %v81
    %1405 = vmatpush1.msra.mxu0 %v80
    %1406 = vmatprep.subr.mxu0 %v77
    %1407 = vmatpush1.msra.mxu0 %v76
    %1408 = vmatprep.subr.mxu0 %v201
    %1409 = vmatpush2.msra.mxu0 %v200
    %1410 = vmatprep.subr.mxu0 %v197
    %1411 = vmatpush2.msra.mxu0 %v196
    %1412 = vmatprep.subr.mxu0 %v193
    %1413 = vmatpush2.msra.mxu0 %v192
    %1414 = vmatprep.subr.mxu0 %v189
    %1415 = vmatpush2.msra.mxu0 %v188
    %1416 = vmatprep.subr.mxu0 %v185
    %1417 = vmatpush2.msra.mxu0 %v184
    %1418 = vmatprep.subr.mxu0 %v181
    %1419 = vmatpush2.msra.mxu0 %v180
    %1420 = vmatprep.subr.mxu0 %v177
    %1421 = vmatpush2.msra.mxu0 %v176
    %1422 = vmatprep.subr.mxu0 %v173
    %1423 = vmatpush2.msra.mxu0 %v172
    %1424 = vmatprep.subr.mxu0 %v169
    %1425 = vmatpush2.msra.mxu0 %v168
    %1426 = vmatprep.subr.mxu0 %v165
    %1427 = vmatpush2.msra.mxu0 %v164
    %1428 = vmatprep.subr.mxu0 %v161
    %1429 = vmatpush2.msra.mxu0 %v160
    %1430 = vmatprep.subr.mxu0 %v157
    %1431 = vmatpush2.msra.mxu0 %v156
    %1432 = vmatprep.subr.mxu0 %v153
    %1433 = vmatpush2.msra.mxu0 %v152
    %1434 = vmatprep.subr.mxu0 %v149
    %1435 = vmatpush2.msra.mxu0 %v148
    %1436 = vmatprep.subr.mxu0 %v145
    %1437 = vmatpush2.msra.mxu0 %v144
    %1438 = vmatprep.subr.mxu0 %v141
    %1439 = vmatpush2.msra.mxu0 %v140
    %1440 = vmatprep.mubr.f32.mxu0 %v1207
    %1441 = vmatmul.mubr.f32.gmra.mxu0 %v1375
    %v1442 = vpop.f32.mrf.mxu0
    %v1443 = vadd.f32 %v208, %v1442
    %v1444 = vpop.f32.mrf.mxu0
    %v1445 = vadd.f32 %v212, %v1444
    %1446 = vdwg.mxu0
    %1447 = vmatprep.subr.mxu0 %v139
    %1448 = vmatpush1.msra.mxu0 %v138
    %1449 = vmatprep.subr.mxu0 %v135
    %1450 = vmatpush1.msra.mxu0 %v134
    %1451 = vmatprep.subr.mxu0 %v131
    %1452 = vmatpush1.msra.mxu0 %v130
    %1453 = vmatprep.subr.mxu0 %v127
    %1454 = vmatpush1.msra.mxu0 %v126
    %1455 = vmatprep.subr.mxu0 %v123
    %1456 = vmatpush1.msra.mxu0 %v122
    %1457 = vmatprep.subr.mxu0 %v119
    %1458 = vmatpush1.msra.mxu0 %v118
    %1459 = vmatprep.subr.mxu0 %v115
    %1460 = vmatpush1.msra.mxu0 %v114
    %1461 = vmatprep.subr.mxu0 %v111
    %1462 = vmatpush1.msra.mxu0 %v110
    %1463 = vmatprep.subr.mxu0 %v107
    %1464 = vmatpush1.msra.mxu0 %v106
    %1465 = vmatprep.subr.mxu0 %v103
    %1466 = vmatpush1.msra.mxu0 %v102
    %1467 = vmatprep.subr.mxu0 %v99
    %1468 = vmatpush1.msra.mxu0 %v98
    %1469 = vmatprep.subr.mxu0 %v95
    %1470 = vmatpush1.msra.mxu0 %v94
    %1471 = vmatprep.subr.mxu0 %v91
    %1472 = vmatpush1.msra.mxu0 %v90
    %1473 = vmatprep.subr.mxu0 %v87
    %1474 = vmatpush1.msra.mxu0 %v86
    %1475 = vmatprep.subr.mxu0 %v83
    %1476 = vmatpush1.msra.mxu0 %v82
    %1477 = vmatprep.subr.mxu0 %v79
    %1478 = vmatpush1.msra.mxu0 %v78
    %1479 = vmatprep.subr.mxu0 %v203
    %1480 = vmatpush2.msra.mxu0 %v202
    %1481 = vmatprep.subr.mxu0 %v199
    %1482 = vmatpush2.msra.mxu0 %v198
    %1483 = vmatprep.subr.mxu0 %v195
    %1484 = vmatpush2.msra.mxu0 %v194
    %1485 = vmatprep.subr.mxu0 %v191
    %1486 = vmatpush2.msra.mxu0 %v190
    %1487 = vmatprep.subr.mxu0 %v187
    %1488 = vmatpush2.msra.mxu0 %v186
    %1489 = vmatprep.subr.mxu0 %v183
    %1490 = vmatpush2.msra.mxu0 %v182
    %1491 = vmatprep.subr.mxu0 %v179
    %1492 = vmatpush2.msra.mxu0 %v178
    %1493 = vmatprep.subr.mxu0 %v175
    %1494 = vmatpush2.msra.mxu0 %v174
    %1495 = vmatprep.subr.mxu0 %v171
    %1496 = vmatpush2.msra.mxu0 %v170
    %1497 = vmatprep.subr.mxu0 %v167
    %1498 = vmatpush2.msra.mxu0 %v166
    %1499 = vmatprep.subr.mxu0 %v163
    %1500 = vmatpush2.msra.mxu0 %v162
    %1501 = vmatprep.subr.mxu0 %v159
    %1502 = vmatpush2.msra.mxu0 %v158
    %1503 = vmatprep.subr.mxu0 %v155
    %1504 = vmatpush2.msra.mxu0 %v154
    %1505 = vmatprep.subr.mxu0 %v151
    %1506 = vmatpush2.msra.mxu0 %v150
    %1507 = vmatprep.subr.mxu0 %v147
    %1508 = vmatpush2.msra.mxu0 %v146
    %1509 = vmatprep.subr.mxu0 %v143
    %1510 = vmatpush2.msra.mxu0 %v142
    %1511 = vmatprep.mubr.f32.mxu0 %v1207
    %1512 = vmatmul.mubr.f32.gmra.mxu0 %v1375
    %v1513 = vpop.f32.mrf.mxu0
    %v1514 = vadd.f32 %v216, %v1513
    %v1515 = vpop.f32.mrf.mxu0
    %v1516 = vadd.f32 %v220, %v1515
    %1517 = vdwg.mxu0
    %v1518 = vxor.u32 %v1443, 2147483648
    %v1519 = vmul.f32 %v1518, 1.442695
    %v1520 = vpow.pop %v1519
    %v1521 = vadd.f32 %v1520, 1.0
    %v1522 = vrcp.pop %v1521
    %v1523 = vmul.f32 1.0, %v1522
    %v1524 = vxor.u32 %v1445, 2147483648
    %v1525 = vmul.f32 %v1524, 1.442695
    %v1526 = vpow.pop %v1525
    %v1527 = vadd.f32 %v1526, 1.0
    %v1528 = vrcp.pop %v1527
    %v1529 = vmul.f32 1.0, %v1528
    %v1530 = vtanh.pop %v1514
    %v1531 = vxor.u32 %v1516, 2147483648
    %v1532 = vmul.f32 %v1531, 1.442695
    %v1533 = vpow.pop %v1532
    %v1534 = vadd.f32 %v1533, 1.0
    %v1535 = vrcp.pop %v1534
    %v1536 = vmul.f32 1.0, %v1535
    %v1537 = vmul.f32 %v1529, %v1205
    %v1538 = vmul.f32 %v1523, %v1530
    %v1539 = vadd.f32 %v1537, %v1538
    %v1540 = vtanh.pop %v1539
    %v1541 = vmul.f32 %v1536, %v1540
    %1542 = vmatprep.subr.mxu0 %v452
    %1543 = vmatpush1.msra.mxu0 %v451
    %1544 = vmatprep.subr.mxu0 %v448
    %1545 = vmatpush1.msra.mxu0 %v447
    %1546 = vmatprep.subr.mxu0 %v444
    %1547 = vmatpush1.msra.mxu0 %v443
    %1548 = vmatprep.subr.mxu0 %v440
    %1549 = vmatpush1.msra.mxu0 %v439
    %1550 = vmatprep.subr.mxu0 %v436
    %1551 = vmatpush1.msra.mxu0 %v435
    %1552 = vmatprep.subr.mxu0 %v432
    %1553 = vmatpush1.msra.mxu0 %v431
    %1554 = vmatprep.subr.mxu0 %v428
    %1555 = vmatpush1.msra.mxu0 %v427
    %1556 = vmatprep.subr.mxu0 %v424
    %1557 = vmatpush1.msra.mxu0 %v423
    %1558 = vmatprep.subr.mxu0 %v420
    %1559 = vmatpush1.msra.mxu0 %v419
    %1560 = vmatprep.subr.mxu0 %v416
    %1561 = vmatpush1.msra.mxu0 %v415
    %1562 = vmatprep.subr.mxu0 %v412
    %1563 = vmatpush1.msra.mxu0 %v411
    %1564 = vmatprep.subr.mxu0 %v408
    %1565 = vmatpush1.msra.mxu0 %v407
    %1566 = vmatprep.subr.mxu0 %v404
    %1567 = vmatpush1.msra.mxu0 %v403
    %1568 = vmatprep.subr.mxu0 %v400
    %1569 = vmatpush1.msra.mxu0 %v399
    %1570 = vmatprep.subr.mxu0 %v396
    %1571 = vmatpush1.msra.mxu0 %v395
    %1572 = vmatprep.subr.mxu0 %v392
    %1573 = vmatpush1.msra.mxu0 %v391
    %1574 = vmatprep.subr.mxu0 %v516
    %1575 = vmatpush2.msra.mxu0 %v515
    %1576 = vmatprep.subr.mxu0 %v512
    %1577 = vmatpush2.msra.mxu0 %v511
    %1578 = vmatprep.subr.mxu0 %v508
    %1579 = vmatpush2.msra.mxu0 %v507
    %1580 = vmatprep.subr.mxu0 %v504
    %1581 = vmatpush2.msra.mxu0 %v503
    %1582 = vmatprep.subr.mxu0 %v500
    %1583 = vmatpush2.msra.mxu0 %v499
    %1584 = vmatprep.subr.mxu0 %v496
    %1585 = vmatpush2.msra.mxu0 %v495
    %1586 = vmatprep.subr.mxu0 %v492
    %1587 = vmatpush2.msra.mxu0 %v491
    %1588 = vmatprep.subr.mxu0 %v488
    %1589 = vmatpush2.msra.mxu0 %v487
    %1590 = vmatprep.subr.mxu0 %v484
    %1591 = vmatpush2.msra.mxu0 %v483
    %1592 = vmatprep.subr.mxu0 %v480
    %1593 = vmatpush2.msra.mxu0 %v479
    %1594 = vmatprep.subr.mxu0 %v476
    %1595 = vmatpush2.msra.mxu0 %v475
    %1596 = vmatprep.subr.mxu0 %v472
    %1597 = vmatpush2.msra.mxu0 %v471
    %1598 = vmatprep.subr.mxu0 %v468
    %1599 = vmatpush2.msra.mxu0 %v467
    %1600 = vmatprep.subr.mxu0 %v464
    %1601 = vmatpush2.msra.mxu0 %v463
    %1602 = vmatprep.subr.mxu0 %v460
    %1603 = vmatpush2.msra.mxu0 %v459
    %1604 = vmatprep.subr.mxu0 %v456
    %1605 = vmatpush2.msra.mxu0 %v455
    %1606 = vmatprep.mubr.f32.mxu0 %v1373
    %1607 = vmatmul.mubr.f32.gmra.mxu0 %v1541
    %v1608 = vpop.f32.mrf.mxu0
    %v1609 = vadd.f32 %v523, %v1608
    %v1610 = vpop.f32.mrf.mxu0
    %v1611 = vadd.f32 %v527, %v1610
    %1612 = vdwg.mxu0
    %1613 = vmatprep.subr.mxu0 %v454
    %1614 = vmatpush1.msra.mxu0 %v453
    %1615 = vmatprep.subr.mxu0 %v450
    %1616 = vmatpush1.msra.mxu0 %v449
    %1617 = vmatprep.subr.mxu0 %v446
    %1618 = vmatpush1.msra.mxu0 %v445
    %1619 = vmatprep.subr.mxu0 %v442
    %1620 = vmatpush1.msra.mxu0 %v441
    %1621 = vmatprep.subr.mxu0 %v438
    %1622 = vmatpush1.msra.mxu0 %v437
    %1623 = vmatprep.subr.mxu0 %v434
    %1624 = vmatpush1.msra.mxu0 %v433
    %1625 = vmatprep.subr.mxu0 %v430
    %1626 = vmatpush1.msra.mxu0 %v429
    %1627 = vmatprep.subr.mxu0 %v426
    %1628 = vmatpush1.msra.mxu0 %v425
    %1629 = vmatprep.subr.mxu0 %v422
    %1630 = vmatpush1.msra.mxu0 %v421
    %1631 = vmatprep.subr.mxu0 %v418
    %1632 = vmatpush1.msra.mxu0 %v417
    %1633 = vmatprep.subr.mxu0 %v414
    %1634 = vmatpush1.msra.mxu0 %v413
    %1635 = vmatprep.subr.mxu0 %v410
    %1636 = vmatpush1.msra.mxu0 %v409
    %1637 = vmatprep.subr.mxu0 %v406
    %1638 = vmatpush1.msra.mxu0 %v405
    %1639 = vmatprep.subr.mxu0 %v402
    %1640 = vmatpush1.msra.mxu0 %v401
    %1641 = vmatprep.subr.mxu0 %v398
    %1642 = vmatpush1.msra.mxu0 %v397
    %1643 = vmatprep.subr.mxu0 %v394
    %1644 = vmatpush1.msra.mxu0 %v393
    %1645 = vmatprep.subr.mxu0 %v518
    %1646 = vmatpush2.msra.mxu0 %v517
    %1647 = vmatprep.subr.mxu0 %v514
    %1648 = vmatpush2.msra.mxu0 %v513
    %1649 = vmatprep.subr.mxu0 %v510
    %1650 = vmatpush2.msra.mxu0 %v509
    %1651 = vmatprep.subr.mxu0 %v506
    %1652 = vmatpush2.msra.mxu0 %v505
    %1653 = vmatprep.subr.mxu0 %v502
    %1654 = vmatpush2.msra.mxu0 %v501
    %1655 = vmatprep.subr.mxu0 %v498
    %1656 = vmatpush2.msra.mxu0 %v497
    %1657 = vmatprep.subr.mxu0 %v494
    %1658 = vmatpush2.msra.mxu0 %v493
    %1659 = vmatprep.subr.mxu0 %v490
    %1660 = vmatpush2.msra.mxu0 %v489
    %1661 = vmatprep.subr.mxu0 %v486
    %1662 = vmatpush2.msra.mxu0 %v485
    %1663 = vmatprep.subr.mxu0 %v482
    %1664 = vmatpush2.msra.mxu0 %v481
    %1665 = vmatprep.subr.mxu0 %v478
    %1666 = vmatpush2.msra.mxu0 %v477
    %1667 = vmatprep.subr.mxu0 %v474
    %1668 = vmatpush2.msra.mxu0 %v473
    %1669 = vmatprep.subr.mxu0 %v470
    %1670 = vmatpush2.msra.mxu0 %v469
    %1671 = vmatprep.subr.mxu0 %v466
    %1672 = vmatpush2.msra.mxu0 %v465
    %1673 = vmatprep.subr.mxu0 %v462
    %1674 = vmatpush2.msra.mxu0 %v461
    %1675 = vmatprep.subr.mxu0 %v458
    %1676 = vmatpush2.msra.mxu0 %v457
    %1677 = vmatprep.mubr.f32.mxu0 %v1373
    %1678 = vmatmul.mubr.f32.gmra.mxu0 %v1541
    %v1679 = vpop.f32.mrf.mxu0
    %v1680 = vadd.f32 %v531, %v1679
    %v1681 = vpop.f32.mrf.mxu0
    %v1682 = vadd.f32 %v535, %v1681
    %1683 = vdwg.mxu0
    %v1684 = vxor.u32 %v1609, 2147483648
    %v1685 = vmul.f32 %v1684, 1.442695
    %v1686 = vpow.pop %v1685
    %v1687 = vadd.f32 %v1686, 1.0
    %v1688 = vrcp.pop %v1687
    %v1689 = vmul.f32 1.0, %v1688
    %v1690 = vxor.u32 %v1611, 2147483648
    %v1691 = vmul.f32 %v1690, 1.442695
    %v1692 = vpow.pop %v1691
    %v1693 = vadd.f32 %v1692, 1.0
    %v1694 = vrcp.pop %v1693
    %v1695 = vmul.f32 1.0, %v1694
    %v1696 = vtanh.pop %v1680
    %v1697 = vxor.u32 %v1682, 2147483648
    %v1698 = vmul.f32 %v1697, 1.442695
    %v1699 = vpow.pop %v1698
    %v1700 = vadd.f32 %v1699, 1.0
    %v1701 = vrcp.pop %v1700
    %v1702 = vmul.f32 1.0, %v1701
    %v1703 = vmul.f32 %v1695, %v1371
    %v1704 = vmul.f32 %v1689, %v1696
    %v1705 = vadd.f32 %v1703, %v1704
    %v1706 = vtanh.pop %v1705
    %v1707 = vmul.f32 %v1702, %v1706
    %s1708 = scalar_lea.vmem %s0, 32
    %v1709 = vld [vmem:[%s1708] sm:$0xff]
    %1710 = vmatprep.subr.mxu0 %v137
    %1711 = vmatpush1.msra.mxu0 %v136
    %1712 = vmatprep.subr.mxu0 %v133
    %1713 = vmatpush1.msra.mxu0 %v132
    %1714 = vmatprep.subr.mxu0 %v129
    %1715 = vmatpush1.msra.mxu0 %v128
    %1716 = vmatprep.subr.mxu0 %v125
    %1717 = vmatpush1.msra.mxu0 %v124
    %1718 = vmatprep.subr.mxu0 %v121
    %1719 = vmatpush1.msra.mxu0 %v120
    %1720 = vmatprep.subr.mxu0 %v117
    %1721 = vmatpush1.msra.mxu0 %v116
    %1722 = vmatprep.subr.mxu0 %v113
    %1723 = vmatpush1.msra.mxu0 %v112
    %1724 = vmatprep.subr.mxu0 %v109
    %1725 = vmatpush1.msra.mxu0 %v108
    %1726 = vmatprep.subr.mxu0 %v105
    %1727 = vmatpush1.msra.mxu0 %v104
    %1728 = vmatprep.subr.mxu0 %v101
    %1729 = vmatpush1.msra.mxu0 %v100
    %1730 = vmatprep.subr.mxu0 %v97
    %1731 = vmatpush1.msra.mxu0 %v96
    %1732 = vmatprep.subr.mxu0 %v93
    %1733 = vmatpush1.msra.mxu0 %v92
    %1734 = vmatprep.subr.mxu0 %v89
    %1735 = vmatpush1.msra.mxu0 %v88
    %1736 = vmatprep.subr.mxu0 %v85
    %1737 = vmatpush1.msra.mxu0 %v84
    %1738 = vmatprep.subr.mxu0 %v81
    %1739 = vmatpush1.msra.mxu0 %v80
    %1740 = vmatprep.subr.mxu0 %v77
    %1741 = vmatpush1.msra.mxu0 %v76
    %1742 = vmatprep.subr.mxu0 %v201
    %1743 = vmatpush2.msra.mxu0 %v200
    %1744 = vmatprep.subr.mxu0 %v197
    %1745 = vmatpush2.msra.mxu0 %v196
    %1746 = vmatprep.subr.mxu0 %v193
    %1747 = vmatpush2.msra.mxu0 %v192
    %1748 = vmatprep.subr.mxu0 %v189
    %1749 = vmatpush2.msra.mxu0 %v188
    %1750 = vmatprep.subr.mxu0 %v185
    %1751 = vmatpush2.msra.mxu0 %v184
    %1752 = vmatprep.subr.mxu0 %v181
    %1753 = vmatpush2.msra.mxu0 %v180
    %1754 = vmatprep.subr.mxu0 %v177
    %1755 = vmatpush2.msra.mxu0 %v176
    %1756 = vmatprep.subr.mxu0 %v173
    %1757 = vmatpush2.msra.mxu0 %v172
    %1758 = vmatprep.subr.mxu0 %v169
    %1759 = vmatpush2.msra.mxu0 %v168
    %1760 = vmatprep.subr.mxu0 %v165
    %1761 = vmatpush2.msra.mxu0 %v164
    %1762 = vmatprep.subr.mxu0 %v161
    %1763 = vmatpush2.msra.mxu0 %v160
    %1764 = vmatprep.subr.mxu0 %v157
    %1765 = vmatpush2.msra.mxu0 %v156
    %1766 = vmatprep.subr.mxu0 %v153
    %1767 = vmatpush2.msra.mxu0 %v152
    %1768 = vmatprep.subr.mxu0 %v149
    %1769 = vmatpush2.msra.mxu0 %v148
    %1770 = vmatprep.subr.mxu0 %v145
    %1771 = vmatpush2.msra.mxu0 %v144
    %1772 = vmatprep.subr.mxu0 %v141
    %1773 = vmatpush2.msra.mxu0 %v140
    %1774 = vmatprep.mubr.f32.mxu0 %v1541
    %1775 = vmatmul.mubr.f32.gmra.mxu0 %v1709
    %v1776 = vpop.f32.mrf.mxu0
    %v1777 = vadd.f32 %v208, %v1776
    %v1778 = vpop.f32.mrf.mxu0
    %v1779 = vadd.f32 %v212, %v1778
    %1780 = vdwg.mxu0
    %1781 = vmatprep.subr.mxu0 %v139
    %1782 = vmatpush1.msra.mxu0 %v138
    %1783 = vmatprep.subr.mxu0 %v135
    %1784 = vmatpush1.msra.mxu0 %v134
    %1785 = vmatprep.subr.mxu0 %v131
    %1786 = vmatpush1.msra.mxu0 %v130
    %1787 = vmatprep.subr.mxu0 %v127
    %1788 = vmatpush1.msra.mxu0 %v126
    %1789 = vmatprep.subr.mxu0 %v123
    %1790 = vmatpush1.msra.mxu0 %v122
    %1791 = vmatprep.subr.mxu0 %v119
    %1792 = vmatpush1.msra.mxu0 %v118
    %1793 = vmatprep.subr.mxu0 %v115
    %1794 = vmatpush1.msra.mxu0 %v114
    %1795 = vmatprep.subr.mxu0 %v111
    %1796 = vmatpush1.msra.mxu0 %v110
    %1797 = vmatprep.subr.mxu0 %v107
    %1798 = vmatpush1.msra.mxu0 %v106
    %1799 = vmatprep.subr.mxu0 %v103
    %1800 = vmatpush1.msra.mxu0 %v102
    %1801 = vmatprep.subr.mxu0 %v99
    %1802 = vmatpush1.msra.mxu0 %v98
    %1803 = vmatprep.subr.mxu0 %v95
    %1804 = vmatpush1.msra.mxu0 %v94
    %1805 = vmatprep.subr.mxu0 %v91
    %1806 = vmatpush1.msra.mxu0 %v90
    %1807 = vmatprep.subr.mxu0 %v87
    %1808 = vmatpush1.msra.mxu0 %v86
    %1809 = vmatprep.subr.mxu0 %v83
    %1810 = vmatpush1.msra.mxu0 %v82
    %1811 = vmatprep.subr.mxu0 %v79
    %1812 = vmatpush1.msra.mxu0 %v78
    %1813 = vmatprep.subr.mxu0 %v203
    %1814 = vmatpush2.msra.mxu0 %v202
    %1815 = vmatprep.subr.mxu0 %v199
    %1816 = vmatpush2.msra.mxu0 %v198
    %1817 = vmatprep.subr.mxu0 %v195
    %1818 = vmatpush2.msra.mxu0 %v194
    %1819 = vmatprep.subr.mxu0 %v191
    %1820 = vmatpush2.msra.mxu0 %v190
    %1821 = vmatprep.subr.mxu0 %v187
    %1822 = vmatpush2.msra.mxu0 %v186
    %1823 = vmatprep.subr.mxu0 %v183
    %1824 = vmatpush2.msra.mxu0 %v182
    %1825 = vmatprep.subr.mxu0 %v179
    %1826 = vmatpush2.msra.mxu0 %v178
    %1827 = vmatprep.subr.mxu0 %v175
    %1828 = vmatpush2.msra.mxu0 %v174
    %1829 = vmatprep.subr.mxu0 %v171
    %1830 = vmatpush2.msra.mxu0 %v170
    %1831 = vmatprep.subr.mxu0 %v167
    %1832 = vmatpush2.msra.mxu0 %v166
    %1833 = vmatprep.subr.mxu0 %v163
    %1834 = vmatpush2.msra.mxu0 %v162
    %1835 = vmatprep.subr.mxu0 %v159
    %1836 = vmatpush2.msra.mxu0 %v158
    %1837 = vmatprep.subr.mxu0 %v155
    %1838 = vmatpush2.msra.mxu0 %v154
    %1839 = vmatprep.subr.mxu0 %v151
    %1840 = vmatpush2.msra.mxu0 %v150
    %1841 = vmatprep.subr.mxu0 %v147
    %1842 = vmatpush2.msra.mxu0 %v146
    %1843 = vmatprep.subr.mxu0 %v143
    %1844 = vmatpush2.msra.mxu0 %v142
    %1845 = vmatprep.mubr.f32.mxu0 %v1541
    %1846 = vmatmul.mubr.f32.gmra.mxu0 %v1709
    %v1847 = vpop.f32.mrf.mxu0
    %v1848 = vadd.f32 %v216, %v1847
    %v1849 = vpop.f32.mrf.mxu0
    %v1850 = vadd.f32 %v220, %v1849
    %1851 = vdwg.mxu0
    %v1852 = vxor.u32 %v1777, 2147483648
    %v1853 = vmul.f32 %v1852, 1.442695
    %v1854 = vpow.pop %v1853
    %v1855 = vadd.f32 %v1854, 1.0
    %v1856 = vrcp.pop %v1855
    %v1857 = vmul.f32 1.0, %v1856
    %v1858 = vxor.u32 %v1779, 2147483648
    %v1859 = vmul.f32 %v1858, 1.442695
    %v1860 = vpow.pop %v1859
    %v1861 = vadd.f32 %v1860, 1.0
    %v1862 = vrcp.pop %v1861
    %v1863 = vmul.f32 1.0, %v1862
    %v1864 = vtanh.pop %v1848
    %v1865 = vxor.u32 %v1850, 2147483648
    %v1866 = vmul.f32 %v1865, 1.442695
    %v1867 = vpow.pop %v1866
    %v1868 = vadd.f32 %v1867, 1.0
    %v1869 = vrcp.pop %v1868
    %v1870 = vmul.f32 1.0, %v1869
    %v1871 = vmul.f32 %v1863, %v1539
    %v1872 = vmul.f32 %v1857, %v1864
    %v1873 = vadd.f32 %v1871, %v1872
    %v1874 = vtanh.pop %v1873
    %v1875 = vmul.f32 %v1870, %v1874
    %1876 = vmatprep.subr.mxu0 %v452
    %1877 = vmatpush1.msra.mxu0 %v451
    %1878 = vmatprep.subr.mxu0 %v448
    %1879 = vmatpush1.msra.mxu0 %v447
    %1880 = vmatprep.subr.mxu0 %v444
    %1881 = vmatpush1.msra.mxu0 %v443
    %1882 = vmatprep.subr.mxu0 %v440
    %1883 = vmatpush1.msra.mxu0 %v439
    %1884 = vmatprep.subr.mxu0 %v436
    %1885 = vmatpush1.msra.mxu0 %v435
    %1886 = vmatprep.subr.mxu0 %v432
    %1887 = vmatpush1.msra.mxu0 %v431
    %1888 = vmatprep.subr.mxu0 %v428
    %1889 = vmatpush1.msra.mxu0 %v427
    %1890 = vmatprep.subr.mxu0 %v424
    %1891 = vmatpush1.msra.mxu0 %v423
    %1892 = vmatprep.subr.mxu0 %v420
    %1893 = vmatpush1.msra.mxu0 %v419
    %1894 = vmatprep.subr.mxu0 %v416
    %1895 = vmatpush1.msra.mxu0 %v415
    %1896 = vmatprep.subr.mxu0 %v412
    %1897 = vmatpush1.msra.mxu0 %v411
    %1898 = vmatprep.subr.mxu0 %v408
    %1899 = vmatpush1.msra.mxu0 %v407
    %1900 = vmatprep.subr.mxu0 %v404
    %1901 = vmatpush1.msra.mxu0 %v403
    %1902 = vmatprep.subr.mxu0 %v400
    %1903 = vmatpush1.msra.mxu0 %v399
    %1904 = vmatprep.subr.mxu0 %v396
    %1905 = vmatpush1.msra.mxu0 %v395
    %1906 = vmatprep.subr.mxu0 %v392
    %1907 = vmatpush1.msra.mxu0 %v391
    %1908 = vmatprep.subr.mxu0 %v516
    %1909 = vmatpush2.msra.mxu0 %v515
    %1910 = vmatprep.subr.mxu0 %v512
    %1911 = vmatpush2.msra.mxu0 %v511
    %1912 = vmatprep.subr.mxu0 %v508
    %1913 = vmatpush2.msra.mxu0 %v507
    %1914 = vmatprep.subr.mxu0 %v504
    %1915 = vmatpush2.msra.mxu0 %v503
    %1916 = vmatprep.subr.mxu0 %v500
    %1917 = vmatpush2.msra.mxu0 %v499
    %1918 = vmatprep.subr.mxu0 %v496
    %1919 = vmatpush2.msra.mxu0 %v495
    %1920 = vmatprep.subr.mxu0 %v492
    %1921 = vmatpush2.msra.mxu0 %v491
    %1922 = vmatprep.subr.mxu0 %v488
    %1923 = vmatpush2.msra.mxu0 %v487
    %1924 = vmatprep.subr.mxu0 %v484
    %1925 = vmatpush2.msra.mxu0 %v483
    %1926 = vmatprep.subr.mxu0 %v480
    %1927 = vmatpush2.msra.mxu0 %v479
    %1928 = vmatprep.subr.mxu0 %v476
    %1929 = vmatpush2.msra.mxu0 %v475
    %1930 = vmatprep.subr.mxu0 %v472
    %1931 = vmatpush2.msra.mxu0 %v471
    %1932 = vmatprep.subr.mxu0 %v468
    %1933 = vmatpush2.msra.mxu0 %v467
    %1934 = vmatprep.subr.mxu0 %v464
    %1935 = vmatpush2.msra.mxu0 %v463
    %1936 = vmatprep.subr.mxu0 %v460
    %1937 = vmatpush2.msra.mxu0 %v459
    %1938 = vmatprep.subr.mxu0 %v456
    %1939 = vmatpush2.msra.mxu0 %v455
    %1940 = vmatprep.mubr.f32.mxu0 %v1707
    %1941 = vmatmul.mubr.f32.gmra.mxu0 %v1875
    %v1942 = vpop.f32.mrf.mxu0
    %v1943 = vadd.f32 %v523, %v1942
    %v1944 = vpop.f32.mrf.mxu0
    %v1945 = vadd.f32 %v527, %v1944
    %1946 = vdwg.mxu0
    %1947 = vmatprep.subr.mxu0 %v454
    %1948 = vmatpush1.msra.mxu0 %v453
    %1949 = vmatprep.subr.mxu0 %v450
    %1950 = vmatpush1.msra.mxu0 %v449
    %1951 = vmatprep.subr.mxu0 %v446
    %1952 = vmatpush1.msra.mxu0 %v445
    %1953 = vmatprep.subr.mxu0 %v442
    %1954 = vmatpush1.msra.mxu0 %v441
    %1955 = vmatprep.subr.mxu0 %v438
    %1956 = vmatpush1.msra.mxu0 %v437
    %1957 = vmatprep.subr.mxu0 %v434
    %1958 = vmatpush1.msra.mxu0 %v433
    %1959 = vmatprep.subr.mxu0 %v430
    %1960 = vmatpush1.msra.mxu0 %v429
    %1961 = vmatprep.subr.mxu0 %v426
    %1962 = vmatpush1.msra.mxu0 %v425
    %1963 = vmatprep.subr.mxu0 %v422
    %1964 = vmatpush1.msra.mxu0 %v421
    %1965 = vmatprep.subr.mxu0 %v418
    %1966 = vmatpush1.msra.mxu0 %v417
    %1967 = vmatprep.subr.mxu0 %v414
    %1968 = vmatpush1.msra.mxu0 %v413
    %1969 = vmatprep.subr.mxu0 %v410
    %1970 = vmatpush1.msra.mxu0 %v409
    %1971 = vmatprep.subr.mxu0 %v406
    %1972 = vmatpush1.msra.mxu0 %v405
    %1973 = vmatprep.subr.mxu0 %v402
    %1974 = vmatpush1.msra.mxu0 %v401
    %1975 = vmatprep.subr.mxu0 %v398
    %1976 = vmatpush1.msra.mxu0 %v397
    %1977 = vmatprep.subr.mxu0 %v394
    %1978 = vmatpush1.msra.mxu0 %v393
    %1979 = vmatprep.subr.mxu0 %v518
    %1980 = vmatpush2.msra.mxu0 %v517
    %1981 = vmatprep.subr.mxu0 %v514
    %1982 = vmatpush2.msra.mxu0 %v513
    %1983 = vmatprep.subr.mxu0 %v510
    %1984 = vmatpush2.msra.mxu0 %v509
    %1985 = vmatprep.subr.mxu0 %v506
    %1986 = vmatpush2.msra.mxu0 %v505
    %1987 = vmatprep.subr.mxu0 %v502
    %1988 = vmatpush2.msra.mxu0 %v501
    %1989 = vmatprep.subr.mxu0 %v498
    %1990 = vmatpush2.msra.mxu0 %v497
    %1991 = vmatprep.subr.mxu0 %v494
    %1992 = vmatpush2.msra.mxu0 %v493
    %1993 = vmatprep.subr.mxu0 %v490
    %1994 = vmatpush2.msra.mxu0 %v489
    %1995 = vmatprep.subr.mxu0 %v486
    %1996 = vmatpush2.msra.mxu0 %v485
    %1997 = vmatprep.subr.mxu0 %v482
    %1998 = vmatpush2.msra.mxu0 %v481
    %1999 = vmatprep.subr.mxu0 %v478
    %2000 = vmatpush2.msra.mxu0 %v477
    %2001 = vmatprep.subr.mxu0 %v474
    %2002 = vmatpush2.msra.mxu0 %v473
    %2003 = vmatprep.subr.mxu0 %v470
    %2004 = vmatpush2.msra.mxu0 %v469
    %2005 = vmatprep.subr.mxu0 %v466
    %2006 = vmatpush2.msra.mxu0 %v465
    %2007 = vmatprep.subr.mxu0 %v462
    %2008 = vmatpush2.msra.mxu0 %v461
    %2009 = vmatprep.subr.mxu0 %v458
    %2010 = vmatpush2.msra.mxu0 %v457
    %2011 = vmatprep.mubr.f32.mxu0 %v1707
    %2012 = vmatmul.mubr.f32.gmra.mxu0 %v1875
    %v2013 = vpop.f32.mrf.mxu0
    %v2014 = vadd.f32 %v531, %v2013
    %v2015 = vpop.f32.mrf.mxu0
    %v2016 = vadd.f32 %v535, %v2015
    %2017 = vdwg.mxu0
    %v2018 = vxor.u32 %v1943, 2147483648
    %v2019 = vmul.f32 %v2018, 1.442695
    %v2020 = vpow.pop %v2019
    %v2021 = vadd.f32 %v2020, 1.0
    %v2022 = vrcp.pop %v2021
    %v2023 = vmul.f32 1.0, %v2022
    %v2024 = vxor.u32 %v1945, 2147483648
    %v2025 = vmul.f32 %v2024, 1.442695
    %v2026 = vpow.pop %v2025
    %v2027 = vadd.f32 %v2026, 1.0
    %v2028 = vrcp.pop %v2027
    %v2029 = vmul.f32 1.0, %v2028
    %v2030 = vtanh.pop %v2014
    %v2031 = vxor.u32 %v2016, 2147483648
    %v2032 = vmul.f32 %v2031, 1.442695
    %v2033 = vpow.pop %v2032
    %v2034 = vadd.f32 %v2033, 1.0
    %v2035 = vrcp.pop %v2034
    %v2036 = vmul.f32 1.0, %v2035
    %v2037 = vmul.f32 %v2029, %v1705
    %v2038 = vmul.f32 %v2023, %v2030
    %v2039 = vadd.f32 %v2037, %v2038
    %v2040 = vtanh.pop %v2039
    %v2041 = vmul.f32 %v2036, %v2040
    %s2042 = scalar_lea.vmem %s0, 40
    %v2043 = vld [vmem:[%s2042] sm:$0xff]
    %2044 = vmatprep.subr.mxu0 %v137
    %2045 = vmatpush1.msra.mxu0 %v136
    %2046 = vmatprep.subr.mxu0 %v133
    %2047 = vmatpush1.msra.mxu0 %v132
    %2048 = vmatprep.subr.mxu0 %v129
    %2049 = vmatpush1.msra.mxu0 %v128
    %2050 = vmatprep.subr.mxu0 %v125
    %2051 = vmatpush1.msra.mxu0 %v124
    %2052 = vmatprep.subr.mxu0 %v121
    %2053 = vmatpush1.msra.mxu0 %v120
    %2054 = vmatprep.subr.mxu0 %v117
    %2055 = vmatpush1.msra.mxu0 %v116
    %2056 = vmatprep.subr.mxu0 %v113
    %2057 = vmatpush1.msra.mxu0 %v112
    %2058 = vmatprep.subr.mxu0 %v109
    %2059 = vmatpush1.msra.mxu0 %v108
    %2060 = vmatprep.subr.mxu0 %v105
    %2061 = vmatpush1.msra.mxu0 %v104
    %2062 = vmatprep.subr.mxu0 %v101
    %2063 = vmatpush1.msra.mxu0 %v100
    %2064 = vmatprep.subr.mxu0 %v97
    %2065 = vmatpush1.msra.mxu0 %v96
    %2066 = vmatprep.subr.mxu0 %v93
    %2067 = vmatpush1.msra.mxu0 %v92
    %2068 = vmatprep.subr.mxu0 %v89
    %2069 = vmatpush1.msra.mxu0 %v88
    %2070 = vmatprep.subr.mxu0 %v85
    %2071 = vmatpush1.msra.mxu0 %v84
    %2072 = vmatprep.subr.mxu0 %v81
    %2073 = vmatpush1.msra.mxu0 %v80
    %2074 = vmatprep.subr.mxu0 %v77
    %2075 = vmatpush1.msra.mxu0 %v76
    %2076 = vmatprep.subr.mxu0 %v201
    %2077 = vmatpush2.msra.mxu0 %v200
    %2078 = vmatprep.subr.mxu0 %v197
    %2079 = vmatpush2.msra.mxu0 %v196
    %2080 = vmatprep.subr.mxu0 %v193
    %2081 = vmatpush2.msra.mxu0 %v192
    %2082 = vmatprep.subr.mxu0 %v189
    %2083 = vmatpush2.msra.mxu0 %v188
    %2084 = vmatprep.subr.mxu0 %v185
    %2085 = vmatpush2.msra.mxu0 %v184
    %2086 = vmatprep.subr.mxu0 %v181
    %2087 = vmatpush2.msra.mxu0 %v180
    %2088 = vmatprep.subr.mxu0 %v177
    %2089 = vmatpush2.msra.mxu0 %v176
    %2090 = vmatprep.subr.mxu0 %v173
    %2091 = vmatpush2.msra.mxu0 %v172
    %2092 = vmatprep.subr.mxu0 %v169
    %2093 = vmatpush2.msra.mxu0 %v168
    %2094 = vmatprep.subr.mxu0 %v165
    %2095 = vmatpush2.msra.mxu0 %v164
    %2096 = vmatprep.subr.mxu0 %v161
    %2097 = vmatpush2.msra.mxu0 %v160
    %2098 = vmatprep.subr.mxu0 %v157
    %2099 = vmatpush2.msra.mxu0 %v156
    %2100 = vmatprep.subr.mxu0 %v153
    %2101 = vmatpush2.msra.mxu0 %v152
    %2102 = vmatprep.subr.mxu0 %v149
    %2103 = vmatpush2.msra.mxu0 %v148
    %2104 = vmatprep.subr.mxu0 %v145
    %2105 = vmatpush2.msra.mxu0 %v144
    %2106 = vmatprep.subr.mxu0 %v141
    %2107 = vmatpush2.msra.mxu0 %v140
    %2108 = vmatprep.mubr.f32.mxu0 %v1875
    %2109 = vmatmul.mubr.f32.gmra.mxu0 %v2043
    %v2110 = vpop.f32.mrf.mxu0
    %v2111 = vadd.f32 %v208, %v2110
    %v2112 = vpop.f32.mrf.mxu0
    %v2113 = vadd.f32 %v212, %v2112
    %2114 = vdwg.mxu0
    %2115 = vmatprep.subr.mxu0 %v139
    %2116 = vmatpush1.msra.mxu0 %v138
    %2117 = vmatprep.subr.mxu0 %v135
    %2118 = vmatpush1.msra.mxu0 %v134
    %2119 = vmatprep.subr.mxu0 %v131
    %2120 = vmatpush1.msra.mxu0 %v130
    %2121 = vmatprep.subr.mxu0 %v127
    %2122 = vmatpush1.msra.mxu0 %v126
    %2123 = vmatprep.subr.mxu0 %v123
    %2124 = vmatpush1.msra.mxu0 %v122
    %2125 = vmatprep.subr.mxu0 %v119
    %2126 = vmatpush1.msra.mxu0 %v118
    %2127 = vmatprep.subr.mxu0 %v115
    %2128 = vmatpush1.msra.mxu0 %v114
    %2129 = vmatprep.subr.mxu0 %v111
    %2130 = vmatpush1.msra.mxu0 %v110
    %2131 = vmatprep.subr.mxu0 %v107
    %2132 = vmatpush1.msra.mxu0 %v106
    %2133 = vmatprep.subr.mxu0 %v103
    %2134 = vmatpush1.msra.mxu0 %v102
    %2135 = vmatprep.subr.mxu0 %v99
    %2136 = vmatpush1.msra.mxu0 %v98
    %2137 = vmatprep.subr.mxu0 %v95
    %2138 = vmatpush1.msra.mxu0 %v94
    %2139 = vmatprep.subr.mxu0 %v91
    %2140 = vmatpush1.msra.mxu0 %v90
    %2141 = vmatprep.subr.mxu0 %v87
    %2142 = vmatpush1.msra.mxu0 %v86
    %2143 = vmatprep.subr.mxu0 %v83
    %2144 = vmatpush1.msra.mxu0 %v82
    %2145 = vmatprep.subr.mxu0 %v79
    %2146 = vmatpush1.msra.mxu0 %v78
    %2147 = vmatprep.subr.mxu0 %v203
    %2148 = vmatpush2.msra.mxu0 %v202
    %2149 = vmatprep.subr.mxu0 %v199
    %2150 = vmatpush2.msra.mxu0 %v198
    %2151 = vmatprep.subr.mxu0 %v195
    %2152 = vmatpush2.msra.mxu0 %v194
    %2153 = vmatprep.subr.mxu0 %v191
    %2154 = vmatpush2.msra.mxu0 %v190
    %2155 = vmatprep.subr.mxu0 %v187
    %2156 = vmatpush2.msra.mxu0 %v186
    %2157 = vmatprep.subr.mxu0 %v183
    %2158 = vmatpush2.msra.mxu0 %v182
    %2159 = vmatprep.subr.mxu0 %v179
    %2160 = vmatpush2.msra.mxu0 %v178
    %2161 = vmatprep.subr.mxu0 %v175
    %2162 = vmatpush2.msra.mxu0 %v174
    %2163 = vmatprep.subr.mxu0 %v171
    %2164 = vmatpush2.msra.mxu0 %v170
    %2165 = vmatprep.subr.mxu0 %v167
    %2166 = vmatpush2.msra.mxu0 %v166
    %2167 = vmatprep.subr.mxu0 %v163
    %2168 = vmatpush2.msra.mxu0 %v162
    %2169 = vmatprep.subr.mxu0 %v159
    %2170 = vmatpush2.msra.mxu0 %v158
    %2171 = vmatprep.subr.mxu0 %v155
    %2172 = vmatpush2.msra.mxu0 %v154
    %2173 = vmatprep.subr.mxu0 %v151
    %2174 = vmatpush2.msra.mxu0 %v150
    %2175 = vmatprep.subr.mxu0 %v147
    %2176 = vmatpush2.msra.mxu0 %v146
    %2177 = vmatprep.subr.mxu0 %v143
    %2178 = vmatpush2.msra.mxu0 %v142
    %2179 = vmatprep.mubr.f32.mxu0 %v1875
    %2180 = vmatmul.mubr.f32.gmra.mxu0 %v2043
    %v2181 = vpop.f32.mrf.mxu0
    %v2182 = vadd.f32 %v216, %v2181
    %v2183 = vpop.f32.mrf.mxu0
    %v2184 = vadd.f32 %v220, %v2183
    %2185 = vdwg.mxu0
    %v2186 = vxor.u32 %v2111, 2147483648
    %v2187 = vmul.f32 %v2186, 1.442695
    %v2188 = vpow.pop %v2187
    %v2189 = vadd.f32 %v2188, 1.0
    %v2190 = vrcp.pop %v2189
    %v2191 = vmul.f32 1.0, %v2190
    %v2192 = vxor.u32 %v2113, 2147483648
    %v2193 = vmul.f32 %v2192, 1.442695
    %v2194 = vpow.pop %v2193
    %v2195 = vadd.f32 %v2194, 1.0
    %v2196 = vrcp.pop %v2195
    %v2197 = vmul.f32 1.0, %v2196
    %v2198 = vtanh.pop %v2182
    %v2199 = vxor.u32 %v2184, 2147483648
    %v2200 = vmul.f32 %v2199, 1.442695
    %v2201 = vpow.pop %v2200
    %v2202 = vadd.f32 %v2201, 1.0
    %v2203 = vrcp.pop %v2202
    %v2204 = vmul.f32 1.0, %v2203
    %v2205 = vmul.f32 %v2197, %v1873
    %v2206 = vmul.f32 %v2191, %v2198
    %v2207 = vadd.f32 %v2205, %v2206
    %v2208 = vtanh.pop %v2207
    %v2209 = vmul.f32 %v2204, %v2208
    %2210 = vmatprep.subr.mxu0 %v452
    %2211 = vmatpush1.msra.mxu0 %v451
    %2212 = vmatprep.subr.mxu0 %v448
    %2213 = vmatpush1.msra.mxu0 %v447
    %2214 = vmatprep.subr.mxu0 %v444
    %2215 = vmatpush1.msra.mxu0 %v443
    %2216 = vmatprep.subr.mxu0 %v440
    %2217 = vmatpush1.msra.mxu0 %v439
    %2218 = vmatprep.subr.mxu0 %v436
    %2219 = vmatpush1.msra.mxu0 %v435
    %2220 = vmatprep.subr.mxu0 %v432
    %2221 = vmatpush1.msra.mxu0 %v431
    %2222 = vmatprep.subr.mxu0 %v428
    %2223 = vmatpush1.msra.mxu0 %v427
    %2224 = vmatprep.subr.mxu0 %v424
    %2225 = vmatpush1.msra.mxu0 %v423
    %2226 = vmatprep.subr.mxu0 %v420
    %2227 = vmatpush1.msra.mxu0 %v419
    %2228 = vmatprep.subr.mxu0 %v416
    %2229 = vmatpush1.msra.mxu0 %v415
    %2230 = vmatprep.subr.mxu0 %v412
    %2231 = vmatpush1.msra.mxu0 %v411
    %2232 = vmatprep.subr.mxu0 %v408
    %2233 = vmatpush1.msra.mxu0 %v407
    %2234 = vmatprep.subr.mxu0 %v404
    %2235 = vmatpush1.msra.mxu0 %v403
    %2236 = vmatprep.subr.mxu0 %v400
    %2237 = vmatpush1.msra.mxu0 %v399
    %2238 = vmatprep.subr.mxu0 %v396
    %2239 = vmatpush1.msra.mxu0 %v395
    %2240 = vmatprep.subr.mxu0 %v392
    %2241 = vmatpush1.msra.mxu0 %v391
    %2242 = vmatprep.subr.mxu0 %v516
    %2243 = vmatpush2.msra.mxu0 %v515
    %2244 = vmatprep.subr.mxu0 %v512
    %2245 = vmatpush2.msra.mxu0 %v511
    %2246 = vmatprep.subr.mxu0 %v508
    %2247 = vmatpush2.msra.mxu0 %v507
    %2248 = vmatprep.subr.mxu0 %v504
    %2249 = vmatpush2.msra.mxu0 %v503
    %2250 = vmatprep.subr.mxu0 %v500
    %2251 = vmatpush2.msra.mxu0 %v499
    %2252 = vmatprep.subr.mxu0 %v496
    %2253 = vmatpush2.msra.mxu0 %v495
    %2254 = vmatprep.subr.mxu0 %v492
    %2255 = vmatpush2.msra.mxu0 %v491
    %2256 = vmatprep.subr.mxu0 %v488
    %2257 = vmatpush2.msra.mxu0 %v487
    %2258 = vmatprep.subr.mxu0 %v484
    %2259 = vmatpush2.msra.mxu0 %v483
    %2260 = vmatprep.subr.mxu0 %v480
    %2261 = vmatpush2.msra.mxu0 %v479
    %2262 = vmatprep.subr.mxu0 %v476
    %2263 = vmatpush2.msra.mxu0 %v475
    %2264 = vmatprep.subr.mxu0 %v472
    %2265 = vmatpush2.msra.mxu0 %v471
    %2266 = vmatprep.subr.mxu0 %v468
    %2267 = vmatpush2.msra.mxu0 %v467
    %2268 = vmatprep.subr.mxu0 %v464
    %2269 = vmatpush2.msra.mxu0 %v463
    %2270 = vmatprep.subr.mxu0 %v460
    %2271 = vmatpush2.msra.mxu0 %v459
    %2272 = vmatprep.subr.mxu0 %v456
    %2273 = vmatpush2.msra.mxu0 %v455
    %2274 = vmatprep.mubr.f32.mxu0 %v2041
    %2275 = vmatmul.mubr.f32.gmra.mxu0 %v2209
    %v2276 = vpop.f32.mrf.mxu0
    %v2277 = vadd.f32 %v523, %v2276
    %v2278 = vpop.f32.mrf.mxu0
    %v2279 = vadd.f32 %v527, %v2278
    %2280 = vdwg.mxu0
    %2281 = vmatprep.subr.mxu0 %v454
    %2282 = vmatpush1.msra.mxu0 %v453
    %2283 = vmatprep.subr.mxu0 %v450
    %2284 = vmatpush1.msra.mxu0 %v449
    %2285 = vmatprep.subr.mxu0 %v446
    %2286 = vmatpush1.msra.mxu0 %v445
    %2287 = vmatprep.subr.mxu0 %v442
    %2288 = vmatpush1.msra.mxu0 %v441
    %2289 = vmatprep.subr.mxu0 %v438
    %2290 = vmatpush1.msra.mxu0 %v437
    %2291 = vmatprep.subr.mxu0 %v434
    %2292 = vmatpush1.msra.mxu0 %v433
    %2293 = vmatprep.subr.mxu0 %v430
    %2294 = vmatpush1.msra.mxu0 %v429
    %2295 = vmatprep.subr.mxu0 %v426
    %2296 = vmatpush1.msra.mxu0 %v425
    %2297 = vmatprep.subr.mxu0 %v422
    %2298 = vmatpush1.msra.mxu0 %v421
    %2299 = vmatprep.subr.mxu0 %v418
    %2300 = vmatpush1.msra.mxu0 %v417
    %2301 = vmatprep.subr.mxu0 %v414
    %2302 = vmatpush1.msra.mxu0 %v413
    %2303 = vmatprep.subr.mxu0 %v410
    %2304 = vmatpush1.msra.mxu0 %v409
    %2305 = vmatprep.subr.mxu0 %v406
    %2306 = vmatpush1.msra.mxu0 %v405
    %2307 = vmatprep.subr.mxu0 %v402
    %2308 = vmatpush1.msra.mxu0 %v401
    %2309 = vmatprep.subr.mxu0 %v398
    %2310 = vmatpush1.msra.mxu0 %v397
    %2311 = vmatprep.subr.mxu0 %v394
    %2312 = vmatpush1.msra.mxu0 %v393
    %2313 = vmatprep.subr.mxu0 %v518
    %2314 = vmatpush2.msra.mxu0 %v517
    %2315 = vmatprep.subr.mxu0 %v514
    %2316 = vmatpush2.msra.mxu0 %v513
    %2317 = vmatprep.subr.mxu0 %v510
    %2318 = vmatpush2.msra.mxu0 %v509
    %2319 = vmatprep.subr.mxu0 %v506
    %2320 = vmatpush2.msra.mxu0 %v505
    %2321 = vmatprep.subr.mxu0 %v502
    %2322 = vmatpush2.msra.mxu0 %v501
    %2323 = vmatprep.subr.mxu0 %v498
    %2324 = vmatpush2.msra.mxu0 %v497
    %2325 = vmatprep.subr.mxu0 %v494
    %2326 = vmatpush2.msra.mxu0 %v493
    %2327 = vmatprep.subr.mxu0 %v490
    %2328 = vmatpush2.msra.mxu0 %v489
    %2329 = vmatprep.subr.mxu0 %v486
    %2330 = vmatpush2.msra.mxu0 %v485
    %2331 = vmatprep.subr.mxu0 %v482
    %2332 = vmatpush2.msra.mxu0 %v481
    %2333 = vmatprep.subr.mxu0 %v478
    %2334 = vmatpush2.msra.mxu0 %v477
    %2335 = vmatprep.subr.mxu0 %v474
    %2336 = vmatpush2.msra.mxu0 %v473
    %2337 = vmatprep.subr.mxu0 %v470
    %2338 = vmatpush2.msra.mxu0 %v469
    %2339 = vmatprep.subr.mxu0 %v466
    %2340 = vmatpush2.msra.mxu0 %v465
    %2341 = vmatprep.subr.mxu0 %v462
    %2342 = vmatpush2.msra.mxu0 %v461
    %2343 = vmatprep.subr.mxu0 %v458
    %2344 = vmatpush2.msra.mxu0 %v457
    %2345 = vmatprep.mubr.f32.mxu0 %v2041
    %2346 = vmatmul.mubr.f32.gmra.mxu0 %v2209
    %v2347 = vpop.f32.mrf.mxu0
    %v2348 = vadd.f32 %v531, %v2347
    %v2349 = vpop.f32.mrf.mxu0
    %v2350 = vadd.f32 %v535, %v2349
    %2351 = vdwg.mxu0
    %v2352 = vxor.u32 %v2277, 2147483648
    %v2353 = vmul.f32 %v2352, 1.442695
    %v2354 = vpow.pop %v2353
    %v2355 = vadd.f32 %v2354, 1.0
    %v2356 = vrcp.pop %v2355
    %v2357 = vmul.f32 1.0, %v2356
    %v2358 = vxor.u32 %v2279, 2147483648
    %v2359 = vmul.f32 %v2358, 1.442695
    %v2360 = vpow.pop %v2359
    %v2361 = vadd.f32 %v2360, 1.0
    %v2362 = vrcp.pop %v2361
    %v2363 = vmul.f32 1.0, %v2362
    %v2364 = vtanh.pop %v2348
    %v2365 = vxor.u32 %v2350, 2147483648
    %v2366 = vmul.f32 %v2365, 1.442695
    %v2367 = vpow.pop %v2366
    %v2368 = vadd.f32 %v2367, 1.0
    %v2369 = vrcp.pop %v2368
    %v2370 = vmul.f32 1.0, %v2369
    %v2371 = vmul.f32 %v2363, %v2039
    %v2372 = vmul.f32 %v2357, %v2364
    %v2373 = vadd.f32 %v2371, %v2372
    %v2374 = vtanh.pop %v2373
    %v2375 = vmul.f32 %v2370, %v2374
    %s2376 = scalar_lea.vmem %s0, 48
    %v2377 = vld [vmem:[%s2376] sm:$0xff]
    %2378 = vmatprep.subr.mxu0 %v137
    %2379 = vmatpush1.msra.mxu0 %v136
    %2380 = vmatprep.subr.mxu0 %v133
    %2381 = vmatpush1.msra.mxu0 %v132
    %2382 = vmatprep.subr.mxu0 %v129
    %2383 = vmatpush1.msra.mxu0 %v128
    %2384 = vmatprep.subr.mxu0 %v125
    %2385 = vmatpush1.msra.mxu0 %v124
    %2386 = vmatprep.subr.mxu0 %v121
    %2387 = vmatpush1.msra.mxu0 %v120
    %2388 = vmatprep.subr.mxu0 %v117
    %2389 = vmatpush1.msra.mxu0 %v116
    %2390 = vmatprep.subr.mxu0 %v113
    %2391 = vmatpush1.msra.mxu0 %v112
    %2392 = vmatprep.subr.mxu0 %v109
    %2393 = vmatpush1.msra.mxu0 %v108
    %2394 = vmatprep.subr.mxu0 %v105
    %2395 = vmatpush1.msra.mxu0 %v104
    %2396 = vmatprep.subr.mxu0 %v101
    %2397 = vmatpush1.msra.mxu0 %v100
    %2398 = vmatprep.subr.mxu0 %v97
    %2399 = vmatpush1.msra.mxu0 %v96
    %2400 = vmatprep.subr.mxu0 %v93
    %2401 = vmatpush1.msra.mxu0 %v92
    %2402 = vmatprep.subr.mxu0 %v89
    %2403 = vmatpush1.msra.mxu0 %v88
    %2404 = vmatprep.subr.mxu0 %v85
    %2405 = vmatpush1.msra.mxu0 %v84
    %2406 = vmatprep.subr.mxu0 %v81
    %2407 = vmatpush1.msra.mxu0 %v80
    %2408 = vmatprep.subr.mxu0 %v77
    %2409 = vmatpush1.msra.mxu0 %v76
    %2410 = vmatprep.subr.mxu0 %v201
    %2411 = vmatpush2.msra.mxu0 %v200
    %2412 = vmatprep.subr.mxu0 %v197
    %2413 = vmatpush2.msra.mxu0 %v196
    %2414 = vmatprep.subr.mxu0 %v193
    %2415 = vmatpush2.msra.mxu0 %v192
    %2416 = vmatprep.subr.mxu0 %v189
    %2417 = vmatpush2.msra.mxu0 %v188
    %2418 = vmatprep.subr.mxu0 %v185
    %2419 = vmatpush2.msra.mxu0 %v184
    %2420 = vmatprep.subr.mxu0 %v181
    %2421 = vmatpush2.msra.mxu0 %v180
    %2422 = vmatprep.subr.mxu0 %v177
    %2423 = vmatpush2.msra.mxu0 %v176
    %2424 = vmatprep.subr.mxu0 %v173
    %2425 = vmatpush2.msra.mxu0 %v172
    %2426 = vmatprep.subr.mxu0 %v169
    %2427 = vmatpush2.msra.mxu0 %v168
    %2428 = vmatprep.subr.mxu0 %v165
    %2429 = vmatpush2.msra.mxu0 %v164
    %2430 = vmatprep.subr.mxu0 %v161
    %2431 = vmatpush2.msra.mxu0 %v160
    %2432 = vmatprep.subr.mxu0 %v157
    %2433 = vmatpush2.msra.mxu0 %v156
    %2434 = vmatprep.subr.mxu0 %v153
    %2435 = vmatpush2.msra.mxu0 %v152
    %2436 = vmatprep.subr.mxu0 %v149
    %2437 = vmatpush2.msra.mxu0 %v148
    %2438 = vmatprep.subr.mxu0 %v145
    %2439 = vmatpush2.msra.mxu0 %v144
    %2440 = vmatprep.subr.mxu0 %v141
    %2441 = vmatpush2.msra.mxu0 %v140
    %2442 = vmatprep.mubr.f32.mxu0 %v2209
    %2443 = vmatmul.mubr.f32.gmra.mxu0 %v2377
    %v2444 = vpop.f32.mrf.mxu0
    %v2445 = vadd.f32 %v208, %v2444
    %v2446 = vpop.f32.mrf.mxu0
    %v2447 = vadd.f32 %v212, %v2446
    %2448 = vdwg.mxu0
    %2449 = vmatprep.subr.mxu0 %v139
    %2450 = vmatpush1.msra.mxu0 %v138
    %2451 = vmatprep.subr.mxu0 %v135
    %2452 = vmatpush1.msra.mxu0 %v134
    %2453 = vmatprep.subr.mxu0 %v131
    %2454 = vmatpush1.msra.mxu0 %v130
    %2455 = vmatprep.subr.mxu0 %v127
    %2456 = vmatpush1.msra.mxu0 %v126
    %2457 = vmatprep.subr.mxu0 %v123
    %2458 = vmatpush1.msra.mxu0 %v122
    %2459 = vmatprep.subr.mxu0 %v119
    %2460 = vmatpush1.msra.mxu0 %v118
    %2461 = vmatprep.subr.mxu0 %v115
    %2462 = vmatpush1.msra.mxu0 %v114
    %2463 = vmatprep.subr.mxu0 %v111
    %2464 = vmatpush1.msra.mxu0 %v110
    %2465 = vmatprep.subr.mxu0 %v107
    %2466 = vmatpush1.msra.mxu0 %v106
    %2467 = vmatprep.subr.mxu0 %v103
    %2468 = vmatpush1.msra.mxu0 %v102
    %2469 = vmatprep.subr.mxu0 %v99
    %2470 = vmatpush1.msra.mxu0 %v98
    %2471 = vmatprep.subr.mxu0 %v95
    %2472 = vmatpush1.msra.mxu0 %v94
    %2473 = vmatprep.subr.mxu0 %v91
    %2474 = vmatpush1.msra.mxu0 %v90
    %2475 = vmatprep.subr.mxu0 %v87
    %2476 = vmatpush1.msra.mxu0 %v86
    %2477 = vmatprep.subr.mxu0 %v83
    %2478 = vmatpush1.msra.mxu0 %v82
    %2479 = vmatprep.subr.mxu0 %v79
    %2480 = vmatpush1.msra.mxu0 %v78
    %2481 = vmatprep.subr.mxu0 %v203
    %2482 = vmatpush2.msra.mxu0 %v202
    %2483 = vmatprep.subr.mxu0 %v199
    %2484 = vmatpush2.msra.mxu0 %v198
    %2485 = vmatprep.subr.mxu0 %v195
    %2486 = vmatpush2.msra.mxu0 %v194
    %2487 = vmatprep.subr.mxu0 %v191
    %2488 = vmatpush2.msra.mxu0 %v190
    %2489 = vmatprep.subr.mxu0 %v187
    %2490 = vmatpush2.msra.mxu0 %v186
    %2491 = vmatprep.subr.mxu0 %v183
    %2492 = vmatpush2.msra.mxu0 %v182
    %2493 = vmatprep.subr.mxu0 %v179
    %2494 = vmatpush2.msra.mxu0 %v178
    %2495 = vmatprep.subr.mxu0 %v175
    %2496 = vmatpush2.msra.mxu0 %v174
    %2497 = vmatprep.subr.mxu0 %v171
    %2498 = vmatpush2.msra.mxu0 %v170
    %2499 = vmatprep.subr.mxu0 %v167
    %2500 = vmatpush2.msra.mxu0 %v166
    %2501 = vmatprep.subr.mxu0 %v163
    %2502 = vmatpush2.msra.mxu0 %v162
    %2503 = vmatprep.subr.mxu0 %v159
    %2504 = vmatpush2.msra.mxu0 %v158
    %2505 = vmatprep.subr.mxu0 %v155
    %2506 = vmatpush2.msra.mxu0 %v154
    %2507 = vmatprep.subr.mxu0 %v151
    %2508 = vmatpush2.msra.mxu0 %v150
    %2509 = vmatprep.subr.mxu0 %v147
    %2510 = vmatpush2.msra.mxu0 %v146
    %2511 = vmatprep.subr.mxu0 %v143
    %2512 = vmatpush2.msra.mxu0 %v142
    %2513 = vmatprep.mubr.f32.mxu0 %v2209
    %2514 = vmatmul.mubr.f32.gmra.mxu0 %v2377
    %v2515 = vpop.f32.mrf.mxu0
    %v2516 = vadd.f32 %v216, %v2515
    %v2517 = vpop.f32.mrf.mxu0
    %v2518 = vadd.f32 %v220, %v2517
    %2519 = vdwg.mxu0
    %v2520 = vxor.u32 %v2445, 2147483648
    %v2521 = vmul.f32 %v2520, 1.442695
    %v2522 = vpow.pop %v2521
    %v2523 = vadd.f32 %v2522, 1.0
    %v2524 = vrcp.pop %v2523
    %v2525 = vmul.f32 1.0, %v2524
    %v2526 = vxor.u32 %v2447, 2147483648
    %v2527 = vmul.f32 %v2526, 1.442695
    %v2528 = vpow.pop %v2527
    %v2529 = vadd.f32 %v2528, 1.0
    %v2530 = vrcp.pop %v2529
    %v2531 = vmul.f32 1.0, %v2530
    %v2532 = vtanh.pop %v2516
    %v2533 = vxor.u32 %v2518, 2147483648
    %v2534 = vmul.f32 %v2533, 1.442695
    %v2535 = vpow.pop %v2534
    %v2536 = vadd.f32 %v2535, 1.0
    %v2537 = vrcp.pop %v2536
    %v2538 = vmul.f32 1.0, %v2537
    %v2539 = vmul.f32 %v2531, %v2207
    %v2540 = vmul.f32 %v2525, %v2532
    %v2541 = vadd.f32 %v2539, %v2540
    %v2542 = vtanh.pop %v2541
    %v2543 = vmul.f32 %v2538, %v2542
    %2544 = vmatprep.subr.mxu0 %v452
    %2545 = vmatpush1.msra.mxu0 %v451
    %2546 = vmatprep.subr.mxu0 %v448
    %2547 = vmatpush1.msra.mxu0 %v447
    %2548 = vmatprep.subr.mxu0 %v444
    %2549 = vmatpush1.msra.mxu0 %v443
    %2550 = vmatprep.subr.mxu0 %v440
    %2551 = vmatpush1.msra.mxu0 %v439
    %2552 = vmatprep.subr.mxu0 %v436
    %2553 = vmatpush1.msra.mxu0 %v435
    %2554 = vmatprep.subr.mxu0 %v432
    %2555 = vmatpush1.msra.mxu0 %v431
    %2556 = vmatprep.subr.mxu0 %v428
    %2557 = vmatpush1.msra.mxu0 %v427
    %2558 = vmatprep.subr.mxu0 %v424
    %2559 = vmatpush1.msra.mxu0 %v423
    %2560 = vmatprep.subr.mxu0 %v420
    %2561 = vmatpush1.msra.mxu0 %v419
    %2562 = vmatprep.subr.mxu0 %v416
    %2563 = vmatpush1.msra.mxu0 %v415
    %2564 = vmatprep.subr.mxu0 %v412
    %2565 = vmatpush1.msra.mxu0 %v411
    %2566 = vmatprep.subr.mxu0 %v408
    %2567 = vmatpush1.msra.mxu0 %v407
    %2568 = vmatprep.subr.mxu0 %v404
    %2569 = vmatpush1.msra.mxu0 %v403
    %2570 = vmatprep.subr.mxu0 %v400
    %2571 = vmatpush1.msra.mxu0 %v399
    %2572 = vmatprep.subr.mxu0 %v396
    %2573 = vmatpush1.msra.mxu0 %v395
    %2574 = vmatprep.subr.mxu0 %v392
    %2575 = vmatpush1.msra.mxu0 %v391
    %2576 = vmatprep.subr.mxu0 %v516
    %2577 = vmatpush2.msra.mxu0 %v515
    %2578 = vmatprep.subr.mxu0 %v512
    %2579 = vmatpush2.msra.mxu0 %v511
    %2580 = vmatprep.subr.mxu0 %v508
    %2581 = vmatpush2.msra.mxu0 %v507
    %2582 = vmatprep.subr.mxu0 %v504
    %2583 = vmatpush2.msra.mxu0 %v503
    %2584 = vmatprep.subr.mxu0 %v500
    %2585 = vmatpush2.msra.mxu0 %v499
    %2586 = vmatprep.subr.mxu0 %v496
    %2587 = vmatpush2.msra.mxu0 %v495
    %2588 = vmatprep.subr.mxu0 %v492
    %2589 = vmatpush2.msra.mxu0 %v491
    %2590 = vmatprep.subr.mxu0 %v488
    %2591 = vmatpush2.msra.mxu0 %v487
    %2592 = vmatprep.subr.mxu0 %v484
    %2593 = vmatpush2.msra.mxu0 %v483
    %2594 = vmatprep.subr.mxu0 %v480
    %2595 = vmatpush2.msra.mxu0 %v479
    %2596 = vmatprep.subr.mxu0 %v476
    %2597 = vmatpush2.msra.mxu0 %v475
    %2598 = vmatprep.subr.mxu0 %v472
    %2599 = vmatpush2.msra.mxu0 %v471
    %2600 = vmatprep.subr.mxu0 %v468
    %2601 = vmatpush2.msra.mxu0 %v467
    %2602 = vmatprep.subr.mxu0 %v464
    %2603 = vmatpush2.msra.mxu0 %v463
    %2604 = vmatprep.subr.mxu0 %v460
    %2605 = vmatpush2.msra.mxu0 %v459
    %2606 = vmatprep.subr.mxu0 %v456
    %2607 = vmatpush2.msra.mxu0 %v455
    %2608 = vmatprep.mubr.f32.mxu0 %v2375
    %2609 = vmatmul.mubr.f32.gmra.mxu0 %v2543
    %v2610 = vpop.f32.mrf.mxu0
    %v2611 = vadd.f32 %v523, %v2610
    %v2612 = vpop.f32.mrf.mxu0
    %v2613 = vadd.f32 %v527, %v2612
    %2614 = vdwg.mxu0
    %2615 = vmatprep.subr.mxu0 %v454
    %2616 = vmatpush1.msra.mxu0 %v453
    %2617 = vmatprep.subr.mxu0 %v450
    %2618 = vmatpush1.msra.mxu0 %v449
    %2619 = vmatprep.subr.mxu0 %v446
    %2620 = vmatpush1.msra.mxu0 %v445
    %2621 = vmatprep.subr.mxu0 %v442
    %2622 = vmatpush1.msra.mxu0 %v441
    %2623 = vmatprep.subr.mxu0 %v438
    %2624 = vmatpush1.msra.mxu0 %v437
    %2625 = vmatprep.subr.mxu0 %v434
    %2626 = vmatpush1.msra.mxu0 %v433
    %2627 = vmatprep.subr.mxu0 %v430
    %2628 = vmatpush1.msra.mxu0 %v429
    %2629 = vmatprep.subr.mxu0 %v426
    %2630 = vmatpush1.msra.mxu0 %v425
    %2631 = vmatprep.subr.mxu0 %v422
    %2632 = vmatpush1.msra.mxu0 %v421
    %2633 = vmatprep.subr.mxu0 %v418
    %2634 = vmatpush1.msra.mxu0 %v417
    %2635 = vmatprep.subr.mxu0 %v414
    %2636 = vmatpush1.msra.mxu0 %v413
    %2637 = vmatprep.subr.mxu0 %v410
    %2638 = vmatpush1.msra.mxu0 %v409
    %2639 = vmatprep.subr.mxu0 %v406
    %2640 = vmatpush1.msra.mxu0 %v405
    %2641 = vmatprep.subr.mxu0 %v402
    %2642 = vmatpush1.msra.mxu0 %v401
    %2643 = vmatprep.subr.mxu0 %v398
    %2644 = vmatpush1.msra.mxu0 %v397
    %2645 = vmatprep.subr.mxu0 %v394
    %2646 = vmatpush1.msra.mxu0 %v393
    %2647 = vmatprep.subr.mxu0 %v518
    %2648 = vmatpush2.msra.mxu0 %v517
    %2649 = vmatprep.subr.mxu0 %v514
    %2650 = vmatpush2.msra.mxu0 %v513
    %2651 = vmatprep.subr.mxu0 %v510
    %2652 = vmatpush2.msra.mxu0 %v509
    %2653 = vmatprep.subr.mxu0 %v506
    %2654 = vmatpush2.msra.mxu0 %v505
    %2655 = vmatprep.subr.mxu0 %v502
    %2656 = vmatpush2.msra.mxu0 %v501
    %2657 = vmatprep.subr.mxu0 %v498
    %2658 = vmatpush2.msra.mxu0 %v497
    %2659 = vmatprep.subr.mxu0 %v494
    %2660 = vmatpush2.msra.mxu0 %v493
    %2661 = vmatprep.subr.mxu0 %v490
    %2662 = vmatpush2.msra.mxu0 %v489
    %2663 = vmatprep.subr.mxu0 %v486
    %2664 = vmatpush2.msra.mxu0 %v485
    %2665 = vmatprep.subr.mxu0 %v482
    %2666 = vmatpush2.msra.mxu0 %v481
    %2667 = vmatprep.subr.mxu0 %v478
    %2668 = vmatpush2.msra.mxu0 %v477
    %2669 = vmatprep.subr.mxu0 %v474
    %2670 = vmatpush2.msra.mxu0 %v473
    %2671 = vmatprep.subr.mxu0 %v470
    %2672 = vmatpush2.msra.mxu0 %v469
    %2673 = vmatprep.subr.mxu0 %v466
    %2674 = vmatpush2.msra.mxu0 %v465
    %2675 = vmatprep.subr.mxu0 %v462
    %2676 = vmatpush2.msra.mxu0 %v461
    %2677 = vmatprep.subr.mxu0 %v458
    %2678 = vmatpush2.msra.mxu0 %v457
    %2679 = vmatprep.mubr.f32.mxu0 %v2375
    %2680 = vmatmul.mubr.f32.gmra.mxu0 %v2543
    %v2681 = vpop.f32.mrf.mxu0
    %v2682 = vadd.f32 %v531, %v2681
    %v2683 = vpop.f32.mrf.mxu0
    %v2684 = vadd.f32 %v535, %v2683
    %2685 = vdwg.mxu0
    %v2686 = vxor.u32 %v2611, 2147483648
    %v2687 = vmul.f32 %v2686, 1.442695
    %v2688 = vpow.pop %v2687
    %v2689 = vadd.f32 %v2688, 1.0
    %v2690 = vrcp.pop %v2689
    %v2691 = vmul.f32 1.0, %v2690
    %v2692 = vxor.u32 %v2613, 2147483648
    %v2693 = vmul.f32 %v2692, 1.442695
    %v2694 = vpow.pop %v2693
    %v2695 = vadd.f32 %v2694, 1.0
    %v2696 = vrcp.pop %v2695
    %v2697 = vmul.f32 1.0, %v2696
    %v2698 = vtanh.pop %v2682
    %v2699 = vxor.u32 %v2684, 2147483648
    %v2700 = vmul.f32 %v2699, 1.442695
    %v2701 = vpow.pop %v2700
    %v2702 = vadd.f32 %v2701, 1.0
    %v2703 = vrcp.pop %v2702
    %v2704 = vmul.f32 1.0, %v2703
    %v2705 = vmul.f32 %v2697, %v2373
    %v2706 = vmul.f32 %v2691, %v2698
    %v2707 = vadd.f32 %v2705, %v2706
    %v2708 = vtanh.pop %v2707
    %v2709 = vmul.f32 %v2704, %v2708
    %s2710 = scalar_lea.vmem %s0, 56
    %v2711 = vld [vmem:[%s2710] sm:$0xff]
    %2712 = vmatprep.subr.mxu0 %v137
    %2713 = vmatpush1.msra.mxu0 %v136
    %2714 = vmatprep.subr.mxu0 %v133
    %2715 = vmatpush1.msra.mxu0 %v132
    %2716 = vmatprep.subr.mxu0 %v129
    %2717 = vmatpush1.msra.mxu0 %v128
    %2718 = vmatprep.subr.mxu0 %v125
    %2719 = vmatpush1.msra.mxu0 %v124
    %2720 = vmatprep.subr.mxu0 %v121
    %2721 = vmatpush1.msra.mxu0 %v120
    %2722 = vmatprep.subr.mxu0 %v117
    %2723 = vmatpush1.msra.mxu0 %v116
    %2724 = vmatprep.subr.mxu0 %v113
    %2725 = vmatpush1.msra.mxu0 %v112
    %2726 = vmatprep.subr.mxu0 %v109
    %2727 = vmatpush1.msra.mxu0 %v108
    %2728 = vmatprep.subr.mxu0 %v105
    %2729 = vmatpush1.msra.mxu0 %v104
    %2730 = vmatprep.subr.mxu0 %v101
    %2731 = vmatpush1.msra.mxu0 %v100
    %2732 = vmatprep.subr.mxu0 %v97
    %2733 = vmatpush1.msra.mxu0 %v96
    %2734 = vmatprep.subr.mxu0 %v93
    %2735 = vmatpush1.msra.mxu0 %v92
    %2736 = vmatprep.subr.mxu0 %v89
    %2737 = vmatpush1.msra.mxu0 %v88
    %2738 = vmatprep.subr.mxu0 %v85
    %2739 = vmatpush1.msra.mxu0 %v84
    %2740 = vmatprep.subr.mxu0 %v81
    %2741 = vmatpush1.msra.mxu0 %v80
    %2742 = vmatprep.subr.mxu0 %v77
    %2743 = vmatpush1.msra.mxu0 %v76
    %2744 = vmatprep.subr.mxu0 %v201
    %2745 = vmatpush2.msra.mxu0 %v200
    %2746 = vmatprep.subr.mxu0 %v197
    %2747 = vmatpush2.msra.mxu0 %v196
    %2748 = vmatprep.subr.mxu0 %v193
    %2749 = vmatpush2.msra.mxu0 %v192
    %2750 = vmatprep.subr.mxu0 %v189
    %2751 = vmatpush2.msra.mxu0 %v188
    %2752 = vmatprep.subr.mxu0 %v185
    %2753 = vmatpush2.msra.mxu0 %v184
    %2754 = vmatprep.subr.mxu0 %v181
    %2755 = vmatpush2.msra.mxu0 %v180
    %2756 = vmatprep.subr.mxu0 %v177
    %2757 = vmatpush2.msra.mxu0 %v176
    %2758 = vmatprep.subr.mxu0 %v173
    %2759 = vmatpush2.msra.mxu0 %v172
    %2760 = vmatprep.subr.mxu0 %v169
    %2761 = vmatpush2.msra.mxu0 %v168
    %2762 = vmatprep.subr.mxu0 %v165
    %2763 = vmatpush2.msra.mxu0 %v164
    %2764 = vmatprep.subr.mxu0 %v161
    %2765 = vmatpush2.msra.mxu0 %v160
    %2766 = vmatprep.subr.mxu0 %v157
    %2767 = vmatpush2.msra.mxu0 %v156
    %2768 = vmatprep.subr.mxu0 %v153
    %2769 = vmatpush2.msra.mxu0 %v152
    %2770 = vmatprep.subr.mxu0 %v149
    %2771 = vmatpush2.msra.mxu0 %v148
    %2772 = vmatprep.subr.mxu0 %v145
    %2773 = vmatpush2.msra.mxu0 %v144
    %2774 = vmatprep.subr.mxu0 %v141
    %2775 = vmatpush2.msra.mxu0 %v140
    %2776 = vmatprep.mubr.f32.mxu0 %v2543
    %2777 = vmatmul.mubr.f32.gmra.mxu0 %v2711
    %v2778 = vpop.f32.mrf.mxu0
    %v2779 = vadd.f32 %v208, %v2778
    %v2780 = vpop.f32.mrf.mxu0
    %v2781 = vadd.f32 %v212, %v2780
    %2782 = vdwg.mxu0
    %2783 = vmatprep.subr.mxu0 %v139
    %2784 = vmatpush1.msra.mxu0 %v138
    %2785 = vmatprep.subr.mxu0 %v135
    %2786 = vmatpush1.msra.mxu0 %v134
    %2787 = vmatprep.subr.mxu0 %v131
    %2788 = vmatpush1.msra.mxu0 %v130
    %2789 = vmatprep.subr.mxu0 %v127
    %2790 = vmatpush1.msra.mxu0 %v126
    %2791 = vmatprep.subr.mxu0 %v123
    %2792 = vmatpush1.msra.mxu0 %v122
    %2793 = vmatprep.subr.mxu0 %v119
    %2794 = vmatpush1.msra.mxu0 %v118
    %2795 = vmatprep.subr.mxu0 %v115
    %2796 = vmatpush1.msra.mxu0 %v114
    %2797 = vmatprep.subr.mxu0 %v111
    %2798 = vmatpush1.msra.mxu0 %v110
    %2799 = vmatprep.subr.mxu0 %v107
    %2800 = vmatpush1.msra.mxu0 %v106
    %2801 = vmatprep.subr.mxu0 %v103
    %2802 = vmatpush1.msra.mxu0 %v102
    %2803 = vmatprep.subr.mxu0 %v99
    %2804 = vmatpush1.msra.mxu0 %v98
    %2805 = vmatprep.subr.mxu0 %v95
    %2806 = vmatpush1.msra.mxu0 %v94
    %2807 = vmatprep.subr.mxu0 %v91
    %2808 = vmatpush1.msra.mxu0 %v90
    %2809 = vmatprep.subr.mxu0 %v87
    %2810 = vmatpush1.msra.mxu0 %v86
    %2811 = vmatprep.subr.mxu0 %v83
    %2812 = vmatpush1.msra.mxu0 %v82
    %2813 = vmatprep.subr.mxu0 %v79
    %2814 = vmatpush1.msra.mxu0 %v78
    %2815 = vmatprep.subr.mxu0 %v203
    %2816 = vmatpush2.msra.mxu0 %v202
    %2817 = vmatprep.subr.mxu0 %v199
    %2818 = vmatpush2.msra.mxu0 %v198
    %2819 = vmatprep.subr.mxu0 %v195
    %2820 = vmatpush2.msra.mxu0 %v194
    %2821 = vmatprep.subr.mxu0 %v191
    %2822 = vmatpush2.msra.mxu0 %v190
    %2823 = vmatprep.subr.mxu0 %v187
    %2824 = vmatpush2.msra.mxu0 %v186
    %2825 = vmatprep.subr.mxu0 %v183
    %2826 = vmatpush2.msra.mxu0 %v182
    %2827 = vmatprep.subr.mxu0 %v179
    %2828 = vmatpush2.msra.mxu0 %v178
    %2829 = vmatprep.subr.mxu0 %v175
    %2830 = vmatpush2.msra.mxu0 %v174
    %2831 = vmatprep.subr.mxu0 %v171
    %2832 = vmatpush2.msra.mxu0 %v170
    %2833 = vmatprep.subr.mxu0 %v167
    %2834 = vmatpush2.msra.mxu0 %v166
    %2835 = vmatprep.subr.mxu0 %v163
    %2836 = vmatpush2.msra.mxu0 %v162
    %2837 = vmatprep.subr.mxu0 %v159
    %2838 = vmatpush2.msra.mxu0 %v158
    %2839 = vmatprep.subr.mxu0 %v155
    %2840 = vmatpush2.msra.mxu0 %v154
    %2841 = vmatprep.subr.mxu0 %v151
    %2842 = vmatpush2.msra.mxu0 %v150
    %2843 = vmatprep.subr.mxu0 %v147
    %2844 = vmatpush2.msra.mxu0 %v146
    %2845 = vmatprep.subr.mxu0 %v143
    %2846 = vmatpush2.msra.mxu0 %v142
    %2847 = vmatprep.mubr.f32.mxu0 %v2543
    %2848 = vmatmul.mubr.f32.gmra.mxu0 %v2711
    %v2849 = vpop.f32.mrf.mxu0
    %v2850 = vadd.f32 %v216, %v2849
    %v2851 = vpop.f32.mrf.mxu0
    %v2852 = vadd.f32 %v220, %v2851
    %2853 = vdwg.mxu0
    %v2854 = vxor.u32 %v2779, 2147483648
    %v2855 = vmul.f32 %v2854, 1.442695
    %v2856 = vpow.pop %v2855
    %v2857 = vadd.f32 %v2856, 1.0
    %v2858 = vrcp.pop %v2857
    %v2859 = vmul.f32 1.0, %v2858
    %v2860 = vxor.u32 %v2781, 2147483648
    %v2861 = vmul.f32 %v2860, 1.442695
    %v2862 = vpow.pop %v2861
    %v2863 = vadd.f32 %v2862, 1.0
    %v2864 = vrcp.pop %v2863
    %v2865 = vmul.f32 1.0, %v2864
    %v2866 = vtanh.pop %v2850
    %v2867 = vxor.u32 %v2852, 2147483648
    %v2868 = vmul.f32 %v2867, 1.442695
    %v2869 = vpow.pop %v2868
    %v2870 = vadd.f32 %v2869, 1.0
    %v2871 = vrcp.pop %v2870
    %v2872 = vmul.f32 1.0, %v2871
    %v2873 = vmul.f32 %v2865, %v2541
    %v2874 = vmul.f32 %v2859, %v2866
    %v2875 = vadd.f32 %v2873, %v2874
    %v2876 = vtanh.pop %v2875
    %v2877 = vmul.f32 %v2872, %v2876
    %2878 = vmatprep.subr.mxu0 %v452
    %2879 = vmatpush1.msra.mxu0 %v451
    %2880 = vmatprep.subr.mxu0 %v448
    %2881 = vmatpush1.msra.mxu0 %v447
    %2882 = vmatprep.subr.mxu0 %v444
    %2883 = vmatpush1.msra.mxu0 %v443
    %2884 = vmatprep.subr.mxu0 %v440
    %2885 = vmatpush1.msra.mxu0 %v439
    %2886 = vmatprep.subr.mxu0 %v436
    %2887 = vmatpush1.msra.mxu0 %v435
    %2888 = vmatprep.subr.mxu0 %v432
    %2889 = vmatpush1.msra.mxu0 %v431
    %2890 = vmatprep.subr.mxu0 %v428
    %2891 = vmatpush1.msra.mxu0 %v427
    %2892 = vmatprep.subr.mxu0 %v424
    %2893 = vmatpush1.msra.mxu0 %v423
    %2894 = vmatprep.subr.mxu0 %v420
    %2895 = vmatpush1.msra.mxu0 %v419
    %2896 = vmatprep.subr.mxu0 %v416
    %2897 = vmatpush1.msra.mxu0 %v415
    %2898 = vmatprep.subr.mxu0 %v412
    %2899 = vmatpush1.msra.mxu0 %v411
    %2900 = vmatprep.subr.mxu0 %v408
    %2901 = vmatpush1.msra.mxu0 %v407
    %2902 = vmatprep.subr.mxu0 %v404
    %2903 = vmatpush1.msra.mxu0 %v403
    %2904 = vmatprep.subr.mxu0 %v400
    %2905 = vmatpush1.msra.mxu0 %v399
    %2906 = vmatprep.subr.mxu0 %v396
    %2907 = vmatpush1.msra.mxu0 %v395
    %2908 = vmatprep.subr.mxu0 %v392
    %2909 = vmatpush1.msra.mxu0 %v391
    %2910 = vmatprep.subr.mxu0 %v516
    %2911 = vmatpush2.msra.mxu0 %v515
    %2912 = vmatprep.subr.mxu0 %v512
    %2913 = vmatpush2.msra.mxu0 %v511
    %2914 = vmatprep.subr.mxu0 %v508
    %2915 = vmatpush2.msra.mxu0 %v507
    %2916 = vmatprep.subr.mxu0 %v504
    %2917 = vmatpush2.msra.mxu0 %v503
    %2918 = vmatprep.subr.mxu0 %v500
    %2919 = vmatpush2.msra.mxu0 %v499
    %2920 = vmatprep.subr.mxu0 %v496
    %2921 = vmatpush2.msra.mxu0 %v495
    %2922 = vmatprep.subr.mxu0 %v492
    %2923 = vmatpush2.msra.mxu0 %v491
    %2924 = vmatprep.subr.mxu0 %v488
    %2925 = vmatpush2.msra.mxu0 %v487
    %2926 = vmatprep.subr.mxu0 %v484
    %2927 = vmatpush2.msra.mxu0 %v483
    %2928 = vmatprep.subr.mxu0 %v480
    %2929 = vmatpush2.msra.mxu0 %v479
    %2930 = vmatprep.subr.mxu0 %v476
    %2931 = vmatpush2.msra.mxu0 %v475
    %2932 = vmatprep.subr.mxu0 %v472
    %2933 = vmatpush2.msra.mxu0 %v471
    %2934 = vmatprep.subr.mxu0 %v468
    %2935 = vmatpush2.msra.mxu0 %v467
    %2936 = vmatprep.subr.mxu0 %v464
    %2937 = vmatpush2.msra.mxu0 %v463
    %2938 = vmatprep.subr.mxu0 %v460
    %2939 = vmatpush2.msra.mxu0 %v459
    %2940 = vmatprep.subr.mxu0 %v456
    %2941 = vmatpush2.msra.mxu0 %v455
    %2942 = vmatprep.mubr.f32.mxu0 %v2709
    %2943 = vmatmul.mubr.f32.gmra.mxu0 %v2877
    %v2944 = vpop.f32.mrf.mxu0
    %v2945 = vadd.f32 %v523, %v2944
    %v2946 = vpop.f32.mrf.mxu0
    %v2947 = vadd.f32 %v527, %v2946
    %2948 = vdwg.mxu0
    %2949 = vmatprep.subr.mxu0 %v454
    %2950 = vmatpush1.msra.mxu0 %v453
    %2951 = vmatprep.subr.mxu0 %v450
    %2952 = vmatpush1.msra.mxu0 %v449
    %2953 = vmatprep.subr.mxu0 %v446
    %2954 = vmatpush1.msra.mxu0 %v445
    %2955 = vmatprep.subr.mxu0 %v442
    %2956 = vmatpush1.msra.mxu0 %v441
    %2957 = vmatprep.subr.mxu0 %v438
    %2958 = vmatpush1.msra.mxu0 %v437
    %2959 = vmatprep.subr.mxu0 %v434
    %2960 = vmatpush1.msra.mxu0 %v433
    %2961 = vmatprep.subr.mxu0 %v430
    %2962 = vmatpush1.msra.mxu0 %v429
    %2963 = vmatprep.subr.mxu0 %v426
    %2964 = vmatpush1.msra.mxu0 %v425
    %2965 = vmatprep.subr.mxu0 %v422
    %2966 = vmatpush1.msra.mxu0 %v421
    %2967 = vmatprep.subr.mxu0 %v418
    %2968 = vmatpush1.msra.mxu0 %v417
    %2969 = vmatprep.subr.mxu0 %v414
    %2970 = vmatpush1.msra.mxu0 %v413
    %2971 = vmatprep.subr.mxu0 %v410
    %2972 = vmatpush1.msra.mxu0 %v409
    %2973 = vmatprep.subr.mxu0 %v406
    %2974 = vmatpush1.msra.mxu0 %v405
    %2975 = vmatprep.subr.mxu0 %v402
    %2976 = vmatpush1.msra.mxu0 %v401
    %2977 = vmatprep.subr.mxu0 %v398
    %2978 = vmatpush1.msra.mxu0 %v397
    %2979 = vmatprep.subr.mxu0 %v394
    %2980 = vmatpush1.msra.mxu0 %v393
    %2981 = vmatprep.subr.mxu0 %v518
    %2982 = vmatpush2.msra.mxu0 %v517
    %2983 = vmatprep.subr.mxu0 %v514
    %2984 = vmatpush2.msra.mxu0 %v513
    %2985 = vmatprep.subr.mxu0 %v510
    %2986 = vmatpush2.msra.mxu0 %v509
    %2987 = vmatprep.subr.mxu0 %v506
    %2988 = vmatpush2.msra.mxu0 %v505
    %2989 = vmatprep.subr.mxu0 %v502
    %2990 = vmatpush2.msra.mxu0 %v501
    %2991 = vmatprep.subr.mxu0 %v498
    %2992 = vmatpush2.msra.mxu0 %v497
    %2993 = vmatprep.subr.mxu0 %v494
    %2994 = vmatpush2.msra.mxu0 %v493
    %2995 = vmatprep.subr.mxu0 %v490
    %2996 = vmatpush2.msra.mxu0 %v489
    %2997 = vmatprep.subr.mxu0 %v486
    %2998 = vmatpush2.msra.mxu0 %v485
    %2999 = vmatprep.subr.mxu0 %v482
    %3000 = vmatpush2.msra.mxu0 %v481
    %3001 = vmatprep.subr.mxu0 %v478
    %3002 = vmatpush2.msra.mxu0 %v477
    %3003 = vmatprep.subr.mxu0 %v474
    %3004 = vmatpush2.msra.mxu0 %v473
    %3005 = vmatprep.subr.mxu0 %v470
    %3006 = vmatpush2.msra.mxu0 %v469
    %3007 = vmatprep.subr.mxu0 %v466
    %3008 = vmatpush2.msra.mxu0 %v465
    %3009 = vmatprep.subr.mxu0 %v462
    %3010 = vmatpush2.msra.mxu0 %v461
    %3011 = vmatprep.subr.mxu0 %v458
    %3012 = vmatpush2.msra.mxu0 %v457
    %3013 = vmatprep.mubr.f32.mxu0 %v2709
    %3014 = vmatmul.mubr.f32.gmra.mxu0 %v2877
    %v3015 = vpop.f32.mrf.mxu0
    %v3016 = vadd.f32 %v531, %v3015
    %v3017 = vpop.f32.mrf.mxu0
    %v3018 = vadd.f32 %v535, %v3017
    %3019 = vdwg.mxu0
    %v3020 = vxor.u32 %v2945, 2147483648
    %v3021 = vmul.f32 %v3020, 1.442695
    %v3022 = vpow.pop %v3021
    %v3023 = vadd.f32 %v3022, 1.0
    %v3024 = vrcp.pop %v3023
    %v3025 = vmul.f32 1.0, %v3024
    %v3026 = vxor.u32 %v2947, 2147483648
    %v3027 = vmul.f32 %v3026, 1.442695
    %v3028 = vpow.pop %v3027
    %v3029 = vadd.f32 %v3028, 1.0
    %v3030 = vrcp.pop %v3029
    %v3031 = vmul.f32 1.0, %v3030
    %v3032 = vtanh.pop %v3016
    %v3033 = vxor.u32 %v3018, 2147483648
    %v3034 = vmul.f32 %v3033, 1.442695
    %v3035 = vpow.pop %v3034
    %v3036 = vadd.f32 %v3035, 1.0
    %v3037 = vrcp.pop %v3036
    %v3038 = vmul.f32 1.0, %v3037
    %v3039 = vmul.f32 %v3031, %v2707
    %v3040 = vmul.f32 %v3025, %v3032
    %v3041 = vadd.f32 %v3039, %v3040
    %v3042 = vtanh.pop %v3041
    %v3043 = vmul.f32 %v3038, %v3042
    %3044 = vst [vmem:[#allocation8] sm:$0xff] %v2877
    %s3045 = scalar_lea.vmem [#allocation8], 8
    %3046 = vst [vmem:[%s3045] sm:$0xff] %v3043
    %3047 = vst [vmem:[#allocation9] sm:$0xff] %v2875
    %s3048 = scalar_lea.vmem [#allocation9], 8
    %3049 = vst [vmem:[%s3048] sm:$0xff] %v3041
    %v3050 = vld [vmem:[%s7] sm:$0x1]
    %v3052 = vlaneseq
    %v3053 = vshrl.u32 %v3052, 7
    %v3054 = vsub.s32 0, %v3053
    %v3055 = vrot.slane %v3050, %v3054
    %v3057 = vmul.f32 %v3043, %v3055
    %3058 = vadd.xlane.f32.xlu0 %v3057
    %v3059 = vpop.xlane.xlu0 %3058
    %v3060 = vld [vmem:[#allocation2] sm:$0x1]
    %v3062 = vlaneseq
    %v3063 = vshrl.u32 %v3062, 7
    %v3064 = vsub.s32 0, %v3063
    %v3065 = vrot.slane %v3060, %v3064
    %v3067 = vadd.f32 %v3059, %v3065
    %v3068 = vxor.u32 %v3067, 2147483648
    %v3069 = vmul.f32 %v3068, 1.442695
    %v3070 = vpow.pop %v3069
    %v3071 = vadd.f32 %v3070, 1.0
    %v3072 = vrcp.pop %v3071
    %v3073 = vmul.f32 1.0, %v3072
    %vm3074 = vcmask 7168
    %3075 = vst.msk [vmem:[%s9] sm:$0xff] %vm3074, %v3073
    // Predicated region
    $region46: #{sentiment_lstm_forward.1} parent=1 // pred_check
      _
    $region47: #{sentiment_lstm_forward.1} parent=1 // pred_check_branch
      %3077 = sbr.rel (0) target = $region49
    $region48: #{sentiment_lstm_forward.1} parent=1 // pred_region
      _
    $region49: #{sentiment_lstm_forward.1} parent=1 // pred_fallthru
      _
    // Predicated region
    $region50: #{sentiment_lstm_forward.1} parent=1 // pred_check
      _
    $region51: #{sentiment_lstm_forward.1} parent=1 // pred_check_branch
      %3079 = sbr.rel (0) target = $region53
    $region52: #{sentiment_lstm_forward.1} parent=1 // pred_region
      %s3081 = ssub.s32 256, 256
      %3082 = vsyncadd [#allocation5], %s3081
      %s3083 = sshll.u32 [#allocation8], 4
      %s3084 = int_to_ptr.vmem [resolvable:$true] %s3083
      %3089 = dma.vmem_to_hbm [thread:$0]  %s3084, 256, %s10, [#allocation5], 128, 128, 8
    $region53: #{sentiment_lstm_forward.1} parent=1 // pred_fallthru
      _
    // Predicated region
    $region54: #{sentiment_lstm_forward.1} parent=1 // pred_check
      _
    $region55: #{sentiment_lstm_forward.1} parent=1 // pred_check_branch
      %3091 = sbr.rel (0) target = $region57
    $region56: #{sentiment_lstm_forward.1} parent=1 // pred_region
      %s3093 = ssub.s32 256, 256
      %3094 = vsyncadd [#allocation10], %s3093
      %s3095 = sshll.u32 [#allocation9], 4
      %s3096 = int_to_ptr.vmem [resolvable:$true] %s3095
      %3101 = dma.vmem_to_hbm [thread:$0]  %s3096, 256, %s11, [#allocation10], 128, 128, 8
    $region57: #{sentiment_lstm_forward.1} parent=1 // pred_fallthru
      _
    // Predicated region
    $region58: #{sentiment_lstm_forward.1} parent=1 // pred_check
      _
    $region59: #{sentiment_lstm_forward.1} parent=1 // pred_check_branch
      %3103 = sbr.rel (0) target = $region61
    $region60: #{sentiment_lstm_forward.1} parent=1 // pred_region
      _
    $region61: #{sentiment_lstm_forward.1} parent=1 // pred_fallthru
      _
    // Predicated region
    $region62: #{sentiment_lstm_forward.1} parent=1 // pred_check
      _
    $region63: #{sentiment_lstm_forward.1} parent=1 // pred_check_branch
      %3105 = sbr.rel (0) target = $region65
    $region64: #{sentiment_lstm_forward.1} parent=1 // pred_region
      %3106 = dma.done [#allocation5], 256
    $region65: #{sentiment_lstm_forward.1} parent=1 // pred_fallthru
      _
    // Predicated region
    $region66: #{sentiment_lstm_forward.1} parent=1 // pred_check
      _
    $region67: #{sentiment_lstm_forward.1} parent=1 // pred_check_branch
      %3108 = sbr.rel (0) target = $region69
    $region68: #{sentiment_lstm_forward.1} parent=1 // pred_region
      %3109 = dma.done [#allocation10], 256
    $region69: #{sentiment_lstm_forward.1} parent=1 // pred_fallthru
      _
    %3110 = vsyncpa [#allocation4], 1
    %3111 = vsyncpa [#allocation7], 1
    %3112 = vsyncpa [#allocation5], 1
    %3113 = vsyncpa [#allocation10], 1

</llo_original>
